<compile_context>
chip_gen: v6e
topology: v6e:2x2x1
jax: 0.10.0
libtpu: 0.0.40
codegen_flags: <defaults>
</compile_context>

<pallas_src>
import jax
import jax.numpy as jnp
from jax.experimental import pallas as pl
from jax.experimental.pallas import tpu as pltpu


_OFF = 8  # sublane-aligned W offset of the interior inside the padded scratch


def _silu(x):
    return x * jax.nn.sigmoid(x)


def _round_up(v, m):
    return (v + m - 1) // m * m


# --------------------------------- kernel ----------------------------------

def _cib_kernel(x_ref,
                w_dw1_ref, b_dw1_ref,
                w_pw1_ref, b_pw1_ref,
                w_dw2_ref, b_dw2_ref,
                w_pw2_ref, b_pw2_ref,
                w_dw3_ref, b_dw3_ref,
                o_ref,
                pad_ref):
    # x_ref block: (1, H, W, Cp) NHWC; channels (padded to a 128 multiple) on lanes.
    H, W = x_ref.shape[1], x_ref.shape[2]
    _, Wp, Cmax = pad_ref.shape

    # --- zero ONLY the halo ring, once per grid step (interior is always
    # overwritten by each DW stage). All four stores are sublane-aligned. ---
    pad_ref[0:1, :, :] = jnp.zeros((1, Wp, Cmax), jnp.float32)
    pad_ref[H + 1:H + 2, :, :] = jnp.zeros((1, Wp, Cmax), jnp.float32)
    pad_ref[1:H + 1, 0:_OFF, :] = jnp.zeros((H, _OFF, Cmax), jnp.float32)
    pad_ref[1:H + 1, _OFF + W:Wp, :] = (
        jnp.zeros((H, Wp - _OFF - W, Cmax), jnp.float32))

    def dw3x3(inp, w9_ref, b_ref):
        # Depthwise 3x3, stride 1, "same" zero padding, BN folded, SiLU.
        cp = w9_ref.shape[1]
        # Aligned interior store (W offset _OFF is a multiple of 8 -> unmasked).
        pad_ref[1:H + 1, _OFF:_OFF + W, :cp] = inp
        w9 = w9_ref[...]                         # (9, cp) taps, row = dh*3 + dw
        b = b_ref[0]                             # (cp,)
        acc = inp * w9[4]                        # center tap: reuse in-register value
        for dh in range(3):
            for dw in range(3):
                if dh == 1 and dw == 1:
                    continue
                tap = pad_ref[dh:dh + H, _OFF - 1 + dw:_OFF - 1 + dw + W, :cp]
                acc = acc + tap * w9[dh * 3 + dw]
        return _silu(acc + b)

    def pw1x1(inp, w_ref, b_ref):
        # Pointwise 1x1 conv == channel matmul: bf16 operands, f32 accumulation.
        cin, cout = w_ref.shape
        a = inp.astype(jnp.bfloat16).reshape(H * W, cin)
        y = jnp.dot(a, w_ref[...], preferred_element_type=jnp.float32)
        y = _silu(y + b_ref[0])
        return y.reshape(H, W, cout)

    x = x_ref[0].astype(jnp.float32)             # (H, W, Cp)
    y = dw3x3(x, w_dw1_ref, b_dw1_ref)
    y = pw1x1(y, w_pw1_ref, b_pw1_ref)
    y = dw3x3(y, w_dw2_ref, b_dw2_ref)
    y = pw1x1(y, w_pw2_ref, b_pw2_ref)
    y = dw3x3(y, w_dw3_ref, b_dw3_ref)
    # shortcut (self.add == True since shortcut and c1 == c2)
    o_ref[0] = (x + y).astype(o_ref.dtype)


# ----------------------------- parameter setup -----------------------------

def _init_conv_bn(key, cout, cin_per_group, k):
    k1, k2, k3, k4, k5 = jax.random.split(key, 5)
    w = 0.1 * jax.random.normal(k1, (cout, cin_per_group, k, k), jnp.float32)
    gamma = 1.0 + 0.1 * jax.random.normal(k2, (cout,), jnp.float32)
    beta = 0.1 * jax.random.normal(k3, (cout,), jnp.float32)
    mean = 0.1 * jax.random.normal(k4, (cout,), jnp.float32)
    var = 1.0 + 0.1 * jax.random.uniform(k5, (cout,), jnp.float32)
    return w, gamma, beta, mean, var


def _fold_bn_dw(w, gamma, beta, mean, var, eps=1e-3):
    # depthwise conv weight (C, 1, 3, 3) -> taps (9, C); BN folded.
    scale = gamma / jnp.sqrt(var + eps)
    w_f = jnp.transpose(w[:, 0], (1, 2, 0)) * scale[None, None, :]   # (3, 3, C)
    b = beta - mean * scale
    return w_f.reshape(9, -1), b[None, :]


def _fold_bn_pw(w, gamma, beta, mean, var, eps=1e-3):
    # pointwise conv weight (Cout, Cin, 1, 1) -> (Cin, Cout); BN folded.
    scale = gamma / jnp.sqrt(var + eps)
    w_f = jnp.transpose(w[:, :, 0, 0], (1, 0)) * scale[None, :]      # (Cin, Cout)
    b = beta - mean * scale
    return w_f, b[None, :]


def init_cib_params(key, c1, c2, e=0.5):
    c_mid = 2 * int(c2 * e)
    keys = jax.random.split(key, 5)
    return dict(
        dw1=_fold_bn_dw(*_init_conv_bn(keys[0], c1, 1, 3)),
        pw1=_fold_bn_pw(*_init_conv_bn(keys[1], c_mid, c1, 1)),
        dw2=_fold_bn_dw(*_init_conv_bn(keys[2], c_mid, 1, 3)),
        pw2=_fold_bn_pw(*_init_conv_bn(keys[3], c2, c_mid, 1)),
        dw3=_fold_bn_dw(*_init_conv_bn(keys[4], c2, 1, 3)),
    )


# ------------------------------- wrapper -----------------------------------

def cib_forward(x_nchw, params):
    N, C, H, W = x_nchw.shape
    x = jnp.transpose(x_nchw, (0, 2, 3, 1)).astype(jnp.float32)   # NCHW -> NHWC

    w_dw1, b_dw1 = params["dw1"]
    w_pw1, b_pw1 = params["pw1"]
    w_dw2, b_dw2 = params["dw2"]
    w_pw2, b_pw2 = params["pw2"]
    w_dw3, b_dw3 = params["dw3"]

    c1 = w_dw1.shape[1]
    c_mid = w_pw1.shape[1]
    c2 = w_pw2.shape[1]
    assert c1 == C and c1 == c2, "CIB shortcut requires c1 == c2"

    # Channel padding to multiples of 128: lane-dense vregs + full MXU K/N.
    cp1 = _round_up(c1, 128)
    cpm = _round_up(c_mid, 128)
    cp2 = _round_up(c2, 128)
    cmax = max(cp1, cpm, cp2)

    def pad_dw(w9, b, cp):
        p = cp - w9.shape[1]
        return (jnp.pad(w9, ((0, 0), (0, p))),
                jnp.pad(b, ((0, 0), (0, p))))

    def pad_pw(wm, b, cpi, cpo):
        wm = jnp.pad(wm, ((0, cpi - wm.shape[0]), (0, cpo - wm.shape[1])))
        b = jnp.pad(b, ((0, 0), (0, cpo - b.shape[1])))
        return wm.astype(jnp.bfloat16), b          # bf16 weights for the MXU

    w_dw1, b_dw1 = pad_dw(w_dw1, b_dw1, cp1)
    w_pw1, b_pw1 = pad_pw(w_pw1, b_pw1, cp1, cpm)
    w_dw2, b_dw2 = pad_dw(w_dw2, b_dw2, cpm)
    w_pw2, b_pw2 = pad_pw(w_pw2, b_pw2, cpm, cp2)
    w_dw3, b_dw3 = pad_dw(w_dw3, b_dw3, cp2)

    xp = jnp.pad(x, ((0, 0), (0, 0), (0, 0), (0, cp1 - C)))

    # Padded DW scratch width: interior stored at sublane-aligned offset _OFF,
    # left halo at column _OFF-1, right halo at column _OFF+W.
    wp = _round_up(_OFF + W + 1, 8)

    args = [xp, w_dw1, b_dw1, w_pw1, b_pw1,
            w_dw2, b_dw2, w_pw2, b_pw2, w_dw3, b_dw3]

    def full_spec(a):
        nd = a.ndim
        return pl.BlockSpec(a.shape, lambda n, _nd=nd: (0,) * _nd)

    in_specs = ([pl.BlockSpec((1, H, W, cp1), lambda n: (n, 0, 0, 0))]
                + [full_spec(a) for a in args[1:]])

    # Advisory cost estimate for XLA's scheduler.
    flops = int(2 * N * H * W * (cp1 * cpm + cpm * cp2)
                + 2 * N * H * W * 9 * (cp1 + cpm + cp2))
    transcendentals = int(N * H * W * (cp1 + 2 * cpm + 2 * cp2))
    bytes_accessed = int(xp.size * 4 + N * H * W * cp2 * 4
                         + sum(int(a.size) * a.dtype.itemsize for a in args[1:]))

    # Batch elements are independent -> "parallel" (uses both v7x TensorCores;
    # neutral on v5e/v6e). Raise the scoped-VMEM limit based on detected chip.
    compiler_kwargs = dict(dimension_semantics=("parallel",))
    try:
        cap = getattr(pltpu.get_tpu_info(), "vmem_capacity_bytes", None)
        if cap:
            compiler_kwargs["vmem_limit_bytes"] = int(
                min(96 * 1024 * 1024, int(cap) * 3 // 4))
    except Exception:
        pass

    out = pl.pallas_call(
        _cib_kernel,
        out_shape=jax.ShapeDtypeStruct((N, H, W, cp2), x.dtype),
        grid_spec=pltpu.PrefetchScalarGridSpec(
            num_scalar_prefetch=0,
            grid=(N,),
            in_specs=in_specs,
            out_specs=pl.BlockSpec((1, H, W, cp2), lambda n: (n, 0, 0, 0)),
            scratch_shapes=[pltpu.VMEM((H + 2, wp, cmax), jnp.float32)],
        ),
        compiler_params=pltpu.CompilerParams(**compiler_kwargs),
        cost_estimate=pl.CostEstimate(
            flops=flops, transcendentals=transcendentals,
            bytes_accessed=bytes_accessed),
    )(*args)

    out = out[:, :, :, :c2]                      # drop channel padding
    return jnp.transpose(out, (0, 3, 1, 2))      # back to NCHW


# ------------------------- pure-JAX reference check -------------------------

def cib_reference(x_nchw, params):
    x = jnp.transpose(x_nchw, (0, 2, 3, 1)).astype(jnp.float32)

    def dw(v, p):
        w9, b = p
        c = v.shape[-1]
        w = w9.reshape(3, 3, c)[:, :, None, :]               # HWIO, I=1 per group
        y = jax.lax.conv_general_dilated(
            v, w, (1, 1), "SAME",
            dimension_numbers=("NHWC", "HWIO", "NHWC"),
            feature_group_count=c)
        return _silu(y + b[0])

    def pw(v, p):
        wmat, b = p
        y = jnp.einsum("nhwc,cd->nhwd", v, wmat,
                       precision=jax.lax.Precision.HIGHEST) + b[0]
        return _silu(y)

    y = dw(x, params["dw1"])
    y = pw(y, params["pw1"])
    y = dw(y, params["dw2"])
    y = pw(y, params["pw2"])
    y = dw(y, params["dw3"])
    return jnp.transpose(x + y, (0, 3, 1, 2))


if __name__ == "__main__":
    N, C, H, W = 2, 16, 16, 16          # c1 == c2 == 16, e=0.5 -> 2*c_ == 16
    x = jax.random.normal(jax.random.PRNGKey(0), (N, C, H, W), jnp.float32)
    params = init_cib_params(jax.random.PRNGKey(1), c1=C, c2=C, e=0.5)

    y = cib_forward(x, params)
    y = jax.block_until_ready(y)

    y_ref = cib_reference(x, params)
    assert y.shape == (N, C, H, W)
    # bf16 MXU operands (f32 accumulation) -> slightly looser tolerance than pure f32.
    assert jnp.allclose(y, y_ref, atol=2e-2, rtol=2e-2), "mismatch vs reference"
    print("KERNEL_OK")
</pallas_src>

<mosaic_0001>
module attributes {stable_mosaic.version = 11 : i64} {
  func.func @_cib_kernel(%arg0: i32, %arg1: memref<1x16x16x128xf32, #tpu.memory_space<vmem>>, %arg2: memref<9x128xf32, #tpu.memory_space<vmem>>, %arg3: memref<1x128xf32, #tpu.memory_space<vmem>>, %arg4: memref<128x128xbf16, #tpu.memory_space<vmem>>, %arg5: memref<1x128xf32, #tpu.memory_space<vmem>>, %arg6: memref<9x128xf32, #tpu.memory_space<vmem>>, %arg7: memref<1x128xf32, #tpu.memory_space<vmem>>, %arg8: memref<128x128xbf16, #tpu.memory_space<vmem>>, %arg9: memref<1x128xf32, #tpu.memory_space<vmem>>, %arg10: memref<9x128xf32, #tpu.memory_space<vmem>>, %arg11: memref<1x128xf32, #tpu.memory_space<vmem>>, %arg12: memref<1x16x16x128xf32, #tpu.memory_space<vmem>>, %arg13: memref<18x32x128xf32, #tpu.memory_space<vmem>>) attributes {dimension_semantics = [#tpu.dimension_semantics<parallel>], iteration_bounds = array<i64: 2>, scalar_prefetch = 0 : i64, scratch_operands = 1 : i64, tpu.core_type = #tpu.core_type<tc>, window_params = [{transform_indices = @transform_0, window_bounds = array<i64: 1, 16, 16, 128>}, {pipeline_mode = #tpu.pipeline_mode<synchronous>, transform_indices = @transform_1, window_bounds = array<i64: 9, 128>}, {pipeline_mode = #tpu.pipeline_mode<synchronous>, transform_indices = @transform_2, window_bounds = array<i64: 1, 128>}, {pipeline_mode = #tpu.pipeline_mode<synchronous>, transform_indices = @transform_3, window_bounds = array<i64: 128, 128>}, {pipeline_mode = #tpu.pipeline_mode<synchronous>, transform_indices = @transform_4, window_bounds = array<i64: 1, 128>}, {pipeline_mode = #tpu.pipeline_mode<synchronous>, transform_indices = @transform_5, window_bounds = array<i64: 9, 128>}, {pipeline_mode = #tpu.pipeline_mode<synchronous>, transform_indices = @transform_6, window_bounds = array<i64: 1, 128>}, {pipeline_mode = #tpu.pipeline_mode<synchronous>, transform_indices = @transform_7, window_bounds = array<i64: 128, 128>}, {pipeline_mode = #tpu.pipeline_mode<synchronous>, transform_indices = @transform_8, window_bounds = array<i64: 1, 128>}, {pipeline_mode = #tpu.pipeline_mode<synchronous>, transform_indices = @transform_9, window_bounds = array<i64: 9, 128>}, {pipeline_mode = #tpu.pipeline_mode<synchronous>, transform_indices = @transform_10, window_bounds = array<i64: 1, 128>}, {transform_indices = @transform_11, window_bounds = array<i64: 1, 16, 16, 128>}]} {
    %cst = arith.constant 0.000000e+00 : f32
    %0 = vector.broadcast %cst : f32 to vector<1x32x128xf32>
    %c0 = arith.constant 0 : index
    %c0_0 = arith.constant 0 : index
    %c0_1 = arith.constant 0 : index
    %1 = vector.load %arg13[%c0, %c0_0, %c0_1] : memref<18x32x128xf32, #tpu.memory_space<vmem>>, vector<1x32x128xf32>
    tpu.vector_store %arg13[%c0, %c0_0, %c0_1], %0 {strides = array<i32>} : memref<18x32x128xf32, #tpu.memory_space<vmem>>, vector<1x32x128xf32>,
    %cst_2 = arith.constant 0.000000e+00 : f32
    %2 = vector.broadcast %cst_2 : f32 to vector<1x32x128xf32>
    %c17 = arith.constant 17 : index
    %c0_3 = arith.constant 0 : index
    %c0_4 = arith.constant 0 : index
    %3 = vector.load %arg13[%c17, %c0_3, %c0_4] : memref<18x32x128xf32, #tpu.memory_space<vmem>>, vector<1x32x128xf32>
    tpu.vector_store %arg13[%c17, %c0_3, %c0_4], %2 {strides = array<i32>} : memref<18x32x128xf32, #tpu.memory_space<vmem>>, vector<1x32x128xf32>,
    %cst_5 = arith.constant 0.000000e+00 : f32
    %4 = vector.broadcast %cst_5 : f32 to vector<16x8x128xf32>
    %c1 = arith.constant 1 : index
    %c0_6 = arith.constant 0 : index
    %c0_7 = arith.constant 0 : index
    %5 = vector.load %arg13[%c1, %c0_6, %c0_7] : memref<18x32x128xf32, #tpu.memory_space<vmem>>, vector<16x8x128xf32>
    tpu.vector_store %arg13[%c1, %c0_6, %c0_7], %4 {strides = array<i32>} : memref<18x32x128xf32, #tpu.memory_space<vmem>>, vector<16x8x128xf32>,
    %cst_8 = arith.constant 0.000000e+00 : f32
    %6 = vector.broadcast %cst_8 : f32 to vector<16x8x128xf32>
    %c1_9 = arith.constant 1 : index
    %c24 = arith.constant 24 : index
    %c0_10 = arith.constant 0 : index
    %7 = vector.load %arg13[%c1_9, %c24, %c0_10] : memref<18x32x128xf32, #tpu.memory_space<vmem>>, vector<16x8x128xf32>
    tpu.vector_store %arg13[%c1_9, %c24, %c0_10], %6 {strides = array<i32>} : memref<18x32x128xf32, #tpu.memory_space<vmem>>, vector<16x8x128xf32>,
    %c0_11 = arith.constant 0 : index
    %c0_12 = arith.constant 0 : index
    %c0_13 = arith.constant 0 : index
    %c0_14 = arith.constant 0 : index
    %8 = vector.load %arg1[%c0_11, %c0_12, %c0_13, %c0_14] : memref<1x16x16x128xf32, #tpu.memory_space<vmem>>, vector<1x16x16x128xf32>
    %9 = vector.shape_cast %8 : vector<1x16x16x128xf32> to vector<16x16x128xf32>
    %c1_15 = arith.constant 1 : index
    %c8 = arith.constant 8 : index
    %c0_16 = arith.constant 0 : index
    %10 = vector.load %arg13[%c1_15, %c8, %c0_16] : memref<18x32x128xf32, #tpu.memory_space<vmem>>, vector<16x16x128xf32>
    tpu.vector_store %arg13[%c1_15, %c8, %c0_16], %9 {strides = array<i32>} : memref<18x32x128xf32, #tpu.memory_space<vmem>>, vector<16x16x128xf32>,
    %c0_17 = arith.constant 0 : index
    %c0_18 = arith.constant 0 : index
    %11 = vector.load %arg2[%c0_17, %c0_18] : memref<9x128xf32, #tpu.memory_space<vmem>>, vector<9x128xf32>
    %c0_19 = arith.constant 0 : index
    %c0_20 = arith.constant 0 : index
    %12 = vector.load %arg3[%c0_19, %c0_20] : memref<1x128xf32, #tpu.memory_space<vmem>>, vector<1x128xf32>
    %13 = vector.shape_cast %12 : vector<1x128xf32> to vector<128xf32>
    %14 = vector.extract_strided_slice %11 {offsets = [4, 0], sizes = [1, 128], strides = [1, 1]} : vector<9x128xf32> to vector<1x128xf32>
    %15 = vector.shape_cast %14 : vector<1x128xf32> to vector<128xf32>
    %16 = vector.shape_cast %15 : vector<128xf32> to vector<1x1x128xf32>
    %17 = vector.broadcast %16 : vector<1x1x128xf32> to vector<16x16x128xf32>
    %18 = arith.mulf %9, %17 : vector<16x16x128xf32>
    %c0_21 = arith.constant 0 : index
    %c7 = arith.constant 7 : index
    %c0_22 = arith.constant 0 : index
    %19 = vector.load %arg13[%c0_21, %c7, %c0_22] : memref<18x32x128xf32, #tpu.memory_space<vmem>>, vector<16x16x128xf32>
    %20 = vector.extract_strided_slice %11 {offsets = [0, 0], sizes = [1, 128], strides = [1, 1]} : vector<9x128xf32> to vector<1x128xf32>
    %21 = vector.shape_cast %20 : vector<1x128xf32> to vector<128xf32>
    %22 = vector.shape_cast %21 : vector<128xf32> to vector<1x1x128xf32>
    %23 = vector.broadcast %22 : vector<1x1x128xf32> to vector<16x16x128xf32>
    %24 = arith.mulf %19, %23 : vector<16x16x128xf32>
    %25 = arith.addf %18, %24 : vector<16x16x128xf32>
    %c0_23 = arith.constant 0 : index
    %c8_24 = arith.constant 8 : index
    %c0_25 = arith.constant 0 : index
    %26 = vector.load %arg13[%c0_23, %c8_24, %c0_25] : memref<18x32x128xf32, #tpu.memory_space<vmem>>, vector<16x16x128xf32>
    %27 = vector.extract_strided_slice %11 {offsets = [1, 0], sizes = [1, 128], strides = [1, 1]} : vector<9x128xf32> to vector<1x128xf32>
    %28 = vector.shape_cast %27 : vector<1x128xf32> to vector<128xf32>
    %29 = vector.shape_cast %28 : vector<128xf32> to vector<1x1x128xf32>
    %30 = vector.broadcast %29 : vector<1x1x128xf32> to vector<16x16x128xf32>
    %31 = arith.mulf %26, %30 : vector<16x16x128xf32>
    %32 = arith.addf %25, %31 : vector<16x16x128xf32>
    %c0_26 = arith.constant 0 : index
    %c9 = arith.constant 9 : index
    %c0_27 = arith.constant 0 : index
    %33 = vector.load %arg13[%c0_26, %c9, %c0_27] : memref<18x32x128xf32, #tpu.memory_space<vmem>>, vector<16x16x128xf32>
    %34 = vector.extract_strided_slice %11 {offsets = [2, 0], sizes = [1, 128], strides = [1, 1]} : vector<9x128xf32> to vector<1x128xf32>
    %35 = vector.shape_cast %34 : vector<1x128xf32> to vector<128xf32>
    %36 = vector.shape_cast %35 : vector<128xf32> to vector<1x1x128xf32>
    %37 = vector.broadcast %36 : vector<1x1x128xf32> to vector<16x16x128xf32>
    %38 = arith.mulf %33, %37 : vector<16x16x128xf32>
    %39 = arith.addf %32, %38 : vector<16x16x128xf32>
    %c1_28 = arith.constant 1 : index
    %c7_29 = arith.constant 7 : index
    %c0_30 = arith.constant 0 : index
    %40 = vector.load %arg13[%c1_28, %c7_29, %c0_30] : memref<18x32x128xf32, #tpu.memory_space<vmem>>, vector<16x16x128xf32>
    %41 = vector.extract_strided_slice %11 {offsets = [3, 0], sizes = [1, 128], strides = [1, 1]} : vector<9x128xf32> to vector<1x128xf32>
    %42 = vector.shape_cast %41 : vector<1x128xf32> to vector<128xf32>
    %43 = vector.shape_cast %42 : vector<128xf32> to vector<1x1x128xf32>
    %44 = vector.broadcast %43 : vector<1x1x128xf32> to vector<16x16x128xf32>
    %45 = arith.mulf %40, %44 : vector<16x16x128xf32>
    %46 = arith.addf %39, %45 : vector<16x16x128xf32>
    %c1_31 = arith.constant 1 : index
    %c9_32 = arith.constant 9 : index
    %c0_33 = arith.constant 0 : index
    %47 = vector.load %arg13[%c1_31, %c9_32, %c0_33] : memref<18x32x128xf32, #tpu.memory_space<vmem>>, vector<16x16x128xf32>
    %48 = vector.extract_strided_slice %11 {offsets = [5, 0], sizes = [1, 128], strides = [1, 1]} : vector<9x128xf32> to vector<1x128xf32>
    %49 = vector.shape_cast %48 : vector<1x128xf32> to vector<128xf32>
    %50 = vector.shape_cast %49 : vector<128xf32> to vector<1x1x128xf32>
    %51 = vector.broadcast %50 : vector<1x1x128xf32> to vector<16x16x128xf32>
    %52 = arith.mulf %47, %51 : vector<16x16x128xf32>
    %53 = arith.addf %46, %52 : vector<16x16x128xf32>
    %c2 = arith.constant 2 : index
    %c7_34 = arith.constant 7 : index
    %c0_35 = arith.constant 0 : index
    %54 = vector.load %arg13[%c2, %c7_34, %c0_35] : memref<18x32x128xf32, #tpu.memory_space<vmem>>, vector<16x16x128xf32>
    %55 = vector.extract_strided_slice %11 {offsets = [6, 0], sizes = [1, 128], strides = [1, 1]} : vector<9x128xf32> to vector<1x128xf32>
    %56 = vector.shape_cast %55 : vector<1x128xf32> to vector<128xf32>
    %57 = vector.shape_cast %56 : vector<128xf32> to vector<1x1x128xf32>
    %58 = vector.broadcast %57 : vector<1x1x128xf32> to vector<16x16x128xf32>
    %59 = arith.mulf %54, %58 : vector<16x16x128xf32>
    %60 = arith.addf %53, %59 : vector<16x16x128xf32>
    %c2_36 = arith.constant 2 : index
    %c8_37 = arith.constant 8 : index
    %c0_38 = arith.constant 0 : index
    %61 = vector.load %arg13[%c2_36, %c8_37, %c0_38] : memref<18x32x128xf32, #tpu.memory_space<vmem>>, vector<16x16x128xf32>
    %62 = vector.extract_strided_slice %11 {offsets = [7, 0], sizes = [1, 128], strides = [1, 1]} : vector<9x128xf32> to vector<1x128xf32>
    %63 = vector.shape_cast %62 : vector<1x128xf32> to vector<128xf32>
    %64 = vector.shape_cast %63 : vector<128xf32> to vector<1x1x128xf32>
    %65 = vector.broadcast %64 : vector<1x1x128xf32> to vector<16x16x128xf32>
    %66 = arith.mulf %61, %65 : vector<16x16x128xf32>
    %67 = arith.addf %60, %66 : vector<16x16x128xf32>
    %c2_39 = arith.constant 2 : index
    %c9_40 = arith.constant 9 : index
    %c0_41 = arith.constant 0 : index
    %68 = vector.load %arg13[%c2_39, %c9_40, %c0_41] : memref<18x32x128xf32, #tpu.memory_space<vmem>>, vector<16x16x128xf32>
    %69 = vector.extract_strided_slice %11 {offsets = [8, 0], sizes = [1, 128], strides = [1, 1]} : vector<9x128xf32> to vector<1x128xf32>
    %70 = vector.shape_cast %69 : vector<1x128xf32> to vector<128xf32>
    %71 = vector.shape_cast %70 : vector<128xf32> to vector<1x1x128xf32>
    %72 = vector.broadcast %71 : vector<1x1x128xf32> to vector<16x16x128xf32>
    %73 = arith.mulf %68, %72 : vector<16x16x128xf32>
    %74 = arith.addf %67, %73 : vector<16x16x128xf32>
    %75 = vector.shape_cast %13 : vector<128xf32> to vector<1x1x128xf32>
    %76 = vector.broadcast %75 : vector<1x1x128xf32> to vector<16x16x128xf32>
    %77 = arith.addf %74, %76 : vector<16x16x128xf32>
    %78 = arith.negf %77 : vector<16x16x128xf32>
    %79 = math.exp %78 : vector<16x16x128xf32>
    %cst_42 = arith.constant 1.000000e+00 : f32
    %80 = vector.broadcast %cst_42 : f32 to vector<16x16x128xf32>
    %81 = arith.addf %80, %79 : vector<16x16x128xf32>
    %82 = arith.divf %80, %81 : vector<16x16x128xf32>
    %83 = arith.mulf %77, %82 : vector<16x16x128xf32>
    %84 = arith.truncf %83 : vector<16x16x128xf32> to vector<16x16x128xbf16>
    %85 = vector.shape_cast %84 : vector<16x16x128xbf16> to vector<256x128xbf16>
    %c0_43 = arith.constant 0 : index
    %c0_44 = arith.constant 0 : index
    %86 = vector.load %arg4[%c0_43, %c0_44] : memref<128x128xbf16, #tpu.memory_space<vmem>>, vector<128x128xbf16>
    %cst_45 = arith.constant dense<0.000000e+00> : vector<256x128xf32>
    %87 = tpu.matmul %85, %86, %cst_45 {dimension_numbers = #tpu.dot_dimension_numbers<[1], [0], [0], [1], [0, 0, 1, 1], [], []>} : vector<256x128xbf16>, vector<128x128xbf16>, vector<256x128xf32> -> vector<256x128xf32>
    %c0_46 = arith.constant 0 : index
    %c0_47 = arith.constant 0 : index
    %88 = vector.load %arg5[%c0_46, %c0_47] : memref<1x128xf32, #tpu.memory_space<vmem>>, vector<1x128xf32>
    %89 = vector.shape_cast %88 : vector<1x128xf32> to vector<128xf32>
    %90 = vector.shape_cast %89 : vector<128xf32> to vector<1x128xf32>
    %91 = vector.broadcast %90 : vector<1x128xf32> to vector<256x128xf32>
    %92 = arith.addf %87, %91 : vector<256x128xf32>
    %93 = arith.negf %92 : vector<256x128xf32>
    %94 = math.exp %93 : vector<256x128xf32>
    %cst_48 = arith.constant 1.000000e+00 : f32
    %95 = vector.broadcast %cst_48 : f32 to vector<256x128xf32>
    %96 = arith.addf %95, %94 : vector<256x128xf32>
    %97 = arith.divf %95, %96 : vector<256x128xf32>
    %98 = arith.mulf %92, %97 : vector<256x128xf32>
    %99 = vector.shape_cast %98 : vector<256x128xf32> to vector<16x16x128xf32>
    %c1_49 = arith.constant 1 : index
    %c8_50 = arith.constant 8 : index
    %c0_51 = arith.constant 0 : index
    %100 = vector.load %arg13[%c1_49, %c8_50, %c0_51] : memref<18x32x128xf32, #tpu.memory_space<vmem>>, vector<16x16x128xf32>
    tpu.vector_store %arg13[%c1_49, %c8_50, %c0_51], %99 {strides = array<i32>} : memref<18x32x128xf32, #tpu.memory_space<vmem>>, vector<16x16x128xf32>,
    %c0_52 = arith.constant 0 : index
    %c0_53 = arith.constant 0 : index
    %101 = vector.load %arg6[%c0_52, %c0_53] : memref<9x128xf32, #tpu.memory_space<vmem>>, vector<9x128xf32>
    %c0_54 = arith.constant 0 : index
    %c0_55 = arith.constant 0 : index
    %102 = vector.load %arg7[%c0_54, %c0_55] : memref<1x128xf32, #tpu.memory_space<vmem>>, vector<1x128xf32>
    %103 = vector.shape_cast %102 : vector<1x128xf32> to vector<128xf32>
    %104 = vector.extract_strided_slice %101 {offsets = [4, 0], sizes = [1, 128], strides = [1, 1]} : vector<9x128xf32> to vector<1x128xf32>
    %105 = vector.shape_cast %104 : vector<1x128xf32> to vector<128xf32>
    %106 = vector.shape_cast %105 : vector<128xf32> to vector<1x1x128xf32>
    %107 = vector.broadcast %106 : vector<1x1x128xf32> to vector<16x16x128xf32>
    %108 = arith.mulf %99, %107 : vector<16x16x128xf32>
    %c0_56 = arith.constant 0 : index
    %c7_57 = arith.constant 7 : index
    %c0_58 = arith.constant 0 : index
    %109 = vector.load %arg13[%c0_56, %c7_57, %c0_58] : memref<18x32x128xf32, #tpu.memory_space<vmem>>, vector<16x16x128xf32>
    %110 = vector.extract_strided_slice %101 {offsets = [0, 0], sizes = [1, 128], strides = [1, 1]} : vector<9x128xf32> to vector<1x128xf32>
    %111 = vector.shape_cast %110 : vector<1x128xf32> to vector<128xf32>
    %112 = vector.shape_cast %111 : vector<128xf32> to vector<1x1x128xf32>
    %113 = vector.broadcast %112 : vector<1x1x128xf32> to vector<16x16x128xf32>
    %114 = arith.mulf %109, %113 : vector<16x16x128xf32>
    %115 = arith.addf %108, %114 : vector<16x16x128xf32>
    %c0_59 = arith.constant 0 : index
    %c8_60 = arith.constant 8 : index
    %c0_61 = arith.constant 0 : index
    %116 = vector.load %arg13[%c0_59, %c8_60, %c0_61] : memref<18x32x128xf32, #tpu.memory_space<vmem>>, vector<16x16x128xf32>
    %117 = vector.extract_strided_slice %101 {offsets = [1, 0], sizes = [1, 128], strides = [1, 1]} : vector<9x128xf32> to vector<1x128xf32>
    %118 = vector.shape_cast %117 : vector<1x128xf32> to vector<128xf32>
    %119 = vector.shape_cast %118 : vector<128xf32> to vector<1x1x128xf32>
    %120 = vector.broadcast %119 : vector<1x1x128xf32> to vector<16x16x128xf32>
    %121 = arith.mulf %116, %120 : vector<16x16x128xf32>
    %122 = arith.addf %115, %121 : vector<16x16x128xf32>
    %c0_62 = arith.constant 0 : index
    %c9_63 = arith.constant 9 : index
    %c0_64 = arith.constant 0 : index
    %123 = vector.load %arg13[%c0_62, %c9_63, %c0_64] : memref<18x32x128xf32, #tpu.memory_space<vmem>>, vector<16x16x128xf32>
    %124 = vector.extract_strided_slice %101 {offsets = [2, 0], sizes = [1, 128], strides = [1, 1]} : vector<9x128xf32> to vector<1x128xf32>
    %125 = vector.shape_cast %124 : vector<1x128xf32> to vector<128xf32>
    %126 = vector.shape_cast %125 : vector<128xf32> to vector<1x1x128xf32>
    %127 = vector.broadcast %126 : vector<1x1x128xf32> to vector<16x16x128xf32>
    %128 = arith.mulf %123, %127 : vector<16x16x128xf32>
    %129 = arith.addf %122, %128 : vector<16x16x128xf32>
    %c1_65 = arith.constant 1 : index
    %c7_66 = arith.constant 7 : index
    %c0_67 = arith.constant 0 : index
    %130 = vector.load %arg13[%c1_65, %c7_66, %c0_67] : memref<18x32x128xf32, #tpu.memory_space<vmem>>, vector<16x16x128xf32>
    %131 = vector.extract_strided_slice %101 {offsets = [3, 0], sizes = [1, 128], strides = [1, 1]} : vector<9x128xf32> to vector<1x128xf32>
    %132 = vector.shape_cast %131 : vector<1x128xf32> to vector<128xf32>
    %133 = vector.shape_cast %132 : vector<128xf32> to vector<1x1x128xf32>
    %134 = vector.broadcast %133 : vector<1x1x128xf32> to vector<16x16x128xf32>
    %135 = arith.mulf %130, %134 : vector<16x16x128xf32>
    %136 = arith.addf %129, %135 : vector<16x16x128xf32>
    %c1_68 = arith.constant 1 : index
    %c9_69 = arith.constant 9 : index
    %c0_70 = arith.constant 0 : index
    %137 = vector.load %arg13[%c1_68, %c9_69, %c0_70] : memref<18x32x128xf32, #tpu.memory_space<vmem>>, vector<16x16x128xf32>
    %138 = vector.extract_strided_slice %101 {offsets = [5, 0], sizes = [1, 128], strides = [1, 1]} : vector<9x128xf32> to vector<1x128xf32>
    %139 = vector.shape_cast %138 : vector<1x128xf32> to vector<128xf32>
    %140 = vector.shape_cast %139 : vector<128xf32> to vector<1x1x128xf32>
    %141 = vector.broadcast %140 : vector<1x1x128xf32> to vector<16x16x128xf32>
    %142 = arith.mulf %137, %141 : vector<16x16x128xf32>
    %143 = arith.addf %136, %142 : vector<16x16x128xf32>
    %c2_71 = arith.constant 2 : index
    %c7_72 = arith.constant 7 : index
    %c0_73 = arith.constant 0 : index
    %144 = vector.load %arg13[%c2_71, %c7_72, %c0_73] : memref<18x32x128xf32, #tpu.memory_space<vmem>>, vector<16x16x128xf32>
    %145 = vector.extract_strided_slice %101 {offsets = [6, 0], sizes = [1, 128], strides = [1, 1]} : vector<9x128xf32> to vector<1x128xf32>
    %146 = vector.shape_cast %145 : vector<1x128xf32> to vector<128xf32>
    %147 = vector.shape_cast %146 : vector<128xf32> to vector<1x1x128xf32>
    %148 = vector.broadcast %147 : vector<1x1x128xf32> to vector<16x16x128xf32>
    %149 = arith.mulf %144, %148 : vector<16x16x128xf32>
    %150 = arith.addf %143, %149 : vector<16x16x128xf32>
    %c2_74 = arith.constant 2 : index
    %c8_75 = arith.constant 8 : index
    %c0_76 = arith.constant 0 : index
    %151 = vector.load %arg13[%c2_74, %c8_75, %c0_76] : memref<18x32x128xf32, #tpu.memory_space<vmem>>, vector<16x16x128xf32>
    %152 = vector.extract_strided_slice %101 {offsets = [7, 0], sizes = [1, 128], strides = [1, 1]} : vector<9x128xf32> to vector<1x128xf32>
    %153 = vector.shape_cast %152 : vector<1x128xf32> to vector<128xf32>
    %154 = vector.shape_cast %153 : vector<128xf32> to vector<1x1x128xf32>
    %155 = vector.broadcast %154 : vector<1x1x128xf32> to vector<16x16x128xf32>
    %156 = arith.mulf %151, %155 : vector<16x16x128xf32>
    %157 = arith.addf %150, %156 : vector<16x16x128xf32>
    %c2_77 = arith.constant 2 : index
    %c9_78 = arith.constant 9 : index
    %c0_79 = arith.constant 0 : index
    %158 = vector.load %arg13[%c2_77, %c9_78, %c0_79] : memref<18x32x128xf32, #tpu.memory_space<vmem>>, vector<16x16x128xf32>
    %159 = vector.extract_strided_slice %101 {offsets = [8, 0], sizes = [1, 128], strides = [1, 1]} : vector<9x128xf32> to vector<1x128xf32>
    %160 = vector.shape_cast %159 : vector<1x128xf32> to vector<128xf32>
    %161 = vector.shape_cast %160 : vector<128xf32> to vector<1x1x128xf32>
    %162 = vector.broadcast %161 : vector<1x1x128xf32> to vector<16x16x128xf32>
    %163 = arith.mulf %158, %162 : vector<16x16x128xf32>
    %164 = arith.addf %157, %163 : vector<16x16x128xf32>
    %165 = vector.shape_cast %103 : vector<128xf32> to vector<1x1x128xf32>
    %166 = vector.broadcast %165 : vector<1x1x128xf32> to vector<16x16x128xf32>
    %167 = arith.addf %164, %166 : vector<16x16x128xf32>
    %168 = arith.negf %167 : vector<16x16x128xf32>
    %169 = math.exp %168 : vector<16x16x128xf32>
    %cst_80 = arith.constant 1.000000e+00 : f32
    %170 = vector.broadcast %cst_80 : f32 to vector<16x16x128xf32>
    %171 = arith.addf %170, %169 : vector<16x16x128xf32>
    %172 = arith.divf %170, %171 : vector<16x16x128xf32>
    %173 = arith.mulf %167, %172 : vector<16x16x128xf32>
    %174 = arith.truncf %173 : vector<16x16x128xf32> to vector<16x16x128xbf16>
    %175 = vector.shape_cast %174 : vector<16x16x128xbf16> to vector<256x128xbf16>
    %c0_81 = arith.constant 0 : index
    %c0_82 = arith.constant 0 : index
    %176 = vector.load %arg8[%c0_81, %c0_82] : memref<128x128xbf16, #tpu.memory_space<vmem>>, vector<128x128xbf16>
    %cst_83 = arith.constant dense<0.000000e+00> : vector<256x128xf32>
    %177 = tpu.matmul %175, %176, %cst_83 {dimension_numbers = #tpu.dot_dimension_numbers<[1], [0], [0], [1], [0, 0, 1, 1], [], []>} : vector<256x128xbf16>, vector<128x128xbf16>, vector<256x128xf32> -> vector<256x128xf32>
    %c0_84 = arith.constant 0 : index
    %c0_85 = arith.constant 0 : index
    %178 = vector.load %arg9[%c0_84, %c0_85] : memref<1x128xf32, #tpu.memory_space<vmem>>, vector<1x128xf32>
    %179 = vector.shape_cast %178 : vector<1x128xf32> to vector<128xf32>
    %180 = vector.shape_cast %179 : vector<128xf32> to vector<1x128xf32>
    %181 = vector.broadcast %180 : vector<1x128xf32> to vector<256x128xf32>
    %182 = arith.addf %177, %181 : vector<256x128xf32>
    %183 = arith.negf %182 : vector<256x128xf32>
    %184 = math.exp %183 : vector<256x128xf32>
    %cst_86 = arith.constant 1.000000e+00 : f32
    %185 = vector.broadcast %cst_86 : f32 to vector<256x128xf32>
    %186 = arith.addf %185, %184 : vector<256x128xf32>
    %187 = arith.divf %185, %186 : vector<256x128xf32>
    %188 = arith.mulf %182, %187 : vector<256x128xf32>
    %189 = vector.shape_cast %188 : vector<256x128xf32> to vector<16x16x128xf32>
    %c1_87 = arith.constant 1 : index
    %c8_88 = arith.constant 8 : index
    %c0_89 = arith.constant 0 : index
    %190 = vector.load %arg13[%c1_87, %c8_88, %c0_89] : memref<18x32x128xf32, #tpu.memory_space<vmem>>, vector<16x16x128xf32>
    tpu.vector_store %arg13[%c1_87, %c8_88, %c0_89], %189 {strides = array<i32>} : memref<18x32x128xf32, #tpu.memory_space<vmem>>, vector<16x16x128xf32>,
    %c0_90 = arith.constant 0 : index
    %c0_91 = arith.constant 0 : index
    %191 = vector.load %arg10[%c0_90, %c0_91] : memref<9x128xf32, #tpu.memory_space<vmem>>, vector<9x128xf32>
    %c0_92 = arith.constant 0 : index
    %c0_93 = arith.constant 0 : index
    %192 = vector.load %arg11[%c0_92, %c0_93] : memref<1x128xf32, #tpu.memory_space<vmem>>, vector<1x128xf32>
    %193 = vector.shape_cast %192 : vector<1x128xf32> to vector<128xf32>
    %194 = vector.extract_strided_slice %191 {offsets = [4, 0], sizes = [1, 128], strides = [1, 1]} : vector<9x128xf32> to vector<1x128xf32>
    %195 = vector.shape_cast %194 : vector<1x128xf32> to vector<128xf32>
    %196 = vector.shape_cast %195 : vector<128xf32> to vector<1x1x128xf32>
    %197 = vector.broadcast %196 : vector<1x1x128xf32> to vector<16x16x128xf32>
    %198 = arith.mulf %189, %197 : vector<16x16x128xf32>
    %c0_94 = arith.constant 0 : index
    %c7_95 = arith.constant 7 : index
    %c0_96 = arith.constant 0 : index
    %199 = vector.load %arg13[%c0_94, %c7_95, %c0_96] : memref<18x32x128xf32, #tpu.memory_space<vmem>>, vector<16x16x128xf32>
    %200 = vector.extract_strided_slice %191 {offsets = [0, 0], sizes = [1, 128], strides = [1, 1]} : vector<9x128xf32> to vector<1x128xf32>
    %201 = vector.shape_cast %200 : vector<1x128xf32> to vector<128xf32>
    %202 = vector.shape_cast %201 : vector<128xf32> to vector<1x1x128xf32>
    %203 = vector.broadcast %202 : vector<1x1x128xf32> to vector<16x16x128xf32>
    %204 = arith.mulf %199, %203 : vector<16x16x128xf32>
    %205 = arith.addf %198, %204 : vector<16x16x128xf32>
    %c0_97 = arith.constant 0 : index
    %c8_98 = arith.constant 8 : index
    %c0_99 = arith.constant 0 : index
    %206 = vector.load %arg13[%c0_97, %c8_98, %c0_99] : memref<18x32x128xf32, #tpu.memory_space<vmem>>, vector<16x16x128xf32>
    %207 = vector.extract_strided_slice %191 {offsets = [1, 0], sizes = [1, 128], strides = [1, 1]} : vector<9x128xf32> to vector<1x128xf32>
    %208 = vector.shape_cast %207 : vector<1x128xf32> to vector<128xf32>
    %209 = vector.shape_cast %208 : vector<128xf32> to vector<1x1x128xf32>
    %210 = vector.broadcast %209 : vector<1x1x128xf32> to vector<16x16x128xf32>
    %211 = arith.mulf %206, %210 : vector<16x16x128xf32>
    %212 = arith.addf %205, %211 : vector<16x16x128xf32>
    %c0_100 = arith.constant 0 : index
    %c9_101 = arith.constant 9 : index
    %c0_102 = arith.constant 0 : index
    %213 = vector.load %arg13[%c0_100, %c9_101, %c0_102] : memref<18x32x128xf32, #tpu.memory_space<vmem>>, vector<16x16x128xf32>
    %214 = vector.extract_strided_slice %191 {offsets = [2, 0], sizes = [1, 128], strides = [1, 1]} : vector<9x128xf32> to vector<1x128xf32>
    %215 = vector.shape_cast %214 : vector<1x128xf32> to vector<128xf32>
    %216 = vector.shape_cast %215 : vector<128xf32> to vector<1x1x128xf32>
    %217 = vector.broadcast %216 : vector<1x1x128xf32> to vector<16x16x128xf32>
    %218 = arith.mulf %213, %217 : vector<16x16x128xf32>
    %219 = arith.addf %212, %218 : vector<16x16x128xf32>
    %c1_103 = arith.constant 1 : index
    %c7_104 = arith.constant 7 : index
    %c0_105 = arith.constant 0 : index
    %220 = vector.load %arg13[%c1_103, %c7_104, %c0_105] : memref<18x32x128xf32, #tpu.memory_space<vmem>>, vector<16x16x128xf32>
    %221 = vector.extract_strided_slice %191 {offsets = [3, 0], sizes = [1, 128], strides = [1, 1]} : vector<9x128xf32> to vector<1x128xf32>
    %222 = vector.shape_cast %221 : vector<1x128xf32> to vector<128xf32>
    %223 = vector.shape_cast %222 : vector<128xf32> to vector<1x1x128xf32>
    %224 = vector.broadcast %223 : vector<1x1x128xf32> to vector<16x16x128xf32>
    %225 = arith.mulf %220, %224 : vector<16x16x128xf32>
    %226 = arith.addf %219, %225 : vector<16x16x128xf32>
    %c1_106 = arith.constant 1 : index
    %c9_107 = arith.constant 9 : index
    %c0_108 = arith.constant 0 : index
    %227 = vector.load %arg13[%c1_106, %c9_107, %c0_108] : memref<18x32x128xf32, #tpu.memory_space<vmem>>, vector<16x16x128xf32>
    %228 = vector.extract_strided_slice %191 {offsets = [5, 0], sizes = [1, 128], strides = [1, 1]} : vector<9x128xf32> to vector<1x128xf32>
    %229 = vector.shape_cast %228 : vector<1x128xf32> to vector<128xf32>
    %230 = vector.shape_cast %229 : vector<128xf32> to vector<1x1x128xf32>
    %231 = vector.broadcast %230 : vector<1x1x128xf32> to vector<16x16x128xf32>
    %232 = arith.mulf %227, %231 : vector<16x16x128xf32>
    %233 = arith.addf %226, %232 : vector<16x16x128xf32>
    %c2_109 = arith.constant 2 : index
    %c7_110 = arith.constant 7 : index
    %c0_111 = arith.constant 0 : index
    %234 = vector.load %arg13[%c2_109, %c7_110, %c0_111] : memref<18x32x128xf32, #tpu.memory_space<vmem>>, vector<16x16x128xf32>
    %235 = vector.extract_strided_slice %191 {offsets = [6, 0], sizes = [1, 128], strides = [1, 1]} : vector<9x128xf32> to vector<1x128xf32>
    %236 = vector.shape_cast %235 : vector<1x128xf32> to vector<128xf32>
    %237 = vector.shape_cast %236 : vector<128xf32> to vector<1x1x128xf32>
    %238 = vector.broadcast %237 : vector<1x1x128xf32> to vector<16x16x128xf32>
    %239 = arith.mulf %234, %238 : vector<16x16x128xf32>
    %240 = arith.addf %233, %239 : vector<16x16x128xf32>
    %c2_112 = arith.constant 2 : index
    %c8_113 = arith.constant 8 : index
    %c0_114 = arith.constant 0 : index
    %241 = vector.load %arg13[%c2_112, %c8_113, %c0_114] : memref<18x32x128xf32, #tpu.memory_space<vmem>>, vector<16x16x128xf32>
    %242 = vector.extract_strided_slice %191 {offsets = [7, 0], sizes = [1, 128], strides = [1, 1]} : vector<9x128xf32> to vector<1x128xf32>
    %243 = vector.shape_cast %242 : vector<1x128xf32> to vector<128xf32>
    %244 = vector.shape_cast %243 : vector<128xf32> to vector<1x1x128xf32>
    %245 = vector.broadcast %244 : vector<1x1x128xf32> to vector<16x16x128xf32>
    %246 = arith.mulf %241, %245 : vector<16x16x128xf32>
    %247 = arith.addf %240, %246 : vector<16x16x128xf32>
    %c2_115 = arith.constant 2 : index
    %c9_116 = arith.constant 9 : index
    %c0_117 = arith.constant 0 : index
    %248 = vector.load %arg13[%c2_115, %c9_116, %c0_117] : memref<18x32x128xf32, #tpu.memory_space<vmem>>, vector<16x16x128xf32>
    %249 = vector.extract_strided_slice %191 {offsets = [8, 0], sizes = [1, 128], strides = [1, 1]} : vector<9x128xf32> to vector<1x128xf32>
    %250 = vector.shape_cast %249 : vector<1x128xf32> to vector<128xf32>
    %251 = vector.shape_cast %250 : vector<128xf32> to vector<1x1x128xf32>
    %252 = vector.broadcast %251 : vector<1x1x128xf32> to vector<16x16x128xf32>
    %253 = arith.mulf %248, %252 : vector<16x16x128xf32>
    %254 = arith.addf %247, %253 : vector<16x16x128xf32>
    %255 = vector.shape_cast %193 : vector<128xf32> to vector<1x1x128xf32>
    %256 = vector.broadcast %255 : vector<1x1x128xf32> to vector<16x16x128xf32>
    %257 = arith.addf %254, %256 : vector<16x16x128xf32>
    %258 = arith.negf %257 : vector<16x16x128xf32>
    %259 = math.exp %258 : vector<16x16x128xf32>
    %cst_118 = arith.constant 1.000000e+00 : f32
    %260 = vector.broadcast %cst_118 : f32 to vector<16x16x128xf32>
    %261 = arith.addf %260, %259 : vector<16x16x128xf32>
    %262 = arith.divf %260, %261 : vector<16x16x128xf32>
    %263 = arith.mulf %257, %262 : vector<16x16x128xf32>
    %264 = arith.addf %9, %263 : vector<16x16x128xf32>
    %c0_119 = arith.constant 0 : index
    %c0_120 = arith.constant 0 : index
    %c0_121 = arith.constant 0 : index
    %c0_122 = arith.constant 0 : index
    %265 = vector.load %arg12[%c0_119, %c0_120, %c0_121, %c0_122] : memref<1x16x16x128xf32, #tpu.memory_space<vmem>>, vector<1x16x16x128xf32>
    %266 = vector.shape_cast %265 : vector<1x16x16x128xf32> to vector<16x16x128xf32>
    %267 = vector.shape_cast %264 : vector<16x16x128xf32> to vector<1x16x16x128xf32>
    tpu.vector_store %arg12[%c0_119, %c0_120, %c0_121, %c0_122], %267 {strides = array<i32>} : memref<1x16x16x128xf32, #tpu.memory_space<vmem>>, vector<1x16x16x128xf32>,
    return
  }
  func.func @transform_0(%arg0: i32) -> (i32, i32, i32, i32) {
    %c0_i32 = arith.constant 0 : i32
    %c0_i32_0 = arith.constant 0 : i32
    %c0_i32_1 = arith.constant 0 : i32
    %c0_i32_2 = arith.constant 0 : i32
    return %arg0, %c0_i32, %c0_i32_0, %c0_i32_1 : i32, i32, i32, i32
  }
  func.func @transform_1(%arg0: i32) -> (i32, i32) {
    %c0_i32 = arith.constant 0 : i32
    %c0_i32_0 = arith.constant 0 : i32
    %c0_i32_1 = arith.constant 0 : i32
    return %c0_i32, %c0_i32_0 : i32, i32
  }
  func.func @transform_2(%arg0: i32) -> (i32, i32) {
    %c0_i32 = arith.constant 0 : i32
    %c0_i32_0 = arith.constant 0 : i32
    %c0_i32_1 = arith.constant 0 : i32
    return %c0_i32, %c0_i32_0 : i32, i32
  }
  func.func @transform_3(%arg0: i32) -> (i32, i32) {
    %c0_i32 = arith.constant 0 : i32
    %c0_i32_0 = arith.constant 0 : i32
    %c0_i32_1 = arith.constant 0 : i32
    return %c0_i32, %c0_i32_0 : i32, i32
  }
  func.func @transform_4(%arg0: i32) -> (i32, i32) {
    %c0_i32 = arith.constant 0 : i32
    %c0_i32_0 = arith.constant 0 : i32
    %c0_i32_1 = arith.constant 0 : i32
    return %c0_i32, %c0_i32_0 : i32, i32
  }
  func.func @transform_5(%arg0: i32) -> (i32, i32) {
    %c0_i32 = arith.constant 0 : i32
    %c0_i32_0 = arith.constant 0 : i32
    %c0_i32_1 = arith.constant 0 : i32
    return %c0_i32, %c0_i32_0 : i32, i32
  }
  func.func @transform_6(%arg0: i32) -> (i32, i32) {
    %c0_i32 = arith.constant 0 : i32
    %c0_i32_0 = arith.constant 0 : i32
    %c0_i32_1 = arith.constant 0 : i32
    return %c0_i32, %c0_i32_0 : i32, i32
  }
  func.func @transform_7(%arg0: i32) -> (i32, i32) {
    %c0_i32 = arith.constant 0 : i32
    %c0_i32_0 = arith.constant 0 : i32
    %c0_i32_1 = arith.constant 0 : i32
    return %c0_i32, %c0_i32_0 : i32, i32
  }
  func.func @transform_8(%arg0: i32) -> (i32, i32) {
    %c0_i32 = arith.constant 0 : i32
    %c0_i32_0 = arith.constant 0 : i32
    %c0_i32_1 = arith.constant 0 : i32
    return %c0_i32, %c0_i32_0 : i32, i32
  }
  func.func @transform_9(%arg0: i32) -> (i32, i32) {
    %c0_i32 = arith.constant 0 : i32
    %c0_i32_0 = arith.constant 0 : i32
    %c0_i32_1 = arith.constant 0 : i32
    return %c0_i32, %c0_i32_0 : i32, i32
  }
  func.func @transform_10(%arg0: i32) -> (i32, i32) {
    %c0_i32 = arith.constant 0 : i32
    %c0_i32_0 = arith.constant 0 : i32
    %c0_i32_1 = arith.constant 0 : i32
    return %c0_i32, %c0_i32_0 : i32, i32
  }
  func.func @transform_11(%arg0: i32) -> (i32, i32, i32, i32) {
    %c0_i32 = arith.constant 0 : i32
    %c0_i32_0 = arith.constant 0 : i32
    %c0_i32_1 = arith.constant 0 : i32
    %c0_i32_2 = arith.constant 0 : i32
    return %arg0, %c0_i32, %c0_i32_0, %c0_i32_1 : i32, i32, i32, i32
  }
}

</mosaic_0001>

<llo_original>
// kernel: tpu_custom_call.1
$region0: #{tpu_custom_call.1}
  #allocation0 [shape = 'u32[]', space=smem, size = 0x4, offset = 0x4, fixed_abs, tag = 'smem constant byte address 0x4 - core index']
  #allocation1 [shape = 'u32[144,128]{1,0:T(1,128)}', space=vmem, size = 0x12000, scoped, tag = 'internal scratch']
  #allocation2 [shape = 'f32[18,32,128]{2,1,0:T(8,128)}', space=vmem, size = 0x48000, scoped, tag = 'scratch operand']
  %s0 = inlined_call_operand.hbm [shape: f32[2,16,16,128], index: 0, kind: input, shape index: {}]
  %s1 = inlined_call_operand.hbm [shape: f32[9,128], index: 1, kind: input, shape index: {}]
  %s2 = inlined_call_operand.hbm [shape: f32[1,128], index: 2, kind: input, shape index: {}]
  %s3 = inlined_call_operand.hbm [shape: bf16[128,128], index: 3, kind: input, shape index: {}]
  %s4 = inlined_call_operand.hbm [shape: f32[1,128], index: 4, kind: input, shape index: {}]
  %s5 = inlined_call_operand.hbm [shape: f32[9,128], index: 5, kind: input, shape index: {}]
  %s6 = inlined_call_operand.hbm [shape: f32[1,128], index: 6, kind: input, shape index: {}]
  %s7 = inlined_call_operand.hbm [shape: bf16[128,128], index: 7, kind: input, shape index: {}]
  %s8 = inlined_call_operand.hbm [shape: f32[1,128], index: 8, kind: input, shape index: {}]
  %s9 = inlined_call_operand.vmem [shape: f32[9,128], index: 9, kind: input, shape index: {}]
  %s10 = inlined_call_operand.vmem [shape: f32[1,128], index: 10, kind: input, shape index: {}]
  %s11 = inlined_call_operand.hbm [shape: f32[2,16,16,128], index: 11, kind: output, shape index: {}]
  %s12 = sld [smem:[#allocation0]]
  $region113: #{tpu_custom_call.1} parent=0
    _
  %s14 = ssub.s32 1, %s12
  %s15 = scalar_select 0, %s14, %s12
  $region1: #{tpu_custom_call.1} parent=0
    #allocation3 [shape = 'u8[262144]{0}', space=vmem, size = 0x40000, scoped, tag = 'input window, operand 0']
    #allocation4 [shape = 's32[2]{0}', space=sflag, size = 0x8, scoped, tag = 'scoped memory for tpu_custom_call.1']
    #allocation5 [shape = 's32[2]{0}', space=sflag, size = 0x8, scoped, tag = 'scoped memory for tpu_custom_call.1']
    #allocation6 [shape = 'u8[8192]{0}', space=vmem, size = 0x2000, scoped, tag = 'input window, operand 1, single buffered']
    #allocation7 [shape = 's32[1]{0}', space=sflag, size = 0x4, scoped, tag = 'scoped memory for tpu_custom_call.1']
    #allocation8 [shape = 'u8[512]{0}', space=vmem, size = 0x400, scoped, tag = 'input window, operand 2, single buffered']
    #allocation9 [shape = 'u8[32768]{0}', space=vmem, size = 0x8000, scoped, tag = 'input window, operand 3, single buffered']
    #allocation10 [shape = 's32[1]{0}', space=sflag, size = 0x4, scoped, tag = 'scoped memory for tpu_custom_call.1']
    #allocation11 [shape = 'u8[512]{0}', space=vmem, size = 0x400, scoped, tag = 'input window, operand 4, single buffered']
    #allocation12 [shape = 'u8[8192]{0}', space=vmem, size = 0x2000, scoped, tag = 'input window, operand 5, single buffered']
    #allocation13 [shape = 's32[1]{0}', space=sflag, size = 0x4, scoped, tag = 'scoped memory for tpu_custom_call.1']
    #allocation14 [shape = 'u8[512]{0}', space=vmem, size = 0x400, scoped, tag = 'input window, operand 6, single buffered']
    #allocation15 [shape = 'u8[32768]{0}', space=vmem, size = 0x8000, scoped, tag = 'input window, operand 7, single buffered']
    #allocation16 [shape = 's32[1]{0}', space=sflag, size = 0x4, scoped, tag = 'scoped memory for tpu_custom_call.1']
    #allocation17 [shape = 'u8[512]{0}', space=vmem, size = 0x400, scoped, tag = 'input window, operand 8, single buffered']
    #allocation18 [shape = 'u8[262144]{0}', space=vmem, size = 0x40000, scoped, tag = 'output window, operand 0']
    %16 = vsyncpa [#allocation4], 0
    %s17 = scalar_lea.sflag [#allocation4], 1
    %18 = vsyncpa %s17, 0
    %19 = vsyncpa [#allocation7], 0
    %20 = vsyncpa [#allocation10], 0
    %21 = vsyncpa [#allocation13], 0
    %22 = vsyncpa [#allocation16], 0
    %23 = vsyncpa [#allocation5], 0
    %s24 = scalar_lea.sflag [#allocation5], 1
    %25 = vsyncpa %s24, 0
    loop: start=0, step=1, limit=4
    $region2: #{tpu_custom_call.1} parent=1 // loop_pre_header
      _
    $region3: #{tpu_custom_call.1} parent=1 // loop_header
      %s27 = sphi 0, %s31
      %p28 = scmp.ge.s32.totalorder %s27, 4
      %s37 = sphi 0, %s39
      %s40 = sphi 0, %s37
      %s41 = sphi 0, %s40
      %s57 = sphi 0, %s41
      %s61 = sphi 0, %s61
      %s63 = sphi 0, %s61
      %s64 = sphi 0, %s63
      %s78 = sphi 0, %s64
      %s82 = sphi 0, %s82
      %s84 = sphi 0, %s82
      %s85 = sphi 0, %s84
      %s99 = sphi 0, %s85
      %s103 = sphi 0, %s103
      %s105 = sphi 0, %s103
      %s106 = sphi 0, %s105
      %s120 = sphi 0, %s106
      %s124 = sphi 0, %s124
      %s126 = sphi 0, %s124
      %s127 = sphi 0, %s126
      %s141 = sphi 0, %s127
      %s145 = sphi 0, %s145
      %s147 = sphi 0, %s145
      %s148 = sphi 0, %s147
      %s162 = sphi 0, %s148
      %s166 = sphi 0, %s166
      %s168 = sphi 0, %s166
      %s169 = sphi 0, %s168
      %s183 = sphi 0, %s169
      %s187 = sphi 0, %s187
      %s189 = sphi 0, %s187
      %s190 = sphi 0, %s189
      %s204 = sphi 0, %s190
      %s208 = sphi 0, %s208
      %s210 = sphi 0, %s208
      %s211 = sphi 0, %s210
      %s225 = sphi 0, %s211
      %s229 = sphi 0, %s229
      %s231 = sphi 0, %s229
      %s232 = sphi 0, %s231
      %s246 = sphi 0, %s232
      %s250 = sphi 0, %s250
      %s252 = sphi 0, %s250
      %s253 = sphi 0, %s252
      %s267 = sphi 0, %s253
      %s273 = sphi 0, %s275
      %s276 = sphi 0, %s273
      %s277 = sphi 0, %s276
      %s293 = sphi 0, %s277
    $region4: #{tpu_custom_call.1} parent=1 // loop_header_branch
      %30 = sbr.rel (%p28) target = $region8
    $region5: #{tpu_custom_call.1} parent=1 // loop_body
      %s32 = ssub.s32 %s27, 1
      %s33 = ssub.s32 %s27, 2
      %s34 = sadd.s32 %s27, 1
      %s35 = ssub.s32 %s27, %s34
      %p36 = scmp.eq.s32.totalorder %s35, 0
      %s38 = sadd.s32 %s37, 1
      %s39 = scalar_select %p36, %s37, %s38
      %p42 = pneg %p36
      %p43 = scmp.eq.s32.totalorder %s27, 1
      %p44 = por %p42, %p43
      %p45 = scmp.ne.s32.totalorder %s37, %s40
      %p46 = scmp.eq.s32.totalorder %s27, 0
      %p47 = por %p45, %p46
      %p48 = scmp.ne.s32.totalorder %s37, %s40
      %p49 = scmp.eq.s32.totalorder %s32, 1
      %p50 = por %p48, %p49
      %p51 = scmp.ne.s32.totalorder %s40, %s41
      %p52 = scmp.eq.s32.totalorder %s32, 0
      %p53 = por %p51, %p52
      %p54 = scmp.ne.s32.totalorder %s40, %s41
      %p55 = scmp.eq.s32.totalorder %s33, 1
      %p56 = por %p54, %p55
      %p58 = scmp.ne.s32.totalorder %s41, %s57
      %p59 = scmp.eq.s32.totalorder %s33, 0
      %p60 = por %p58, %p59
      %s62 = sadd.s32 %s61, 1
      %p65 = scmp.eq.s32.totalorder %s27, 1
      %p66 = scmp.ne.s32.totalorder %s61, %s63
      %p67 = scmp.eq.s32.totalorder %s27, 0
      %p68 = por %p66, %p67
      %p69 = scmp.ne.s32.totalorder %s61, %s63
      %p70 = scmp.eq.s32.totalorder %s32, 1
      %p71 = por %p69, %p70
      %p72 = scmp.ne.s32.totalorder %s63, %s64
      %p73 = scmp.eq.s32.totalorder %s32, 0
      %p74 = por %p72, %p73
      %p75 = scmp.ne.s32.totalorder %s63, %s64
      %p76 = scmp.eq.s32.totalorder %s33, 1
      %p77 = por %p75, %p76
      %p79 = scmp.ne.s32.totalorder %s64, %s78
      %p80 = scmp.eq.s32.totalorder %s33, 0
      %p81 = por %p79, %p80
      %s83 = sadd.s32 %s82, 1
      %p86 = scmp.eq.s32.totalorder %s27, 1
      %p87 = scmp.ne.s32.totalorder %s82, %s84
      %p88 = scmp.eq.s32.totalorder %s27, 0
      %p89 = por %p87, %p88
      %p90 = scmp.ne.s32.totalorder %s82, %s84
      %p91 = scmp.eq.s32.totalorder %s32, 1
      %p92 = por %p90, %p91
      %p93 = scmp.ne.s32.totalorder %s84, %s85
      %p94 = scmp.eq.s32.totalorder %s32, 0
      %p95 = por %p93, %p94
      %p96 = scmp.ne.s32.totalorder %s84, %s85
      %p97 = scmp.eq.s32.totalorder %s33, 1
      %p98 = por %p96, %p97
      %p100 = scmp.ne.s32.totalorder %s85, %s99
      %p101 = scmp.eq.s32.totalorder %s33, 0
      %p102 = por %p100, %p101
      %s104 = sadd.s32 %s103, 1
      %p107 = scmp.eq.s32.totalorder %s27, 1
      %p108 = scmp.ne.s32.totalorder %s103, %s105
      %p109 = scmp.eq.s32.totalorder %s27, 0
      %p110 = por %p108, %p109
      %p111 = scmp.ne.s32.totalorder %s103, %s105
      %p112 = scmp.eq.s32.totalorder %s32, 1
      %p113 = por %p111, %p112
      %p114 = scmp.ne.s32.totalorder %s105, %s106
      %p115 = scmp.eq.s32.totalorder %s32, 0
      %p116 = por %p114, %p115
      %p117 = scmp.ne.s32.totalorder %s105, %s106
      %p118 = scmp.eq.s32.totalorder %s33, 1
      %p119 = por %p117, %p118
      %p121 = scmp.ne.s32.totalorder %s106, %s120
      %p122 = scmp.eq.s32.totalorder %s33, 0
      %p123 = por %p121, %p122
      %s125 = sadd.s32 %s124, 1
      %p128 = scmp.eq.s32.totalorder %s27, 1
      %p129 = scmp.ne.s32.totalorder %s124, %s126
      %p130 = scmp.eq.s32.totalorder %s27, 0
      %p131 = por %p129, %p130
      %p132 = scmp.ne.s32.totalorder %s124, %s126
      %p133 = scmp.eq.s32.totalorder %s32, 1
      %p134 = por %p132, %p133
      %p135 = scmp.ne.s32.totalorder %s126, %s127
      %p136 = scmp.eq.s32.totalorder %s32, 0
      %p137 = por %p135, %p136
      %p138 = scmp.ne.s32.totalorder %s126, %s127
      %p139 = scmp.eq.s32.totalorder %s33, 1
      %p140 = por %p138, %p139
      %p142 = scmp.ne.s32.totalorder %s127, %s141
      %p143 = scmp.eq.s32.totalorder %s33, 0
      %p144 = por %p142, %p143
      %s146 = sadd.s32 %s145, 1
      %p149 = scmp.eq.s32.totalorder %s27, 1
      %p150 = scmp.ne.s32.totalorder %s145, %s147
      %p151 = scmp.eq.s32.totalorder %s27, 0
      %p152 = por %p150, %p151
      %p153 = scmp.ne.s32.totalorder %s145, %s147
      %p154 = scmp.eq.s32.totalorder %s32, 1
      %p155 = por %p153, %p154
      %p156 = scmp.ne.s32.totalorder %s147, %s148
      %p157 = scmp.eq.s32.totalorder %s32, 0
      %p158 = por %p156, %p157
      %p159 = scmp.ne.s32.totalorder %s147, %s148
      %p160 = scmp.eq.s32.totalorder %s33, 1
      %p161 = por %p159, %p160
      %p163 = scmp.ne.s32.totalorder %s148, %s162
      %p164 = scmp.eq.s32.totalorder %s33, 0
      %p165 = por %p163, %p164
      %s167 = sadd.s32 %s166, 1
      %p170 = scmp.eq.s32.totalorder %s27, 1
      %p171 = scmp.ne.s32.totalorder %s166, %s168
      %p172 = scmp.eq.s32.totalorder %s27, 0
      %p173 = por %p171, %p172
      %p174 = scmp.ne.s32.totalorder %s166, %s168
      %p175 = scmp.eq.s32.totalorder %s32, 1
      %p176 = por %p174, %p175
      %p177 = scmp.ne.s32.totalorder %s168, %s169
      %p178 = scmp.eq.s32.totalorder %s32, 0
      %p179 = por %p177, %p178
      %p180 = scmp.ne.s32.totalorder %s168, %s169
      %p181 = scmp.eq.s32.totalorder %s33, 1
      %p182 = por %p180, %p181
      %p184 = scmp.ne.s32.totalorder %s169, %s183
      %p185 = scmp.eq.s32.totalorder %s33, 0
      %p186 = por %p184, %p185
      %s188 = sadd.s32 %s187, 1
      %p191 = scmp.eq.s32.totalorder %s27, 1
      %p192 = scmp.ne.s32.totalorder %s187, %s189
      %p193 = scmp.eq.s32.totalorder %s27, 0
      %p194 = por %p192, %p193
      %p195 = scmp.ne.s32.totalorder %s187, %s189
      %p196 = scmp.eq.s32.totalorder %s32, 1
      %p197 = por %p195, %p196
      %p198 = scmp.ne.s32.totalorder %s189, %s190
      %p199 = scmp.eq.s32.totalorder %s32, 0
      %p200 = por %p198, %p199
      %p201 = scmp.ne.s32.totalorder %s189, %s190
      %p202 = scmp.eq.s32.totalorder %s33, 1
      %p203 = por %p201, %p202
      %p205 = scmp.ne.s32.totalorder %s190, %s204
      %p206 = scmp.eq.s32.totalorder %s33, 0
      %p207 = por %p205, %p206
      %s209 = sadd.s32 %s208, 1
      %p212 = scmp.eq.s32.totalorder %s27, 1
      %p213 = scmp.ne.s32.totalorder %s208, %s210
      %p214 = scmp.eq.s32.totalorder %s27, 0
      %p215 = por %p213, %p214
      %p216 = scmp.ne.s32.totalorder %s208, %s210
      %p217 = scmp.eq.s32.totalorder %s32, 1
      %p218 = por %p216, %p217
      %p219 = scmp.ne.s32.totalorder %s210, %s211
      %p220 = scmp.eq.s32.totalorder %s32, 0
      %p221 = por %p219, %p220
      %p222 = scmp.ne.s32.totalorder %s210, %s211
      %p223 = scmp.eq.s32.totalorder %s33, 1
      %p224 = por %p222, %p223
      %p226 = scmp.ne.s32.totalorder %s211, %s225
      %p227 = scmp.eq.s32.totalorder %s33, 0
      %p228 = por %p226, %p227
      %s230 = sadd.s32 %s229, 1
      %p233 = scmp.eq.s32.totalorder %s27, 1
      %p234 = scmp.ne.s32.totalorder %s229, %s231
      %p235 = scmp.eq.s32.totalorder %s27, 0
      %p236 = por %p234, %p235
      %p237 = scmp.ne.s32.totalorder %s229, %s231
      %p238 = scmp.eq.s32.totalorder %s32, 1
      %p239 = por %p237, %p238
      %p240 = scmp.ne.s32.totalorder %s231, %s232
      %p241 = scmp.eq.s32.totalorder %s32, 0
      %p242 = por %p240, %p241
      %p243 = scmp.ne.s32.totalorder %s231, %s232
      %p244 = scmp.eq.s32.totalorder %s33, 1
      %p245 = por %p243, %p244
      %p247 = scmp.ne.s32.totalorder %s232, %s246
      %p248 = scmp.eq.s32.totalorder %s33, 0
      %p249 = por %p247, %p248
      %s251 = sadd.s32 %s250, 1
      %p254 = scmp.eq.s32.totalorder %s27, 1
      %p255 = scmp.ne.s32.totalorder %s250, %s252
      %p256 = scmp.eq.s32.totalorder %s27, 0
      %p257 = por %p255, %p256
      %p258 = scmp.ne.s32.totalorder %s250, %s252
      %p259 = scmp.eq.s32.totalorder %s32, 1
      %p260 = por %p258, %p259
      %p261 = scmp.ne.s32.totalorder %s252, %s253
      %p262 = scmp.eq.s32.totalorder %s32, 0
      %p263 = por %p261, %p262
      %p264 = scmp.ne.s32.totalorder %s252, %s253
      %p265 = scmp.eq.s32.totalorder %s33, 1
      %p266 = por %p264, %p265
      %p268 = scmp.ne.s32.totalorder %s253, %s267
      %p269 = scmp.eq.s32.totalorder %s33, 0
      %p270 = por %p268, %p269
      %s271 = ssub.s32 %s27, %s34
      %p272 = scmp.eq.s32.totalorder %s271, 0
      %s274 = sadd.s32 %s273, 1
      %s275 = scalar_select %p272, %s273, %s274
      %p278 = pneg %p272
      %p279 = scmp.eq.s32.totalorder %s27, 1
      %p280 = por %p278, %p279
      %p281 = scmp.ne.s32.totalorder %s273, %s276
      %p282 = scmp.eq.s32.totalorder %s27, 0
      %p283 = por %p281, %p282
      %p284 = scmp.ne.s32.totalorder %s273, %s276
      %p285 = scmp.eq.s32.totalorder %s32, 1
      %p286 = por %p284, %p285
      %p287 = scmp.ne.s32.totalorder %s276, %s277
      %p288 = scmp.eq.s32.totalorder %s32, 0
      %p289 = por %p287, %p288
      %p290 = scmp.ne.s32.totalorder %s276, %s277
      %p291 = scmp.eq.s32.totalorder %s33, 1
      %p292 = por %p290, %p291
      %p294 = scmp.ne.s32.totalorder %s277, %s293
      %p295 = scmp.eq.s32.totalorder %s33, 0
      %p296 = por %p294, %p295
      %p297 = scmp.le.s32.totalorder 1, %s27
      %p298 = scmp.lt.s32.totalorder %s27, 3
      %p299 = pnand %p297, %p298
      %p300 = pneg %p299
      // Predicated region
      $region9: #{tpu_custom_call.1} parent=5 // pred_check
        _
      $region10: #{tpu_custom_call.1} parent=5 // pred_check_branch
        %302 = sbr.rel (%p299) target = $region12
      $region11: #{tpu_custom_call.1} parent=5 // pred_region
        %s303 = ssub.s32 %s27, 1
        // Predicated region
        $region13: #{tpu_custom_call.1} parent=11 // pred_check
          %p304 = pneg %p74
        $region14: #{tpu_custom_call.1} parent=11 // pred_check_branch
          %306 = sbr.rel (%p304) target = $region16
        $region15: #{tpu_custom_call.1} parent=11 // pred_region
          %s308 = ssub.s32 256, 256
          %309 = vsyncadd [#allocation7], %s308
          %s310 = sshll.u32 [#allocation6], 4
          %s311 = int_to_ptr.vmem [resolvable:$true] %s310
          %316 = dma.hbm_to_vmem [thread:$0]  %s1, 256, %s311, [#allocation7], 128, 128, 8
        $region16: #{tpu_custom_call.1} parent=11 // pred_fallthru
          _
        // Predicated region
        $region17: #{tpu_custom_call.1} parent=11 // pred_check
          %p317 = pneg %p95
        $region18: #{tpu_custom_call.1} parent=11 // pred_check_branch
          %319 = sbr.rel (%p317) target = $region20
        $region19: #{tpu_custom_call.1} parent=11 // pred_region
          %s321 = ssub.s32 16, 16
          %322 = vsyncadd [#allocation7], %s321
          %s324 = sshll.u32 [#allocation8], 4
          %s325 = int_to_ptr.vmem [resolvable:$true] %s324
          %327 = dma.hbm_to_vmem [thread:$0]  %s2, 16, %s325, [#allocation7]
        $region20: #{tpu_custom_call.1} parent=11 // pred_fallthru
          _
        // Predicated region
        $region21: #{tpu_custom_call.1} parent=11 // pred_check
          %p328 = pneg %p116
        $region22: #{tpu_custom_call.1} parent=11 // pred_check_branch
          %330 = sbr.rel (%p328) target = $region24
        $region23: #{tpu_custom_call.1} parent=11 // pred_region
          %s332 = ssub.s32 1024, 1024
          %333 = vsyncadd [#allocation10], %s332
          %s334 = sshll.u32 [#allocation9], 4
          %s335 = int_to_ptr.vmem [resolvable:$true] %s334
          %340 = dma.hbm_to_vmem [thread:$0]  %s3, 1024, %s335, [#allocation10], 64, 64, 4
        $region24: #{tpu_custom_call.1} parent=11 // pred_fallthru
          _
        // Predicated region
        $region25: #{tpu_custom_call.1} parent=11 // pred_check
          %p341 = pneg %p137
        $region26: #{tpu_custom_call.1} parent=11 // pred_check_branch
          %343 = sbr.rel (%p341) target = $region28
        $region27: #{tpu_custom_call.1} parent=11 // pred_region
          %s345 = ssub.s32 16, 16
          %346 = vsyncadd [#allocation10], %s345
          %s348 = sshll.u32 [#allocation11], 4
          %s349 = int_to_ptr.vmem [resolvable:$true] %s348
          %351 = dma.hbm_to_vmem [thread:$0]  %s4, 16, %s349, [#allocation10]
        $region28: #{tpu_custom_call.1} parent=11 // pred_fallthru
          _
        // Predicated region
        $region29: #{tpu_custom_call.1} parent=11 // pred_check
          %p352 = pneg %p158
        $region30: #{tpu_custom_call.1} parent=11 // pred_check_branch
          %354 = sbr.rel (%p352) target = $region32
        $region31: #{tpu_custom_call.1} parent=11 // pred_region
          %s356 = ssub.s32 256, 256
          %357 = vsyncadd [#allocation13], %s356
          %s358 = sshll.u32 [#allocation12], 4
          %s359 = int_to_ptr.vmem [resolvable:$true] %s358
          %364 = dma.hbm_to_vmem [thread:$0]  %s5, 256, %s359, [#allocation13], 128, 128, 8
        $region32: #{tpu_custom_call.1} parent=11 // pred_fallthru
          _
        // Predicated region
        $region33: #{tpu_custom_call.1} parent=11 // pred_check
          %p365 = pneg %p179
        $region34: #{tpu_custom_call.1} parent=11 // pred_check_branch
          %367 = sbr.rel (%p365) target = $region36
        $region35: #{tpu_custom_call.1} parent=11 // pred_region
          %s369 = ssub.s32 16, 16
          %370 = vsyncadd [#allocation13], %s369
          %s372 = sshll.u32 [#allocation14], 4
          %s373 = int_to_ptr.vmem [resolvable:$true] %s372
          %375 = dma.hbm_to_vmem [thread:$0]  %s6, 16, %s373, [#allocation13]
        $region36: #{tpu_custom_call.1} parent=11 // pred_fallthru
          _
        // Predicated region
        $region37: #{tpu_custom_call.1} parent=11 // pred_check
          %p376 = pneg %p200
        $region38: #{tpu_custom_call.1} parent=11 // pred_check_branch
          %378 = sbr.rel (%p376) target = $region40
        $region39: #{tpu_custom_call.1} parent=11 // pred_region
          %s380 = ssub.s32 1024, 1024
          %381 = vsyncadd [#allocation16], %s380
          %s382 = sshll.u32 [#allocation15], 4
          %s383 = int_to_ptr.vmem [resolvable:$true] %s382
          %388 = dma.hbm_to_vmem [thread:$0]  %s7, 1024, %s383, [#allocation16], 64, 64, 4
        $region40: #{tpu_custom_call.1} parent=11 // pred_fallthru
          _
        // Predicated region
        $region41: #{tpu_custom_call.1} parent=11 // pred_check
          %p389 = pneg %p221
        $region42: #{tpu_custom_call.1} parent=11 // pred_check_branch
          %391 = sbr.rel (%p389) target = $region44
        $region43: #{tpu_custom_call.1} parent=11 // pred_region
          %s393 = ssub.s32 16, 16
          %394 = vsyncadd [#allocation16], %s393
          %s396 = sshll.u32 [#allocation17], 4
          %s397 = int_to_ptr.vmem [resolvable:$true] %s396
          %399 = dma.hbm_to_vmem [thread:$0]  %s8, 16, %s397, [#allocation16]
        $region44: #{tpu_custom_call.1} parent=11 // pred_fallthru
          _
        // Predicated region
        $region45: #{tpu_custom_call.1} parent=11 // pred_check
          %p400 = pneg %p242
        $region46: #{tpu_custom_call.1} parent=11 // pred_check_branch
          %402 = sbr.rel (%p400) target = $region48
        $region47: #{tpu_custom_call.1} parent=11 // pred_region
          _
        $region48: #{tpu_custom_call.1} parent=11 // pred_fallthru
          _
        // Predicated region
        $region49: #{tpu_custom_call.1} parent=11 // pred_check
          %p403 = pneg %p263
        $region50: #{tpu_custom_call.1} parent=11 // pred_check_branch
          %405 = sbr.rel (%p403) target = $region52
        $region51: #{tpu_custom_call.1} parent=11 // pred_region
          _
        $region52: #{tpu_custom_call.1} parent=11 // pred_fallthru
          _
      $region12: #{tpu_custom_call.1} parent=5 // pred_fallthru
        _
      %p406 = scmp.lt.s32.totalorder %s27, 2
      // Predicated region
      $region53: #{tpu_custom_call.1} parent=5 // pred_check
        %p407 = pneg %p406
      $region54: #{tpu_custom_call.1} parent=5 // pred_check_branch
        %409 = sbr.rel (%p407) target = $region56
      $region55: #{tpu_custom_call.1} parent=5 // pred_region
        // Predicated region
        $region57: #{tpu_custom_call.1} parent=55 // pred_check
          %p410 = pneg %p47
        $region58: #{tpu_custom_call.1} parent=55 // pred_check_branch
          %412 = sbr.rel (%p410) target = $region60
        $region59: #{tpu_custom_call.1} parent=55 // pred_region
          %s413 = sand.u32 %s37, 1
          %s414 = scalar_lea.sflag [#allocation4], %s413
          %s415 = sand.u32 %s37, 1
          %s416 = smul.addr %s415, 256
          %s417 = scalar_lea.vmem [#allocation3], %s416
          %s419 = ssub.s32 4096, 4096
          %420 = vsyncadd %s414, %s419
          %s421 = smul.addr %s27, 32
          %s422 = smul.addr %s421, 128
          %s423 = scalar_lea.hbm %s0, %s422
          %s424 = sshll.u32 %s417, 4
          %s425 = int_to_ptr.vmem [resolvable:$true] %s424
          %430 = dma.hbm_to_vmem [thread:$0]  %s423, 4096, %s425, %s414, 128, 128, 8
        $region60: #{tpu_custom_call.1} parent=55 // pred_fallthru
          _
      $region56: #{tpu_custom_call.1} parent=5 // pred_fallthru
        _
      %p431 = scmp.le.s32.totalorder 1, %s27
      %p432 = scmp.lt.s32.totalorder %s27, 3
      %p433 = pnand %p431, %p432
      %p434 = pneg %p433
      // Predicated region
      $region61: #{tpu_custom_call.1} parent=5 // pred_check
        _
      $region62: #{tpu_custom_call.1} parent=5 // pred_check_branch
        %436 = sbr.rel (%p433) target = $region64
      $region63: #{tpu_custom_call.1} parent=5 // pred_region
        %s437 = ssub.s32 %s27, 1
        %s438 = sand.u32 %s40, 1
        %s439 = scalar_lea.sflag [#allocation4], %s438
        %s440 = sand.u32 %s40, 1
        %s441 = smul.addr %s440, 256
        %s442 = scalar_lea.vmem [#allocation3], %s441
        // Predicated region
        $region65: #{tpu_custom_call.1} parent=63 // pred_check
          %p443 = pneg %p53
        $region66: #{tpu_custom_call.1} parent=63 // pred_check_branch
          %445 = sbr.rel (%p443) target = $region68
        $region67: #{tpu_custom_call.1} parent=63 // pred_region
          %446 = dma.done %s439, 4096
        $region68: #{tpu_custom_call.1} parent=63 // pred_fallthru
          _
        // Predicated region
        $region69: #{tpu_custom_call.1} parent=63 // pred_check
          %p447 = pneg %p74
        $region70: #{tpu_custom_call.1} parent=63 // pred_check_branch
          %449 = sbr.rel (%p447) target = $region72
        $region71: #{tpu_custom_call.1} parent=63 // pred_region
          %450 = dma.done [#allocation7], 256
        $region72: #{tpu_custom_call.1} parent=63 // pred_fallthru
          _
        // Predicated region
        $region73: #{tpu_custom_call.1} parent=63 // pred_check
          %p451 = pneg %p95
        $region74: #{tpu_custom_call.1} parent=63 // pred_check_branch
          %453 = sbr.rel (%p451) target = $region76
        $region75: #{tpu_custom_call.1} parent=63 // pred_region
          %454 = dma.done [#allocation7], 16
        $region76: #{tpu_custom_call.1} parent=63 // pred_fallthru
          _
        // Predicated region
        $region77: #{tpu_custom_call.1} parent=63 // pred_check
          %p455 = pneg %p116
        $region78: #{tpu_custom_call.1} parent=63 // pred_check_branch
          %457 = sbr.rel (%p455) target = $region80
        $region79: #{tpu_custom_call.1} parent=63 // pred_region
          %458 = dma.done [#allocation10], 1024
        $region80: #{tpu_custom_call.1} parent=63 // pred_fallthru
          _
        // Predicated region
        $region81: #{tpu_custom_call.1} parent=63 // pred_check
          %p459 = pneg %p137
        $region82: #{tpu_custom_call.1} parent=63 // pred_check_branch
          %461 = sbr.rel (%p459) target = $region84
        $region83: #{tpu_custom_call.1} parent=63 // pred_region
          %462 = dma.done [#allocation10], 16
        $region84: #{tpu_custom_call.1} parent=63 // pred_fallthru
          _
        // Predicated region
        $region85: #{tpu_custom_call.1} parent=63 // pred_check
          %p463 = pneg %p158
        $region86: #{tpu_custom_call.1} parent=63 // pred_check_branch
          %465 = sbr.rel (%p463) target = $region88
        $region87: #{tpu_custom_call.1} parent=63 // pred_region
          %466 = dma.done [#allocation13], 256
        $region88: #{tpu_custom_call.1} parent=63 // pred_fallthru
          _
        // Predicated region
        $region89: #{tpu_custom_call.1} parent=63 // pred_check
          %p467 = pneg %p179
        $region90: #{tpu_custom_call.1} parent=63 // pred_check_branch
          %469 = sbr.rel (%p467) target = $region92
        $region91: #{tpu_custom_call.1} parent=63 // pred_region
          %470 = dma.done [#allocation13], 16
        $region92: #{tpu_custom_call.1} parent=63 // pred_fallthru
          _
        // Predicated region
        $region93: #{tpu_custom_call.1} parent=63 // pred_check
          %p471 = pneg %p200
        $region94: #{tpu_custom_call.1} parent=63 // pred_check_branch
          %473 = sbr.rel (%p471) target = $region96
        $region95: #{tpu_custom_call.1} parent=63 // pred_region
          %474 = dma.done [#allocation16], 1024
        $region96: #{tpu_custom_call.1} parent=63 // pred_fallthru
          _
        // Predicated region
        $region97: #{tpu_custom_call.1} parent=63 // pred_check
          %p475 = pneg %p221
        $region98: #{tpu_custom_call.1} parent=63 // pred_check_branch
          %477 = sbr.rel (%p475) target = $region100
        $region99: #{tpu_custom_call.1} parent=63 // pred_region
          %478 = dma.done [#allocation16], 16
        $region100: #{tpu_custom_call.1} parent=63 // pred_fallthru
          _
        %s479 = sand.u32 %s40, 1
        %s480 = scalar_lea.sflag [#allocation4], %s479
        %s481 = sand.u32 %s40, 1
        %s482 = smul.addr %s481, 256
        %s483 = scalar_lea.vmem [#allocation3], %s482
        %p484 = pneg %p53
        %p485 = pneg %p50
        %p486 = pneg %p74
        %p487 = pneg %p71
        %p488 = pneg %p95
        %p489 = pneg %p92
        %p490 = pneg %p116
        %p491 = pneg %p113
        %p492 = pneg %p137
        %p493 = pneg %p134
        %p494 = pneg %p158
        %p495 = pneg %p155
        %p496 = pneg %p179
        %p497 = pneg %p176
        %p498 = pneg %p200
        %p499 = pneg %p197
        %p500 = pneg %p221
        %p501 = pneg %p218
        %p502 = pneg %p242
        %p503 = pneg %p239
        %p504 = pneg %p263
        %p505 = pneg %p260
        %p506 = pneg %p289
        %p507 = pneg %p286
        %s508 = sand.u32 %s276, 1
        %s509 = scalar_lea.sflag [#allocation5], %s508
        %s510 = sand.u32 %s276, 1
        %s511 = smul.addr %s510, 256
        %s512 = scalar_lea.vmem [#allocation18], %s511
        %514 = vst [vmem:[#allocation2] sm:$0xff] 0.0
        %515 = vst [vmem:[#allocation2 + $0x8] sm:$0xff] 0.0
        %516 = vst [vmem:[#allocation2 + $0x10] sm:$0xff] 0.0
        %517 = vst [vmem:[#allocation2 + $0x18] sm:$0xff] 0.0
        %s518 = scalar_lea.vmem [#allocation2], 544
        %519 = vst [vmem:[%s518] sm:$0xff] 0.0
        %520 = vst [vmem:[%s518 + $0x8] sm:$0xff] 0.0
        %521 = vst [vmem:[%s518 + $0x10] sm:$0xff] 0.0
        %522 = vst [vmem:[%s518 + $0x18] sm:$0xff] 0.0
        %s523 = scalar_lea.vmem [#allocation2], 32
        %524 = vst [vmem:[%s523] sm:$0xff] 0.0
        %525 = vst [vmem:[%s523 + $0x20] sm:$0xff] 0.0
        %526 = vst [vmem:[%s523 + $0x40] sm:$0xff] 0.0
        %527 = vst [vmem:[%s523 + $0x60] sm:$0xff] 0.0
        %528 = vst [vmem:[%s523 + $0x80] sm:$0xff] 0.0
        %529 = vst [vmem:[%s523 + $0xa0] sm:$0xff] 0.0
        %530 = vst [vmem:[%s523 + $0xc0] sm:$0xff] 0.0
        %531 = vst [vmem:[%s523 + $0xe0] sm:$0xff] 0.0
        %532 = vst [vmem:[%s523 + $0x100] sm:$0xff] 0.0
        %533 = vst [vmem:[%s523 + $0x120] sm:$0xff] 0.0
        %534 = vst [vmem:[%s523 + $0x140] sm:$0xff] 0.0
        %535 = vst [vmem:[%s523 + $0x160] sm:$0xff] 0.0
        %536 = vst [vmem:[%s523 + $0x180] sm:$0xff] 0.0
        %537 = vst [vmem:[%s523 + $0x1a0] sm:$0xff] 0.0
        %538 = vst [vmem:[%s523 + $0x1c0] sm:$0xff] 0.0
        %539 = vst [vmem:[%s523 + $0x1e0] sm:$0xff] 0.0
        %540 = vst [vmem:[%s523 + $0x18] sm:$0xff] 0.0
        %541 = vst [vmem:[%s523 + $0x38] sm:$0xff] 0.0
        %542 = vst [vmem:[%s523 + $0x58] sm:$0xff] 0.0
        %543 = vst [vmem:[%s523 + $0x78] sm:$0xff] 0.0
        %544 = vst [vmem:[%s523 + $0x98] sm:$0xff] 0.0
        %545 = vst [vmem:[%s523 + $0xb8] sm:$0xff] 0.0
        %546 = vst [vmem:[%s523 + $0xd8] sm:$0xff] 0.0
        %547 = vst [vmem:[%s523 + $0xf8] sm:$0xff] 0.0
        %548 = vst [vmem:[%s523 + $0x118] sm:$0xff] 0.0
        %549 = vst [vmem:[%s523 + $0x138] sm:$0xff] 0.0
        %550 = vst [vmem:[%s523 + $0x158] sm:$0xff] 0.0
        %551 = vst [vmem:[%s523 + $0x178] sm:$0xff] 0.0
        %552 = vst [vmem:[%s523 + $0x198] sm:$0xff] 0.0
        %553 = vst [vmem:[%s523 + $0x1b8] sm:$0xff] 0.0
        %554 = vst [vmem:[%s523 + $0x1d8] sm:$0xff] 0.0
        %555 = vst [vmem:[%s523 + $0x1f8] sm:$0xff] 0.0
        %v556 = vld [vmem:[%s442] sm:$0xff]
        %v557 = vld [vmem:[%s442 + $0x8] sm:$0xff]
        %v558 = vld [vmem:[%s442 + $0x10] sm:$0xff]
        %v559 = vld [vmem:[%s442 + $0x18] sm:$0xff]
        %v560 = vld [vmem:[%s442 + $0x20] sm:$0xff]
        %v561 = vld [vmem:[%s442 + $0x28] sm:$0xff]
        %v562 = vld [vmem:[%s442 + $0x30] sm:$0xff]
        %v563 = vld [vmem:[%s442 + $0x38] sm:$0xff]
        %v564 = vld [vmem:[%s442 + $0x40] sm:$0xff]
        %v565 = vld [vmem:[%s442 + $0x48] sm:$0xff]
        %v566 = vld [vmem:[%s442 + $0x50] sm:$0xff]
        %v567 = vld [vmem:[%s442 + $0x58] sm:$0xff]
        %v568 = vld [vmem:[%s442 + $0x60] sm:$0xff]
        %v569 = vld [vmem:[%s442 + $0x68] sm:$0xff]
        %v570 = vld [vmem:[%s442 + $0x70] sm:$0xff]
        %v571 = vld [vmem:[%s442 + $0x78] sm:$0xff]
        %v572 = vld [vmem:[%s442 + $0x80] sm:$0xff]
        %v573 = vld [vmem:[%s442 + $0x88] sm:$0xff]
        %v574 = vld [vmem:[%s442 + $0x90] sm:$0xff]
        %v575 = vld [vmem:[%s442 + $0x98] sm:$0xff]
        %v576 = vld [vmem:[%s442 + $0xa0] sm:$0xff]
        %v577 = vld [vmem:[%s442 + $0xa8] sm:$0xff]
        %v578 = vld [vmem:[%s442 + $0xb0] sm:$0xff]
        %v579 = vld [vmem:[%s442 + $0xb8] sm:$0xff]
        %v580 = vld [vmem:[%s442 + $0xc0] sm:$0xff]
        %v581 = vld [vmem:[%s442 + $0xc8] sm:$0xff]
        %v582 = vld [vmem:[%s442 + $0xd0] sm:$0xff]
        %v583 = vld [vmem:[%s442 + $0xd8] sm:$0xff]
        %v584 = vld [vmem:[%s442 + $0xe0] sm:$0xff]
        %v585 = vld [vmem:[%s442 + $0xe8] sm:$0xff]
        %v586 = vld [vmem:[%s442 + $0xf0] sm:$0xff]
        %v587 = vld [vmem:[%s442 + $0xf8] sm:$0xff]
        %588 = vst [vmem:[%s523 + $0x8] sm:$0xff] %v556
        %589 = vst [vmem:[%s523 + $0x10] sm:$0xff] %v557
        %590 = vst [vmem:[%s523 + $0x28] sm:$0xff] %v558
        %591 = vst [vmem:[%s523 + $0x30] sm:$0xff] %v559
        %592 = vst [vmem:[%s523 + $0x48] sm:$0xff] %v560
        %593 = vst [vmem:[%s523 + $0x50] sm:$0xff] %v561
        %594 = vst [vmem:[%s523 + $0x68] sm:$0xff] %v562
        %595 = vst [vmem:[%s523 + $0x70] sm:$0xff] %v563
        %596 = vst [vmem:[%s523 + $0x88] sm:$0xff] %v564
        %597 = vst [vmem:[%s523 + $0x90] sm:$0xff] %v565
        %598 = vst [vmem:[%s523 + $0xa8] sm:$0xff] %v566
        %599 = vst [vmem:[%s523 + $0xb0] sm:$0xff] %v567
        %600 = vst [vmem:[%s523 + $0xc8] sm:$0xff] %v568
        %601 = vst [vmem:[%s523 + $0xd0] sm:$0xff] %v569
        %602 = vst [vmem:[%s523 + $0xe8] sm:$0xff] %v570
        %603 = vst [vmem:[%s523 + $0xf0] sm:$0xff] %v571
        %604 = vst [vmem:[%s523 + $0x108] sm:$0xff] %v572
        %605 = vst [vmem:[%s523 + $0x110] sm:$0xff] %v573
        %606 = vst [vmem:[%s523 + $0x128] sm:$0xff] %v574
        %607 = vst [vmem:[%s523 + $0x130] sm:$0xff] %v575
        %608 = vst [vmem:[%s523 + $0x148] sm:$0xff] %v576
        %609 = vst [vmem:[%s523 + $0x150] sm:$0xff] %v577
        %610 = vst [vmem:[%s523 + $0x168] sm:$0xff] %v578
        %611 = vst [vmem:[%s523 + $0x170] sm:$0xff] %v579
        %612 = vst [vmem:[%s523 + $0x188] sm:$0xff] %v580
        %613 = vst [vmem:[%s523 + $0x190] sm:$0xff] %v581
        %614 = vst [vmem:[%s523 + $0x1a8] sm:$0xff] %v582
        %615 = vst [vmem:[%s523 + $0x1b0] sm:$0xff] %v583
        %616 = vst [vmem:[%s523 + $0x1c8] sm:$0xff] %v584
        %617 = vst [vmem:[%s523 + $0x1d0] sm:$0xff] %v585
        %618 = vst [vmem:[%s523 + $0x1e8] sm:$0xff] %v586
        %619 = vst [vmem:[%s523 + $0x1f0] sm:$0xff] %v587
        %v620 = vld [vmem:[#allocation6] sm:$0xff]
        %v621 = vld [vmem:[#allocation6 + $0x8] sm:$0x1]
        %v622 = vld [vmem:[#allocation8] sm:$0x1]
        %v623 = vlaneseq
        %v624 = vshrl.u32 %v623, 7
        %v625 = vsub.s32 4, %v624
        %v626 = vrot.slane %v620, %v625
        %v627 = vmul.f32 %v556, %v626
        %v628 = vmul.f32 %v557, %v626
        %v629 = vmul.f32 %v558, %v626
        %v630 = vmul.f32 %v559, %v626
        %v631 = vmul.f32 %v560, %v626
        %v632 = vmul.f32 %v561, %v626
        %v633 = vmul.f32 %v562, %v626
        %v634 = vmul.f32 %v563, %v626
        %v635 = vmul.f32 %v564, %v626
        %v636 = vmul.f32 %v565, %v626
        %v637 = vmul.f32 %v566, %v626
        %v638 = vmul.f32 %v567, %v626
        %v639 = vmul.f32 %v568, %v626
        %v640 = vmul.f32 %v569, %v626
        %v641 = vmul.f32 %v570, %v626
        %v642 = vmul.f32 %v571, %v626
        %v643 = vmul.f32 %v572, %v626
        %v644 = vmul.f32 %v573, %v626
        %v645 = vmul.f32 %v574, %v626
        %v646 = vmul.f32 %v575, %v626
        %v647 = vmul.f32 %v576, %v626
        %v648 = vmul.f32 %v577, %v626
        %v649 = vmul.f32 %v578, %v626
        %v650 = vmul.f32 %v579, %v626
        %v651 = vmul.f32 %v580, %v626
        %v652 = vmul.f32 %v581, %v626
        %v653 = vmul.f32 %v582, %v626
        %v654 = vmul.f32 %v583, %v626
        %v655 = vmul.f32 %v584, %v626
        %v656 = vmul.f32 %v585, %v626
        %v657 = vmul.f32 %v586, %v626
        %v658 = vmul.f32 %v587, %v626
        %v659 = vld [vmem:[#allocation2 + $0x7] sm:$0xff]
        %v660 = vld [vmem:[#allocation2 + $0xf] sm:$0xff]
        %v661 = vld [vmem:[#allocation2 + $0x27] sm:$0xff]
        %v662 = vld [vmem:[#allocation2 + $0x2f] sm:$0xff]
        %v663 = vld [vmem:[#allocation2 + $0x47] sm:$0xff]
        %v664 = vld [vmem:[#allocation2 + $0x4f] sm:$0xff]
        %v665 = vld [vmem:[#allocation2 + $0x67] sm:$0xff]
        %v666 = vld [vmem:[#allocation2 + $0x6f] sm:$0xff]
        %v667 = vld [vmem:[#allocation2 + $0x87] sm:$0xff]
        %v668 = vld [vmem:[#allocation2 + $0x8f] sm:$0xff]
        %v669 = vld [vmem:[#allocation2 + $0xa7] sm:$0xff]
        %v670 = vld [vmem:[#allocation2 + $0xaf] sm:$0xff]
        %v671 = vld [vmem:[#allocation2 + $0xc7] sm:$0xff]
        %v672 = vld [vmem:[#allocation2 + $0xcf] sm:$0xff]
        %v673 = vld [vmem:[#allocation2 + $0xe7] sm:$0xff]
        %v674 = vld [vmem:[#allocation2 + $0xef] sm:$0xff]
        %v675 = vld [vmem:[#allocation2 + $0x107] sm:$0xff]
        %v676 = vld [vmem:[#allocation2 + $0x10f] sm:$0xff]
        %v677 = vld [vmem:[#allocation2 + $0x127] sm:$0xff]
        %v678 = vld [vmem:[#allocation2 + $0x12f] sm:$0xff]
        %v679 = vld [vmem:[#allocation2 + $0x147] sm:$0xff]
        %v680 = vld [vmem:[#allocation2 + $0x14f] sm:$0xff]
        %v681 = vld [vmem:[#allocation2 + $0x167] sm:$0xff]
        %v682 = vld [vmem:[#allocation2 + $0x16f] sm:$0xff]
        %v683 = vld [vmem:[#allocation2 + $0x187] sm:$0xff]
        %v684 = vld [vmem:[#allocation2 + $0x18f] sm:$0xff]
        %v685 = vld [vmem:[#allocation2 + $0x1a7] sm:$0xff]
        %v686 = vld [vmem:[#allocation2 + $0x1af] sm:$0xff]
        %v687 = vld [vmem:[#allocation2 + $0x1c7] sm:$0xff]
        %v688 = vld [vmem:[#allocation2 + $0x1cf] sm:$0xff]
        %v689 = vld [vmem:[#allocation2 + $0x1e7] sm:$0xff]
        %v690 = vld [vmem:[#allocation2 + $0x1ef] sm:$0xff]
        %v691 = vlaneseq
        %v692 = vshrl.u32 %v691, 7
        %v693 = vsub.s32 0, %v692
        %v694 = vrot.slane %v620, %v693
        %v695 = vmul.f32 %v659, %v694
        %v696 = vmul.f32 %v660, %v694
        %v697 = vmul.f32 %v661, %v694
        %v698 = vmul.f32 %v662, %v694
        %v699 = vmul.f32 %v663, %v694
        %v700 = vmul.f32 %v664, %v694
        %v701 = vmul.f32 %v665, %v694
        %v702 = vmul.f32 %v666, %v694
        %v703 = vmul.f32 %v667, %v694
        %v704 = vmul.f32 %v668, %v694
        %v705 = vmul.f32 %v669, %v694
        %v706 = vmul.f32 %v670, %v694
        %v707 = vmul.f32 %v671, %v694
        %v708 = vmul.f32 %v672, %v694
        %v709 = vmul.f32 %v673, %v694
        %v710 = vmul.f32 %v674, %v694
        %v711 = vmul.f32 %v675, %v694
        %v712 = vmul.f32 %v676, %v694
        %v713 = vmul.f32 %v677, %v694
        %v714 = vmul.f32 %v678, %v694
        %v715 = vmul.f32 %v679, %v694
        %v716 = vmul.f32 %v680, %v694
        %v717 = vmul.f32 %v681, %v694
        %v718 = vmul.f32 %v682, %v694
        %v719 = vmul.f32 %v683, %v694
        %v720 = vmul.f32 %v684, %v694
        %v721 = vmul.f32 %v685, %v694
        %v722 = vmul.f32 %v686, %v694
        %v723 = vmul.f32 %v687, %v694
        %v724 = vmul.f32 %v688, %v694
        %v725 = vmul.f32 %v689, %v694
        %v726 = vmul.f32 %v690, %v694
        %v727 = vadd.f32 %v627, %v695
        %v728 = vadd.f32 %v628, %v696
        %v729 = vadd.f32 %v629, %v697
        %v730 = vadd.f32 %v630, %v698
        %v731 = vadd.f32 %v631, %v699
        %v732 = vadd.f32 %v632, %v700
        %v733 = vadd.f32 %v633, %v701
        %v734 = vadd.f32 %v634, %v702
        %v735 = vadd.f32 %v635, %v703
        %v736 = vadd.f32 %v636, %v704
        %v737 = vadd.f32 %v637, %v705
        %v738 = vadd.f32 %v638, %v706
        %v739 = vadd.f32 %v639, %v707
        %v740 = vadd.f32 %v640, %v708
        %v741 = vadd.f32 %v641, %v709
        %v742 = vadd.f32 %v642, %v710
        %v743 = vadd.f32 %v643, %v711
        %v744 = vadd.f32 %v644, %v712
        %v745 = vadd.f32 %v645, %v713
        %v746 = vadd.f32 %v646, %v714
        %v747 = vadd.f32 %v647, %v715
        %v748 = vadd.f32 %v648, %v716
        %v749 = vadd.f32 %v649, %v717
        %v750 = vadd.f32 %v650, %v718
        %v751 = vadd.f32 %v651, %v719
        %v752 = vadd.f32 %v652, %v720
        %v753 = vadd.f32 %v653, %v721
        %v754 = vadd.f32 %v654, %v722
        %v755 = vadd.f32 %v655, %v723
        %v756 = vadd.f32 %v656, %v724
        %v757 = vadd.f32 %v657, %v725
        %v758 = vadd.f32 %v658, %v726
        %v759 = vld [vmem:[#allocation2 + $0x8] sm:$0xff]
        %v760 = vld [vmem:[#allocation2 + $0x10] sm:$0xff]
        %v761 = vld [vmem:[#allocation2 + $0x28] sm:$0xff]
        %v762 = vld [vmem:[#allocation2 + $0x30] sm:$0xff]
        %v763 = vld [vmem:[#allocation2 + $0x48] sm:$0xff]
        %v764 = vld [vmem:[#allocation2 + $0x50] sm:$0xff]
        %v765 = vld [vmem:[#allocation2 + $0x68] sm:$0xff]
        %v766 = vld [vmem:[#allocation2 + $0x70] sm:$0xff]
        %v767 = vld [vmem:[#allocation2 + $0x88] sm:$0xff]
        %v768 = vld [vmem:[#allocation2 + $0x90] sm:$0xff]
        %v769 = vld [vmem:[#allocation2 + $0xa8] sm:$0xff]
        %v770 = vld [vmem:[#allocation2 + $0xb0] sm:$0xff]
        %v771 = vld [vmem:[#allocation2 + $0xc8] sm:$0xff]
        %v772 = vld [vmem:[#allocation2 + $0xd0] sm:$0xff]
        %v773 = vld [vmem:[#allocation2 + $0xe8] sm:$0xff]
        %v774 = vld [vmem:[#allocation2 + $0xf0] sm:$0xff]
        %v775 = vld [vmem:[#allocation2 + $0x108] sm:$0xff]
        %v776 = vld [vmem:[#allocation2 + $0x110] sm:$0xff]
        %v777 = vld [vmem:[#allocation2 + $0x128] sm:$0xff]
        %v778 = vld [vmem:[#allocation2 + $0x130] sm:$0xff]
        %v779 = vld [vmem:[#allocation2 + $0x148] sm:$0xff]
        %v780 = vld [vmem:[#allocation2 + $0x150] sm:$0xff]
        %v781 = vld [vmem:[#allocation2 + $0x168] sm:$0xff]
        %v782 = vld [vmem:[#allocation2 + $0x170] sm:$0xff]
        %v783 = vld [vmem:[#allocation2 + $0x188] sm:$0xff]
        %v784 = vld [vmem:[#allocation2 + $0x190] sm:$0xff]
        %v785 = vld [vmem:[#allocation2 + $0x1a8] sm:$0xff]
        %v786 = vld [vmem:[#allocation2 + $0x1b0] sm:$0xff]
        %v787 = vld [vmem:[#allocation2 + $0x1c8] sm:$0xff]
        %v788 = vld [vmem:[#allocation2 + $0x1d0] sm:$0xff]
        %v789 = vld [vmem:[#allocation2 + $0x1e8] sm:$0xff]
        %v790 = vld [vmem:[#allocation2 + $0x1f0] sm:$0xff]
        %v791 = vlaneseq
        %v792 = vshrl.u32 %v791, 7
        %v793 = vsub.s32 1, %v792
        %v794 = vrot.slane %v620, %v793
        %v795 = vmul.f32 %v759, %v794
        %v796 = vmul.f32 %v760, %v794
        %v797 = vmul.f32 %v761, %v794
        %v798 = vmul.f32 %v762, %v794
        %v799 = vmul.f32 %v763, %v794
        %v800 = vmul.f32 %v764, %v794
        %v801 = vmul.f32 %v765, %v794
        %v802 = vmul.f32 %v766, %v794
        %v803 = vmul.f32 %v767, %v794
        %v804 = vmul.f32 %v768, %v794
        %v805 = vmul.f32 %v769, %v794
        %v806 = vmul.f32 %v770, %v794
        %v807 = vmul.f32 %v771, %v794
        %v808 = vmul.f32 %v772, %v794
        %v809 = vmul.f32 %v773, %v794
        %v810 = vmul.f32 %v774, %v794
        %v811 = vmul.f32 %v775, %v794
        %v812 = vmul.f32 %v776, %v794
        %v813 = vmul.f32 %v777, %v794
        %v814 = vmul.f32 %v778, %v794
        %v815 = vmul.f32 %v779, %v794
        %v816 = vmul.f32 %v780, %v794
        %v817 = vmul.f32 %v781, %v794
        %v818 = vmul.f32 %v782, %v794
        %v819 = vmul.f32 %v783, %v794
        %v820 = vmul.f32 %v784, %v794
        %v821 = vmul.f32 %v785, %v794
        %v822 = vmul.f32 %v786, %v794
        %v823 = vmul.f32 %v787, %v794
        %v824 = vmul.f32 %v788, %v794
        %v825 = vmul.f32 %v789, %v794
        %v826 = vmul.f32 %v790, %v794
        %v827 = vadd.f32 %v727, %v795
        %v828 = vadd.f32 %v728, %v796
        %v829 = vadd.f32 %v729, %v797
        %v830 = vadd.f32 %v730, %v798
        %v831 = vadd.f32 %v731, %v799
        %v832 = vadd.f32 %v732, %v800
        %v833 = vadd.f32 %v733, %v801
        %v834 = vadd.f32 %v734, %v802
        %v835 = vadd.f32 %v735, %v803
        %v836 = vadd.f32 %v736, %v804
        %v837 = vadd.f32 %v737, %v805
        %v838 = vadd.f32 %v738, %v806
        %v839 = vadd.f32 %v739, %v807
        %v840 = vadd.f32 %v740, %v808
        %v841 = vadd.f32 %v741, %v809
        %v842 = vadd.f32 %v742, %v810
        %v843 = vadd.f32 %v743, %v811
        %v844 = vadd.f32 %v744, %v812
        %v845 = vadd.f32 %v745, %v813
        %v846 = vadd.f32 %v746, %v814
        %v847 = vadd.f32 %v747, %v815
        %v848 = vadd.f32 %v748, %v816
        %v849 = vadd.f32 %v749, %v817
        %v850 = vadd.f32 %v750, %v818
        %v851 = vadd.f32 %v751, %v819
        %v852 = vadd.f32 %v752, %v820
        %v853 = vadd.f32 %v753, %v821
        %v854 = vadd.f32 %v754, %v822
        %v855 = vadd.f32 %v755, %v823
        %v856 = vadd.f32 %v756, %v824
        %v857 = vadd.f32 %v757, %v825
        %v858 = vadd.f32 %v758, %v826
        %v859 = vld [vmem:[#allocation2 + $0x9] sm:$0xff]
        %v860 = vld [vmem:[#allocation2 + $0x11] sm:$0xff]
        %v861 = vld [vmem:[#allocation2 + $0x29] sm:$0xff]
        %v862 = vld [vmem:[#allocation2 + $0x31] sm:$0xff]
        %v863 = vld [vmem:[#allocation2 + $0x49] sm:$0xff]
        %v864 = vld [vmem:[#allocation2 + $0x51] sm:$0xff]
        %v865 = vld [vmem:[#allocation2 + $0x69] sm:$0xff]
        %v866 = vld [vmem:[#allocation2 + $0x71] sm:$0xff]
        %v867 = vld [vmem:[#allocation2 + $0x89] sm:$0xff]
        %v868 = vld [vmem:[#allocation2 + $0x91] sm:$0xff]
        %v869 = vld [vmem:[#allocation2 + $0xa9] sm:$0xff]
        %v870 = vld [vmem:[#allocation2 + $0xb1] sm:$0xff]
        %v871 = vld [vmem:[#allocation2 + $0xc9] sm:$0xff]
        %v872 = vld [vmem:[#allocation2 + $0xd1] sm:$0xff]
        %v873 = vld [vmem:[#allocation2 + $0xe9] sm:$0xff]
        %v874 = vld [vmem:[#allocation2 + $0xf1] sm:$0xff]
        %v875 = vld [vmem:[#allocation2 + $0x109] sm:$0xff]
        %v876 = vld [vmem:[#allocation2 + $0x111] sm:$0xff]
        %v877 = vld [vmem:[#allocation2 + $0x129] sm:$0xff]
        %v878 = vld [vmem:[#allocation2 + $0x131] sm:$0xff]
        %v879 = vld [vmem:[#allocation2 + $0x149] sm:$0xff]
        %v880 = vld [vmem:[#allocation2 + $0x151] sm:$0xff]
        %v881 = vld [vmem:[#allocation2 + $0x169] sm:$0xff]
        %v882 = vld [vmem:[#allocation2 + $0x171] sm:$0xff]
        %v883 = vld [vmem:[#allocation2 + $0x189] sm:$0xff]
        %v884 = vld [vmem:[#allocation2 + $0x191] sm:$0xff]
        %v885 = vld [vmem:[#allocation2 + $0x1a9] sm:$0xff]
        %v886 = vld [vmem:[#allocation2 + $0x1b1] sm:$0xff]
        %v887 = vld [vmem:[#allocation2 + $0x1c9] sm:$0xff]
        %v888 = vld [vmem:[#allocation2 + $0x1d1] sm:$0xff]
        %v889 = vld [vmem:[#allocation2 + $0x1e9] sm:$0xff]
        %v890 = vld [vmem:[#allocation2 + $0x1f1] sm:$0xff]
        %v891 = vlaneseq
        %v892 = vshrl.u32 %v891, 7
        %v893 = vsub.s32 2, %v892
        %v894 = vrot.slane %v620, %v893
        %v895 = vmul.f32 %v859, %v894
        %v896 = vmul.f32 %v860, %v894
        %v897 = vmul.f32 %v861, %v894
        %v898 = vmul.f32 %v862, %v894
        %v899 = vmul.f32 %v863, %v894
        %v900 = vmul.f32 %v864, %v894
        %v901 = vmul.f32 %v865, %v894
        %v902 = vmul.f32 %v866, %v894
        %v903 = vmul.f32 %v867, %v894
        %v904 = vmul.f32 %v868, %v894
        %v905 = vmul.f32 %v869, %v894
        %v906 = vmul.f32 %v870, %v894
        %v907 = vmul.f32 %v871, %v894
        %v908 = vmul.f32 %v872, %v894
        %v909 = vmul.f32 %v873, %v894
        %v910 = vmul.f32 %v874, %v894
        %v911 = vmul.f32 %v875, %v894
        %v912 = vmul.f32 %v876, %v894
        %v913 = vmul.f32 %v877, %v894
        %v914 = vmul.f32 %v878, %v894
        %v915 = vmul.f32 %v879, %v894
        %v916 = vmul.f32 %v880, %v894
        %v917 = vmul.f32 %v881, %v894
        %v918 = vmul.f32 %v882, %v894
        %v919 = vmul.f32 %v883, %v894
        %v920 = vmul.f32 %v884, %v894
        %v921 = vmul.f32 %v885, %v894
        %v922 = vmul.f32 %v886, %v894
        %v923 = vmul.f32 %v887, %v894
        %v924 = vmul.f32 %v888, %v894
        %v925 = vmul.f32 %v889, %v894
        %v926 = vmul.f32 %v890, %v894
        %v927 = vadd.f32 %v827, %v895
        %v928 = vadd.f32 %v828, %v896
        %v929 = vadd.f32 %v829, %v897
        %v930 = vadd.f32 %v830, %v898
        %v931 = vadd.f32 %v831, %v899
        %v932 = vadd.f32 %v832, %v900
        %v933 = vadd.f32 %v833, %v901
        %v934 = vadd.f32 %v834, %v902
        %v935 = vadd.f32 %v835, %v903
        %v936 = vadd.f32 %v836, %v904
        %v937 = vadd.f32 %v837, %v905
        %v938 = vadd.f32 %v838, %v906
        %v939 = vadd.f32 %v839, %v907
        %v940 = vadd.f32 %v840, %v908
        %v941 = vadd.f32 %v841, %v909
        %v942 = vadd.f32 %v842, %v910
        %v943 = vadd.f32 %v843, %v911
        %v944 = vadd.f32 %v844, %v912
        %v945 = vadd.f32 %v845, %v913
        %v946 = vadd.f32 %v846, %v914
        %v947 = vadd.f32 %v847, %v915
        %v948 = vadd.f32 %v848, %v916
        %v949 = vadd.f32 %v849, %v917
        %v950 = vadd.f32 %v850, %v918
        %v951 = vadd.f32 %v851, %v919
        %v952 = vadd.f32 %v852, %v920
        %v953 = vadd.f32 %v853, %v921
        %v954 = vadd.f32 %v854, %v922
        %v955 = vadd.f32 %v855, %v923
        %v956 = vadd.f32 %v856, %v924
        %v957 = vadd.f32 %v857, %v925
        %v958 = vadd.f32 %v858, %v926
        %v959 = vld [vmem:[%s523 + $0x7] sm:$0xff]
        %v960 = vld [vmem:[%s523 + $0xf] sm:$0xff]
        %v961 = vld [vmem:[%s523 + $0x27] sm:$0xff]
        %v962 = vld [vmem:[%s523 + $0x2f] sm:$0xff]
        %v963 = vld [vmem:[%s523 + $0x47] sm:$0xff]
        %v964 = vld [vmem:[%s523 + $0x4f] sm:$0xff]
        %v965 = vld [vmem:[%s523 + $0x67] sm:$0xff]
        %v966 = vld [vmem:[%s523 + $0x6f] sm:$0xff]
        %v967 = vld [vmem:[%s523 + $0x87] sm:$0xff]
        %v968 = vld [vmem:[%s523 + $0x8f] sm:$0xff]
        %v969 = vld [vmem:[%s523 + $0xa7] sm:$0xff]
        %v970 = vld [vmem:[%s523 + $0xaf] sm:$0xff]
        %v971 = vld [vmem:[%s523 + $0xc7] sm:$0xff]
        %v972 = vld [vmem:[%s523 + $0xcf] sm:$0xff]
        %v973 = vld [vmem:[%s523 + $0xe7] sm:$0xff]
        %v974 = vld [vmem:[%s523 + $0xef] sm:$0xff]
        %v975 = vld [vmem:[%s523 + $0x107] sm:$0xff]
        %v976 = vld [vmem:[%s523 + $0x10f] sm:$0xff]
        %v977 = vld [vmem:[%s523 + $0x127] sm:$0xff]
        %v978 = vld [vmem:[%s523 + $0x12f] sm:$0xff]
        %v979 = vld [vmem:[%s523 + $0x147] sm:$0xff]
        %v980 = vld [vmem:[%s523 + $0x14f] sm:$0xff]
        %v981 = vld [vmem:[%s523 + $0x167] sm:$0xff]
        %v982 = vld [vmem:[%s523 + $0x16f] sm:$0xff]
        %v983 = vld [vmem:[%s523 + $0x187] sm:$0xff]
        %v984 = vld [vmem:[%s523 + $0x18f] sm:$0xff]
        %v985 = vld [vmem:[%s523 + $0x1a7] sm:$0xff]
        %v986 = vld [vmem:[%s523 + $0x1af] sm:$0xff]
        %v987 = vld [vmem:[%s523 + $0x1c7] sm:$0xff]
        %v988 = vld [vmem:[%s523 + $0x1cf] sm:$0xff]
        %v989 = vld [vmem:[%s523 + $0x1e7] sm:$0xff]
        %v990 = vld [vmem:[%s523 + $0x1ef] sm:$0xff]
        %v991 = vlaneseq
        %v992 = vshrl.u32 %v991, 7
        %v993 = vsub.s32 3, %v992
        %v994 = vrot.slane %v620, %v993
        %v995 = vmul.f32 %v959, %v994
        %v996 = vmul.f32 %v960, %v994
        %v997 = vmul.f32 %v961, %v994
        %v998 = vmul.f32 %v962, %v994
        %v999 = vmul.f32 %v963, %v994
        %v1000 = vmul.f32 %v964, %v994
        %v1001 = vmul.f32 %v965, %v994
        %v1002 = vmul.f32 %v966, %v994
        %v1003 = vmul.f32 %v967, %v994
        %v1004 = vmul.f32 %v968, %v994
        %v1005 = vmul.f32 %v969, %v994
        %v1006 = vmul.f32 %v970, %v994
        %v1007 = vmul.f32 %v971, %v994
        %v1008 = vmul.f32 %v972, %v994
        %v1009 = vmul.f32 %v973, %v994
        %v1010 = vmul.f32 %v974, %v994
        %v1011 = vmul.f32 %v975, %v994
        %v1012 = vmul.f32 %v976, %v994
        %v1013 = vmul.f32 %v977, %v994
        %v1014 = vmul.f32 %v978, %v994
        %v1015 = vmul.f32 %v979, %v994
        %v1016 = vmul.f32 %v980, %v994
        %v1017 = vmul.f32 %v981, %v994
        %v1018 = vmul.f32 %v982, %v994
        %v1019 = vmul.f32 %v983, %v994
        %v1020 = vmul.f32 %v984, %v994
        %v1021 = vmul.f32 %v985, %v994
        %v1022 = vmul.f32 %v986, %v994
        %v1023 = vmul.f32 %v987, %v994
        %v1024 = vmul.f32 %v988, %v994
        %v1025 = vmul.f32 %v989, %v994
        %v1026 = vmul.f32 %v990, %v994
        %v1027 = vadd.f32 %v927, %v995
        %v1028 = vadd.f32 %v928, %v996
        %v1029 = vadd.f32 %v929, %v997
        %v1030 = vadd.f32 %v930, %v998
        %v1031 = vadd.f32 %v931, %v999
        %v1032 = vadd.f32 %v932, %v1000
        %v1033 = vadd.f32 %v933, %v1001
        %v1034 = vadd.f32 %v934, %v1002
        %v1035 = vadd.f32 %v935, %v1003
        %v1036 = vadd.f32 %v936, %v1004
        %v1037 = vadd.f32 %v937, %v1005
        %v1038 = vadd.f32 %v938, %v1006
        %v1039 = vadd.f32 %v939, %v1007
        %v1040 = vadd.f32 %v940, %v1008
        %v1041 = vadd.f32 %v941, %v1009
        %v1042 = vadd.f32 %v942, %v1010
        %v1043 = vadd.f32 %v943, %v1011
        %v1044 = vadd.f32 %v944, %v1012
        %v1045 = vadd.f32 %v945, %v1013
        %v1046 = vadd.f32 %v946, %v1014
        %v1047 = vadd.f32 %v947, %v1015
        %v1048 = vadd.f32 %v948, %v1016
        %v1049 = vadd.f32 %v949, %v1017
        %v1050 = vadd.f32 %v950, %v1018
        %v1051 = vadd.f32 %v951, %v1019
        %v1052 = vadd.f32 %v952, %v1020
        %v1053 = vadd.f32 %v953, %v1021
        %v1054 = vadd.f32 %v954, %v1022
        %v1055 = vadd.f32 %v955, %v1023
        %v1056 = vadd.f32 %v956, %v1024
        %v1057 = vadd.f32 %v957, %v1025
        %v1058 = vadd.f32 %v958, %v1026
        %v1059 = vld [vmem:[%s523 + $0x9] sm:$0xff]
        %v1060 = vld [vmem:[%s523 + $0x11] sm:$0xff]
        %v1061 = vld [vmem:[%s523 + $0x29] sm:$0xff]
        %v1062 = vld [vmem:[%s523 + $0x31] sm:$0xff]
        %v1063 = vld [vmem:[%s523 + $0x49] sm:$0xff]
        %v1064 = vld [vmem:[%s523 + $0x51] sm:$0xff]
        %v1065 = vld [vmem:[%s523 + $0x69] sm:$0xff]
        %v1066 = vld [vmem:[%s523 + $0x71] sm:$0xff]
        %v1067 = vld [vmem:[%s523 + $0x89] sm:$0xff]
        %v1068 = vld [vmem:[%s523 + $0x91] sm:$0xff]
        %v1069 = vld [vmem:[%s523 + $0xa9] sm:$0xff]
        %v1070 = vld [vmem:[%s523 + $0xb1] sm:$0xff]
        %v1071 = vld [vmem:[%s523 + $0xc9] sm:$0xff]
        %v1072 = vld [vmem:[%s523 + $0xd1] sm:$0xff]
        %v1073 = vld [vmem:[%s523 + $0xe9] sm:$0xff]
        %v1074 = vld [vmem:[%s523 + $0xf1] sm:$0xff]
        %v1075 = vld [vmem:[%s523 + $0x109] sm:$0xff]
        %v1076 = vld [vmem:[%s523 + $0x111] sm:$0xff]
        %v1077 = vld [vmem:[%s523 + $0x129] sm:$0xff]
        %v1078 = vld [vmem:[%s523 + $0x131] sm:$0xff]
        %v1079 = vld [vmem:[%s523 + $0x149] sm:$0xff]
        %v1080 = vld [vmem:[%s523 + $0x151] sm:$0xff]
        %v1081 = vld [vmem:[%s523 + $0x169] sm:$0xff]
        %v1082 = vld [vmem:[%s523 + $0x171] sm:$0xff]
        %v1083 = vld [vmem:[%s523 + $0x189] sm:$0xff]
        %v1084 = vld [vmem:[%s523 + $0x191] sm:$0xff]
        %v1085 = vld [vmem:[%s523 + $0x1a9] sm:$0xff]
        %v1086 = vld [vmem:[%s523 + $0x1b1] sm:$0xff]
        %v1087 = vld [vmem:[%s523 + $0x1c9] sm:$0xff]
        %v1088 = vld [vmem:[%s523 + $0x1d1] sm:$0xff]
        %v1089 = vld [vmem:[%s523 + $0x1e9] sm:$0xff]
        %v1090 = vld [vmem:[%s523 + $0x1f1] sm:$0xff]
        %v1091 = vlaneseq
        %v1092 = vshrl.u32 %v1091, 7
        %v1093 = vsub.s32 5, %v1092
        %v1094 = vrot.slane %v620, %v1093
        %v1095 = vmul.f32 %v1059, %v1094
        %v1096 = vmul.f32 %v1060, %v1094
        %v1097 = vmul.f32 %v1061, %v1094
        %v1098 = vmul.f32 %v1062, %v1094
        %v1099 = vmul.f32 %v1063, %v1094
        %v1100 = vmul.f32 %v1064, %v1094
        %v1101 = vmul.f32 %v1065, %v1094
        %v1102 = vmul.f32 %v1066, %v1094
        %v1103 = vmul.f32 %v1067, %v1094
        %v1104 = vmul.f32 %v1068, %v1094
        %v1105 = vmul.f32 %v1069, %v1094
        %v1106 = vmul.f32 %v1070, %v1094
        %v1107 = vmul.f32 %v1071, %v1094
        %v1108 = vmul.f32 %v1072, %v1094
        %v1109 = vmul.f32 %v1073, %v1094
        %v1110 = vmul.f32 %v1074, %v1094
        %v1111 = vmul.f32 %v1075, %v1094
        %v1112 = vmul.f32 %v1076, %v1094
        %v1113 = vmul.f32 %v1077, %v1094
        %v1114 = vmul.f32 %v1078, %v1094
        %v1115 = vmul.f32 %v1079, %v1094
        %v1116 = vmul.f32 %v1080, %v1094
        %v1117 = vmul.f32 %v1081, %v1094
        %v1118 = vmul.f32 %v1082, %v1094
        %v1119 = vmul.f32 %v1083, %v1094
        %v1120 = vmul.f32 %v1084, %v1094
        %v1121 = vmul.f32 %v1085, %v1094
        %v1122 = vmul.f32 %v1086, %v1094
        %v1123 = vmul.f32 %v1087, %v1094
        %v1124 = vmul.f32 %v1088, %v1094
        %v1125 = vmul.f32 %v1089, %v1094
        %v1126 = vmul.f32 %v1090, %v1094
        %v1127 = vadd.f32 %v1027, %v1095
        %v1128 = vadd.f32 %v1028, %v1096
        %v1129 = vadd.f32 %v1029, %v1097
        %v1130 = vadd.f32 %v1030, %v1098
        %v1131 = vadd.f32 %v1031, %v1099
        %v1132 = vadd.f32 %v1032, %v1100
        %v1133 = vadd.f32 %v1033, %v1101
        %v1134 = vadd.f32 %v1034, %v1102
        %v1135 = vadd.f32 %v1035, %v1103
        %v1136 = vadd.f32 %v1036, %v1104
        %v1137 = vadd.f32 %v1037, %v1105
        %v1138 = vadd.f32 %v1038, %v1106
        %v1139 = vadd.f32 %v1039, %v1107
        %v1140 = vadd.f32 %v1040, %v1108
        %v1141 = vadd.f32 %v1041, %v1109
        %v1142 = vadd.f32 %v1042, %v1110
        %v1143 = vadd.f32 %v1043, %v1111
        %v1144 = vadd.f32 %v1044, %v1112
        %v1145 = vadd.f32 %v1045, %v1113
        %v1146 = vadd.f32 %v1046, %v1114
        %v1147 = vadd.f32 %v1047, %v1115
        %v1148 = vadd.f32 %v1048, %v1116
        %v1149 = vadd.f32 %v1049, %v1117
        %v1150 = vadd.f32 %v1050, %v1118
        %v1151 = vadd.f32 %v1051, %v1119
        %v1152 = vadd.f32 %v1052, %v1120
        %v1153 = vadd.f32 %v1053, %v1121
        %v1154 = vadd.f32 %v1054, %v1122
        %v1155 = vadd.f32 %v1055, %v1123
        %v1156 = vadd.f32 %v1056, %v1124
        %v1157 = vadd.f32 %v1057, %v1125
        %v1158 = vadd.f32 %v1058, %v1126
        %s1159 = scalar_lea.vmem [#allocation2], 64
        %v1160 = vld [vmem:[%s1159 + $0x7] sm:$0xff]
        %v1161 = vld [vmem:[%s1159 + $0xf] sm:$0xff]
        %v1162 = vld [vmem:[%s1159 + $0x27] sm:$0xff]
        %v1163 = vld [vmem:[%s1159 + $0x2f] sm:$0xff]
        %v1164 = vld [vmem:[%s1159 + $0x47] sm:$0xff]
        %v1165 = vld [vmem:[%s1159 + $0x4f] sm:$0xff]
        %v1166 = vld [vmem:[%s1159 + $0x67] sm:$0xff]
        %v1167 = vld [vmem:[%s1159 + $0x6f] sm:$0xff]
        %v1168 = vld [vmem:[%s1159 + $0x87] sm:$0xff]
        %v1169 = vld [vmem:[%s1159 + $0x8f] sm:$0xff]
        %v1170 = vld [vmem:[%s1159 + $0xa7] sm:$0xff]
        %v1171 = vld [vmem:[%s1159 + $0xaf] sm:$0xff]
        %v1172 = vld [vmem:[%s1159 + $0xc7] sm:$0xff]
        %v1173 = vld [vmem:[%s1159 + $0xcf] sm:$0xff]
        %v1174 = vld [vmem:[%s1159 + $0xe7] sm:$0xff]
        %v1175 = vld [vmem:[%s1159 + $0xef] sm:$0xff]
        %v1176 = vld [vmem:[%s1159 + $0x107] sm:$0xff]
        %v1177 = vld [vmem:[%s1159 + $0x10f] sm:$0xff]
        %v1178 = vld [vmem:[%s1159 + $0x127] sm:$0xff]
        %v1179 = vld [vmem:[%s1159 + $0x12f] sm:$0xff]
        %v1180 = vld [vmem:[%s1159 + $0x147] sm:$0xff]
        %v1181 = vld [vmem:[%s1159 + $0x14f] sm:$0xff]
        %v1182 = vld [vmem:[%s1159 + $0x167] sm:$0xff]
        %v1183 = vld [vmem:[%s1159 + $0x16f] sm:$0xff]
        %v1184 = vld [vmem:[%s1159 + $0x187] sm:$0xff]
        %v1185 = vld [vmem:[%s1159 + $0x18f] sm:$0xff]
        %v1186 = vld [vmem:[%s1159 + $0x1a7] sm:$0xff]
        %v1187 = vld [vmem:[%s1159 + $0x1af] sm:$0xff]
        %v1188 = vld [vmem:[%s1159 + $0x1c7] sm:$0xff]
        %v1189 = vld [vmem:[%s1159 + $0x1cf] sm:$0xff]
        %v1190 = vld [vmem:[%s1159 + $0x1e7] sm:$0xff]
        %v1191 = vld [vmem:[%s1159 + $0x1ef] sm:$0xff]
        %v1192 = vlaneseq
        %v1193 = vshrl.u32 %v1192, 7
        %v1194 = vsub.s32 6, %v1193
        %v1195 = vrot.slane %v620, %v1194
        %v1196 = vmul.f32 %v1160, %v1195
        %v1197 = vmul.f32 %v1161, %v1195
        %v1198 = vmul.f32 %v1162, %v1195
        %v1199 = vmul.f32 %v1163, %v1195
        %v1200 = vmul.f32 %v1164, %v1195
        %v1201 = vmul.f32 %v1165, %v1195
        %v1202 = vmul.f32 %v1166, %v1195
        %v1203 = vmul.f32 %v1167, %v1195
        %v1204 = vmul.f32 %v1168, %v1195
        %v1205 = vmul.f32 %v1169, %v1195
        %v1206 = vmul.f32 %v1170, %v1195
        %v1207 = vmul.f32 %v1171, %v1195
        %v1208 = vmul.f32 %v1172, %v1195
        %v1209 = vmul.f32 %v1173, %v1195
        %v1210 = vmul.f32 %v1174, %v1195
        %v1211 = vmul.f32 %v1175, %v1195
        %v1212 = vmul.f32 %v1176, %v1195
        %v1213 = vmul.f32 %v1177, %v1195
        %v1214 = vmul.f32 %v1178, %v1195
        %v1215 = vmul.f32 %v1179, %v1195
        %v1216 = vmul.f32 %v1180, %v1195
        %v1217 = vmul.f32 %v1181, %v1195
        %v1218 = vmul.f32 %v1182, %v1195
        %v1219 = vmul.f32 %v1183, %v1195
        %v1220 = vmul.f32 %v1184, %v1195
        %v1221 = vmul.f32 %v1185, %v1195
        %v1222 = vmul.f32 %v1186, %v1195
        %v1223 = vmul.f32 %v1187, %v1195
        %v1224 = vmul.f32 %v1188, %v1195
        %v1225 = vmul.f32 %v1189, %v1195
        %v1226 = vmul.f32 %v1190, %v1195
        %v1227 = vmul.f32 %v1191, %v1195
        %v1228 = vadd.f32 %v1127, %v1196
        %v1229 = vadd.f32 %v1128, %v1197
        %v1230 = vadd.f32 %v1129, %v1198
        %v1231 = vadd.f32 %v1130, %v1199
        %v1232 = vadd.f32 %v1131, %v1200
        %v1233 = vadd.f32 %v1132, %v1201
        %v1234 = vadd.f32 %v1133, %v1202
        %v1235 = vadd.f32 %v1134, %v1203
        %v1236 = vadd.f32 %v1135, %v1204
        %v1237 = vadd.f32 %v1136, %v1205
        %v1238 = vadd.f32 %v1137, %v1206
        %v1239 = vadd.f32 %v1138, %v1207
        %v1240 = vadd.f32 %v1139, %v1208
        %v1241 = vadd.f32 %v1140, %v1209
        %v1242 = vadd.f32 %v1141, %v1210
        %v1243 = vadd.f32 %v1142, %v1211
        %v1244 = vadd.f32 %v1143, %v1212
        %v1245 = vadd.f32 %v1144, %v1213
        %v1246 = vadd.f32 %v1145, %v1214
        %v1247 = vadd.f32 %v1146, %v1215
        %v1248 = vadd.f32 %v1147, %v1216
        %v1249 = vadd.f32 %v1148, %v1217
        %v1250 = vadd.f32 %v1149, %v1218
        %v1251 = vadd.f32 %v1150, %v1219
        %v1252 = vadd.f32 %v1151, %v1220
        %v1253 = vadd.f32 %v1152, %v1221
        %v1254 = vadd.f32 %v1153, %v1222
        %v1255 = vadd.f32 %v1154, %v1223
        %v1256 = vadd.f32 %v1155, %v1224
        %v1257 = vadd.f32 %v1156, %v1225
        %v1258 = vadd.f32 %v1157, %v1226
        %v1259 = vadd.f32 %v1158, %v1227
        %v1260 = vld [vmem:[%s1159 + $0x8] sm:$0xff]
        %v1261 = vld [vmem:[%s1159 + $0x10] sm:$0xff]
        %v1262 = vld [vmem:[%s1159 + $0x28] sm:$0xff]
        %v1263 = vld [vmem:[%s1159 + $0x30] sm:$0xff]
        %v1264 = vld [vmem:[%s1159 + $0x48] sm:$0xff]
        %v1265 = vld [vmem:[%s1159 + $0x50] sm:$0xff]
        %v1266 = vld [vmem:[%s1159 + $0x68] sm:$0xff]
        %v1267 = vld [vmem:[%s1159 + $0x70] sm:$0xff]
        %v1268 = vld [vmem:[%s1159 + $0x88] sm:$0xff]
        %v1269 = vld [vmem:[%s1159 + $0x90] sm:$0xff]
        %v1270 = vld [vmem:[%s1159 + $0xa8] sm:$0xff]
        %v1271 = vld [vmem:[%s1159 + $0xb0] sm:$0xff]
        %v1272 = vld [vmem:[%s1159 + $0xc8] sm:$0xff]
        %v1273 = vld [vmem:[%s1159 + $0xd0] sm:$0xff]
        %v1274 = vld [vmem:[%s1159 + $0xe8] sm:$0xff]
        %v1275 = vld [vmem:[%s1159 + $0xf0] sm:$0xff]
        %v1276 = vld [vmem:[%s1159 + $0x108] sm:$0xff]
        %v1277 = vld [vmem:[%s1159 + $0x110] sm:$0xff]
        %v1278 = vld [vmem:[%s1159 + $0x128] sm:$0xff]
        %v1279 = vld [vmem:[%s1159 + $0x130] sm:$0xff]
        %v1280 = vld [vmem:[%s1159 + $0x148] sm:$0xff]
        %v1281 = vld [vmem:[%s1159 + $0x150] sm:$0xff]
        %v1282 = vld [vmem:[%s1159 + $0x168] sm:$0xff]
        %v1283 = vld [vmem:[%s1159 + $0x170] sm:$0xff]
        %v1284 = vld [vmem:[%s1159 + $0x188] sm:$0xff]
        %v1285 = vld [vmem:[%s1159 + $0x190] sm:$0xff]
        %v1286 = vld [vmem:[%s1159 + $0x1a8] sm:$0xff]
        %v1287 = vld [vmem:[%s1159 + $0x1b0] sm:$0xff]
        %v1288 = vld [vmem:[%s1159 + $0x1c8] sm:$0xff]
        %v1289 = vld [vmem:[%s1159 + $0x1d0] sm:$0xff]
        %v1290 = vld [vmem:[%s1159 + $0x1e8] sm:$0xff]
        %v1291 = vld [vmem:[%s1159 + $0x1f0] sm:$0xff]
        %v1292 = vlaneseq
        %v1293 = vshrl.u32 %v1292, 7
        %v1294 = vsub.s32 7, %v1293
        %v1295 = vrot.slane %v620, %v1294
        %v1296 = vmul.f32 %v1260, %v1295
        %v1297 = vmul.f32 %v1261, %v1295
        %v1298 = vmul.f32 %v1262, %v1295
        %v1299 = vmul.f32 %v1263, %v1295
        %v1300 = vmul.f32 %v1264, %v1295
        %v1301 = vmul.f32 %v1265, %v1295
        %v1302 = vmul.f32 %v1266, %v1295
        %v1303 = vmul.f32 %v1267, %v1295
        %v1304 = vmul.f32 %v1268, %v1295
        %v1305 = vmul.f32 %v1269, %v1295
        %v1306 = vmul.f32 %v1270, %v1295
        %v1307 = vmul.f32 %v1271, %v1295
        %v1308 = vmul.f32 %v1272, %v1295
        %v1309 = vmul.f32 %v1273, %v1295
        %v1310 = vmul.f32 %v1274, %v1295
        %v1311 = vmul.f32 %v1275, %v1295
        %v1312 = vmul.f32 %v1276, %v1295
        %v1313 = vmul.f32 %v1277, %v1295
        %v1314 = vmul.f32 %v1278, %v1295
        %v1315 = vmul.f32 %v1279, %v1295
        %v1316 = vmul.f32 %v1280, %v1295
        %v1317 = vmul.f32 %v1281, %v1295
        %v1318 = vmul.f32 %v1282, %v1295
        %v1319 = vmul.f32 %v1283, %v1295
        %v1320 = vmul.f32 %v1284, %v1295
        %v1321 = vmul.f32 %v1285, %v1295
        %v1322 = vmul.f32 %v1286, %v1295
        %v1323 = vmul.f32 %v1287, %v1295
        %v1324 = vmul.f32 %v1288, %v1295
        %v1325 = vmul.f32 %v1289, %v1295
        %v1326 = vmul.f32 %v1290, %v1295
        %v1327 = vmul.f32 %v1291, %v1295
        %v1328 = vadd.f32 %v1228, %v1296
        %v1329 = vadd.f32 %v1229, %v1297
        %v1330 = vadd.f32 %v1230, %v1298
        %v1331 = vadd.f32 %v1231, %v1299
        %v1332 = vadd.f32 %v1232, %v1300
        %v1333 = vadd.f32 %v1233, %v1301
        %v1334 = vadd.f32 %v1234, %v1302
        %v1335 = vadd.f32 %v1235, %v1303
        %v1336 = vadd.f32 %v1236, %v1304
        %v1337 = vadd.f32 %v1237, %v1305
        %v1338 = vadd.f32 %v1238, %v1306
        %v1339 = vadd.f32 %v1239, %v1307
        %v1340 = vadd.f32 %v1240, %v1308
        %v1341 = vadd.f32 %v1241, %v1309
        %v1342 = vadd.f32 %v1242, %v1310
        %v1343 = vadd.f32 %v1243, %v1311
        %v1344 = vadd.f32 %v1244, %v1312
        %v1345 = vadd.f32 %v1245, %v1313
        %v1346 = vadd.f32 %v1246, %v1314
        %v1347 = vadd.f32 %v1247, %v1315
        %v1348 = vadd.f32 %v1248, %v1316
        %v1349 = vadd.f32 %v1249, %v1317
        %v1350 = vadd.f32 %v1250, %v1318
        %v1351 = vadd.f32 %v1251, %v1319
        %v1352 = vadd.f32 %v1252, %v1320
        %v1353 = vadd.f32 %v1253, %v1321
        %v1354 = vadd.f32 %v1254, %v1322
        %v1355 = vadd.f32 %v1255, %v1323
        %v1356 = vadd.f32 %v1256, %v1324
        %v1357 = vadd.f32 %v1257, %v1325
        %v1358 = vadd.f32 %v1258, %v1326
        %v1359 = vadd.f32 %v1259, %v1327
        %v1360 = vld [vmem:[%s1159 + $0x9] sm:$0xff]
        %v1361 = vld [vmem:[%s1159 + $0x11] sm:$0xff]
        %v1362 = vld [vmem:[%s1159 + $0x29] sm:$0xff]
        %v1363 = vld [vmem:[%s1159 + $0x31] sm:$0xff]
        %v1364 = vld [vmem:[%s1159 + $0x49] sm:$0xff]
        %v1365 = vld [vmem:[%s1159 + $0x51] sm:$0xff]
        %v1366 = vld [vmem:[%s1159 + $0x69] sm:$0xff]
        %v1367 = vld [vmem:[%s1159 + $0x71] sm:$0xff]
        %v1368 = vld [vmem:[%s1159 + $0x89] sm:$0xff]
        %v1369 = vld [vmem:[%s1159 + $0x91] sm:$0xff]
        %v1370 = vld [vmem:[%s1159 + $0xa9] sm:$0xff]
        %v1371 = vld [vmem:[%s1159 + $0xb1] sm:$0xff]
        %v1372 = vld [vmem:[%s1159 + $0xc9] sm:$0xff]
        %v1373 = vld [vmem:[%s1159 + $0xd1] sm:$0xff]
        %v1374 = vld [vmem:[%s1159 + $0xe9] sm:$0xff]
        %v1375 = vld [vmem:[%s1159 + $0xf1] sm:$0xff]
        %v1376 = vld [vmem:[%s1159 + $0x109] sm:$0xff]
        %v1377 = vld [vmem:[%s1159 + $0x111] sm:$0xff]
        %v1378 = vld [vmem:[%s1159 + $0x129] sm:$0xff]
        %v1379 = vld [vmem:[%s1159 + $0x131] sm:$0xff]
        %v1380 = vld [vmem:[%s1159 + $0x149] sm:$0xff]
        %v1381 = vld [vmem:[%s1159 + $0x151] sm:$0xff]
        %v1382 = vld [vmem:[%s1159 + $0x169] sm:$0xff]
        %v1383 = vld [vmem:[%s1159 + $0x171] sm:$0xff]
        %v1384 = vld [vmem:[%s1159 + $0x189] sm:$0xff]
        %v1385 = vld [vmem:[%s1159 + $0x191] sm:$0xff]
        %v1386 = vld [vmem:[%s1159 + $0x1a9] sm:$0xff]
        %v1387 = vld [vmem:[%s1159 + $0x1b1] sm:$0xff]
        %v1388 = vld [vmem:[%s1159 + $0x1c9] sm:$0xff]
        %v1389 = vld [vmem:[%s1159 + $0x1d1] sm:$0xff]
        %v1390 = vld [vmem:[%s1159 + $0x1e9] sm:$0xff]
        %v1391 = vld [vmem:[%s1159 + $0x1f1] sm:$0xff]
        %v1392 = vlaneseq
        %v1393 = vshrl.u32 %v1392, 7
        %v1394 = vsub.s32 0, %v1393
        %v1395 = vrot.slane %v621, %v1394
        %v1396 = vmul.f32 %v1360, %v1395
        %v1397 = vmul.f32 %v1361, %v1395
        %v1398 = vmul.f32 %v1362, %v1395
        %v1399 = vmul.f32 %v1363, %v1395
        %v1400 = vmul.f32 %v1364, %v1395
        %v1401 = vmul.f32 %v1365, %v1395
        %v1402 = vmul.f32 %v1366, %v1395
        %v1403 = vmul.f32 %v1367, %v1395
        %v1404 = vmul.f32 %v1368, %v1395
        %v1405 = vmul.f32 %v1369, %v1395
        %v1406 = vmul.f32 %v1370, %v1395
        %v1407 = vmul.f32 %v1371, %v1395
        %v1408 = vmul.f32 %v1372, %v1395
        %v1409 = vmul.f32 %v1373, %v1395
        %v1410 = vmul.f32 %v1374, %v1395
        %v1411 = vmul.f32 %v1375, %v1395
        %v1412 = vmul.f32 %v1376, %v1395
        %v1413 = vmul.f32 %v1377, %v1395
        %v1414 = vmul.f32 %v1378, %v1395
        %v1415 = vmul.f32 %v1379, %v1395
        %v1416 = vmul.f32 %v1380, %v1395
        %v1417 = vmul.f32 %v1381, %v1395
        %v1418 = vmul.f32 %v1382, %v1395
        %v1419 = vmul.f32 %v1383, %v1395
        %v1420 = vmul.f32 %v1384, %v1395
        %v1421 = vmul.f32 %v1385, %v1395
        %v1422 = vmul.f32 %v1386, %v1395
        %v1423 = vmul.f32 %v1387, %v1395
        %v1424 = vmul.f32 %v1388, %v1395
        %v1425 = vmul.f32 %v1389, %v1395
        %v1426 = vmul.f32 %v1390, %v1395
        %v1427 = vmul.f32 %v1391, %v1395
        %v1428 = vadd.f32 %v1328, %v1396
        %v1429 = vadd.f32 %v1329, %v1397
        %v1430 = vadd.f32 %v1330, %v1398
        %v1431 = vadd.f32 %v1331, %v1399
        %v1432 = vadd.f32 %v1332, %v1400
        %v1433 = vadd.f32 %v1333, %v1401
        %v1434 = vadd.f32 %v1334, %v1402
        %v1435 = vadd.f32 %v1335, %v1403
        %v1436 = vadd.f32 %v1336, %v1404
        %v1437 = vadd.f32 %v1337, %v1405
        %v1438 = vadd.f32 %v1338, %v1406
        %v1439 = vadd.f32 %v1339, %v1407
        %v1440 = vadd.f32 %v1340, %v1408
        %v1441 = vadd.f32 %v1341, %v1409
        %v1442 = vadd.f32 %v1342, %v1410
        %v1443 = vadd.f32 %v1343, %v1411
        %v1444 = vadd.f32 %v1344, %v1412
        %v1445 = vadd.f32 %v1345, %v1413
        %v1446 = vadd.f32 %v1346, %v1414
        %v1447 = vadd.f32 %v1347, %v1415
        %v1448 = vadd.f32 %v1348, %v1416
        %v1449 = vadd.f32 %v1349, %v1417
        %v1450 = vadd.f32 %v1350, %v1418
        %v1451 = vadd.f32 %v1351, %v1419
        %v1452 = vadd.f32 %v1352, %v1420
        %v1453 = vadd.f32 %v1353, %v1421
        %v1454 = vadd.f32 %v1354, %v1422
        %v1455 = vadd.f32 %v1355, %v1423
        %v1456 = vadd.f32 %v1356, %v1424
        %v1457 = vadd.f32 %v1357, %v1425
        %v1458 = vadd.f32 %v1358, %v1426
        %v1459 = vadd.f32 %v1359, %v1427
        %v1461 = vlaneseq
        %v1462 = vshrl.u32 %v1461, 7
        %v1463 = vsub.s32 0, %v1462
        %v1464 = vrot.slane %v622, %v1463
        %v1466 = vadd.f32 %v1428, %v1464
        %v1467 = vadd.f32 %v1429, %v1464
        %v1468 = vadd.f32 %v1430, %v1464
        %v1469 = vadd.f32 %v1431, %v1464
        %v1470 = vadd.f32 %v1432, %v1464
        %v1471 = vadd.f32 %v1433, %v1464
        %v1472 = vadd.f32 %v1434, %v1464
        %v1473 = vadd.f32 %v1435, %v1464
        %v1474 = vadd.f32 %v1436, %v1464
        %v1475 = vadd.f32 %v1437, %v1464
        %v1476 = vadd.f32 %v1438, %v1464
        %v1477 = vadd.f32 %v1439, %v1464
        %v1478 = vadd.f32 %v1440, %v1464
        %v1479 = vadd.f32 %v1441, %v1464
        %v1480 = vadd.f32 %v1442, %v1464
        %v1481 = vadd.f32 %v1443, %v1464
        %v1482 = vadd.f32 %v1444, %v1464
        %v1483 = vadd.f32 %v1445, %v1464
        %v1484 = vadd.f32 %v1446, %v1464
        %v1485 = vadd.f32 %v1447, %v1464
        %v1486 = vadd.f32 %v1448, %v1464
        %v1487 = vadd.f32 %v1449, %v1464
        %v1488 = vadd.f32 %v1450, %v1464
        %v1489 = vadd.f32 %v1451, %v1464
        %v1490 = vadd.f32 %v1452, %v1464
        %v1491 = vadd.f32 %v1453, %v1464
        %v1492 = vadd.f32 %v1454, %v1464
        %v1493 = vadd.f32 %v1455, %v1464
        %v1494 = vadd.f32 %v1456, %v1464
        %v1495 = vadd.f32 %v1457, %v1464
        %v1496 = vadd.f32 %v1458, %v1464
        %v1497 = vadd.f32 %v1459, %v1464
        %v1498 = vxor.u32 %v1466, 2147483648
        %v1499 = vxor.u32 %v1467, 2147483648
        %v1500 = vxor.u32 %v1468, 2147483648
        %v1501 = vxor.u32 %v1469, 2147483648
        %v1502 = vxor.u32 %v1470, 2147483648
        %v1503 = vxor.u32 %v1471, 2147483648
        %v1504 = vxor.u32 %v1472, 2147483648
        %v1505 = vxor.u32 %v1473, 2147483648
        %v1506 = vxor.u32 %v1474, 2147483648
        %v1507 = vxor.u32 %v1475, 2147483648
        %v1508 = vxor.u32 %v1476, 2147483648
        %v1509 = vxor.u32 %v1477, 2147483648
        %v1510 = vxor.u32 %v1478, 2147483648
        %v1511 = vxor.u32 %v1479, 2147483648
        %v1512 = vxor.u32 %v1480, 2147483648
        %v1513 = vxor.u32 %v1481, 2147483648
        %v1514 = vxor.u32 %v1482, 2147483648
        %v1515 = vxor.u32 %v1483, 2147483648
        %v1516 = vxor.u32 %v1484, 2147483648
        %v1517 = vxor.u32 %v1485, 2147483648
        %v1518 = vxor.u32 %v1486, 2147483648
        %v1519 = vxor.u32 %v1487, 2147483648
        %v1520 = vxor.u32 %v1488, 2147483648
        %v1521 = vxor.u32 %v1489, 2147483648
        %v1522 = vxor.u32 %v1490, 2147483648
        %v1523 = vxor.u32 %v1491, 2147483648
        %v1524 = vxor.u32 %v1492, 2147483648
        %v1525 = vxor.u32 %v1493, 2147483648
        %v1526 = vxor.u32 %v1494, 2147483648
        %v1527 = vxor.u32 %v1495, 2147483648
        %v1528 = vxor.u32 %v1496, 2147483648
        %v1529 = vxor.u32 %v1497, 2147483648
        %v1530 = vmul.f32 %v1498, 1.442695
        %v1531 = vpow.pop %v1530
        %v1532 = vmul.f32 %v1499, 1.442695
        %v1533 = vpow.pop %v1532
        %v1534 = vmul.f32 %v1500, 1.442695
        %v1535 = vpow.pop %v1534
        %v1536 = vmul.f32 %v1501, 1.442695
        %v1537 = vpow.pop %v1536
        %v1538 = vmul.f32 %v1502, 1.442695
        %v1539 = vpow.pop %v1538
        %v1540 = vmul.f32 %v1503, 1.442695
        %v1541 = vpow.pop %v1540
        %v1542 = vmul.f32 %v1504, 1.442695
        %v1543 = vpow.pop %v1542
        %v1544 = vmul.f32 %v1505, 1.442695
        %v1545 = vpow.pop %v1544
        %v1546 = vmul.f32 %v1506, 1.442695
        %v1547 = vpow.pop %v1546
        %v1548 = vmul.f32 %v1507, 1.442695
        %v1549 = vpow.pop %v1548
        %v1550 = vmul.f32 %v1508, 1.442695
        %v1551 = vpow.pop %v1550
        %v1552 = vmul.f32 %v1509, 1.442695
        %v1553 = vpow.pop %v1552
        %v1554 = vmul.f32 %v1510, 1.442695
        %v1555 = vpow.pop %v1554
        %v1556 = vmul.f32 %v1511, 1.442695
        %v1557 = vpow.pop %v1556
        %v1558 = vmul.f32 %v1512, 1.442695
        %v1559 = vpow.pop %v1558
        %v1560 = vmul.f32 %v1513, 1.442695
        %v1561 = vpow.pop %v1560
        %v1562 = vmul.f32 %v1514, 1.442695
        %v1563 = vpow.pop %v1562
        %v1564 = vmul.f32 %v1515, 1.442695
        %v1565 = vpow.pop %v1564
        %v1566 = vmul.f32 %v1516, 1.442695
        %v1567 = vpow.pop %v1566
        %v1568 = vmul.f32 %v1517, 1.442695
        %v1569 = vpow.pop %v1568
        %v1570 = vmul.f32 %v1518, 1.442695
        %v1571 = vpow.pop %v1570
        %v1572 = vmul.f32 %v1519, 1.442695
        %v1573 = vpow.pop %v1572
        %v1574 = vmul.f32 %v1520, 1.442695
        %v1575 = vpow.pop %v1574
        %v1576 = vmul.f32 %v1521, 1.442695
        %v1577 = vpow.pop %v1576
        %v1578 = vmul.f32 %v1522, 1.442695
        %v1579 = vpow.pop %v1578
        %v1580 = vmul.f32 %v1523, 1.442695
        %v1581 = vpow.pop %v1580
        %v1582 = vmul.f32 %v1524, 1.442695
        %v1583 = vpow.pop %v1582
        %v1584 = vmul.f32 %v1525, 1.442695
        %v1585 = vpow.pop %v1584
        %v1586 = vmul.f32 %v1526, 1.442695
        %v1587 = vpow.pop %v1586
        %v1588 = vmul.f32 %v1527, 1.442695
        %v1589 = vpow.pop %v1588
        %v1590 = vmul.f32 %v1528, 1.442695
        %v1591 = vpow.pop %v1590
        %v1592 = vmul.f32 %v1529, 1.442695
        %v1593 = vpow.pop %v1592
        %v1594 = vadd.f32 %v1531, 1.0
        %v1595 = vadd.f32 %v1533, 1.0
        %v1596 = vadd.f32 %v1535, 1.0
        %v1597 = vadd.f32 %v1537, 1.0
        %v1598 = vadd.f32 %v1539, 1.0
        %v1599 = vadd.f32 %v1541, 1.0
        %v1600 = vadd.f32 %v1543, 1.0
        %v1601 = vadd.f32 %v1545, 1.0
        %v1602 = vadd.f32 %v1547, 1.0
        %v1603 = vadd.f32 %v1549, 1.0
        %v1604 = vadd.f32 %v1551, 1.0
        %v1605 = vadd.f32 %v1553, 1.0
        %v1606 = vadd.f32 %v1555, 1.0
        %v1607 = vadd.f32 %v1557, 1.0
        %v1608 = vadd.f32 %v1559, 1.0
        %v1609 = vadd.f32 %v1561, 1.0
        %v1610 = vadd.f32 %v1563, 1.0
        %v1611 = vadd.f32 %v1565, 1.0
        %v1612 = vadd.f32 %v1567, 1.0
        %v1613 = vadd.f32 %v1569, 1.0
        %v1614 = vadd.f32 %v1571, 1.0
        %v1615 = vadd.f32 %v1573, 1.0
        %v1616 = vadd.f32 %v1575, 1.0
        %v1617 = vadd.f32 %v1577, 1.0
        %v1618 = vadd.f32 %v1579, 1.0
        %v1619 = vadd.f32 %v1581, 1.0
        %v1620 = vadd.f32 %v1583, 1.0
        %v1621 = vadd.f32 %v1585, 1.0
        %v1622 = vadd.f32 %v1587, 1.0
        %v1623 = vadd.f32 %v1589, 1.0
        %v1624 = vadd.f32 %v1591, 1.0
        %v1625 = vadd.f32 %v1593, 1.0
        %v1626 = vrcp.pop %v1594
        %v1627 = vmul.f32 1.0, %v1626
        %v1628 = vrcp.pop %v1595
        %v1629 = vmul.f32 1.0, %v1628
        %v1630 = vrcp.pop %v1596
        %v1631 = vmul.f32 1.0, %v1630
        %v1632 = vrcp.pop %v1597
        %v1633 = vmul.f32 1.0, %v1632
        %v1634 = vrcp.pop %v1598
        %v1635 = vmul.f32 1.0, %v1634
        %v1636 = vrcp.pop %v1599
        %v1637 = vmul.f32 1.0, %v1636
        %v1638 = vrcp.pop %v1600
        %v1639 = vmul.f32 1.0, %v1638
        %v1640 = vrcp.pop %v1601
        %v1641 = vmul.f32 1.0, %v1640
        %v1642 = vrcp.pop %v1602
        %v1643 = vmul.f32 1.0, %v1642
        %v1644 = vrcp.pop %v1603
        %v1645 = vmul.f32 1.0, %v1644
        %v1646 = vrcp.pop %v1604
        %v1647 = vmul.f32 1.0, %v1646
        %v1648 = vrcp.pop %v1605
        %v1649 = vmul.f32 1.0, %v1648
        %v1650 = vrcp.pop %v1606
        %v1651 = vmul.f32 1.0, %v1650
        %v1652 = vrcp.pop %v1607
        %v1653 = vmul.f32 1.0, %v1652
        %v1654 = vrcp.pop %v1608
        %v1655 = vmul.f32 1.0, %v1654
        %v1656 = vrcp.pop %v1609
        %v1657 = vmul.f32 1.0, %v1656
        %v1658 = vrcp.pop %v1610
        %v1659 = vmul.f32 1.0, %v1658
        %v1660 = vrcp.pop %v1611
        %v1661 = vmul.f32 1.0, %v1660
        %v1662 = vrcp.pop %v1612
        %v1663 = vmul.f32 1.0, %v1662
        %v1664 = vrcp.pop %v1613
        %v1665 = vmul.f32 1.0, %v1664
        %v1666 = vrcp.pop %v1614
        %v1667 = vmul.f32 1.0, %v1666
        %v1668 = vrcp.pop %v1615
        %v1669 = vmul.f32 1.0, %v1668
        %v1670 = vrcp.pop %v1616
        %v1671 = vmul.f32 1.0, %v1670
        %v1672 = vrcp.pop %v1617
        %v1673 = vmul.f32 1.0, %v1672
        %v1674 = vrcp.pop %v1618
        %v1675 = vmul.f32 1.0, %v1674
        %v1676 = vrcp.pop %v1619
        %v1677 = vmul.f32 1.0, %v1676
        %v1678 = vrcp.pop %v1620
        %v1679 = vmul.f32 1.0, %v1678
        %v1680 = vrcp.pop %v1621
        %v1681 = vmul.f32 1.0, %v1680
        %v1682 = vrcp.pop %v1622
        %v1683 = vmul.f32 1.0, %v1682
        %v1684 = vrcp.pop %v1623
        %v1685 = vmul.f32 1.0, %v1684
        %v1686 = vrcp.pop %v1624
        %v1687 = vmul.f32 1.0, %v1686
        %v1688 = vrcp.pop %v1625
        %v1689 = vmul.f32 1.0, %v1688
        %v1690 = vmul.f32 %v1466, %v1627
        %v1691 = vmul.f32 %v1467, %v1629
        %v1692 = vmul.f32 %v1468, %v1631
        %v1693 = vmul.f32 %v1469, %v1633
        %v1694 = vmul.f32 %v1470, %v1635
        %v1695 = vmul.f32 %v1471, %v1637
        %v1696 = vmul.f32 %v1472, %v1639
        %v1697 = vmul.f32 %v1473, %v1641
        %v1698 = vmul.f32 %v1474, %v1643
        %v1699 = vmul.f32 %v1475, %v1645
        %v1700 = vmul.f32 %v1476, %v1647
        %v1701 = vmul.f32 %v1477, %v1649
        %v1702 = vmul.f32 %v1478, %v1651
        %v1703 = vmul.f32 %v1479, %v1653
        %v1704 = vmul.f32 %v1480, %v1655
        %v1705 = vmul.f32 %v1481, %v1657
        %v1706 = vmul.f32 %v1482, %v1659
        %v1707 = vmul.f32 %v1483, %v1661
        %v1708 = vmul.f32 %v1484, %v1663
        %v1709 = vmul.f32 %v1485, %v1665
        %v1710 = vmul.f32 %v1486, %v1667
        %v1711 = vmul.f32 %v1487, %v1669
        %v1712 = vmul.f32 %v1488, %v1671
        %v1713 = vmul.f32 %v1489, %v1673
        %v1714 = vmul.f32 %v1490, %v1675
        %v1715 = vmul.f32 %v1491, %v1677
        %v1716 = vmul.f32 %v1492, %v1679
        %v1717 = vmul.f32 %v1493, %v1681
        %v1718 = vmul.f32 %v1494, %v1683
        %v1719 = vmul.f32 %v1495, %v1685
        %v1720 = vmul.f32 %v1496, %v1687
        %v1721 = vmul.f32 %v1497, %v1689
        %v1722 = vpack.c.bf16 %v1691, %v1690
        %v1723 = vpack.c.bf16 %v1693, %v1692
        %v1724 = vpack.c.bf16 %v1695, %v1694
        %v1725 = vpack.c.bf16 %v1697, %v1696
        %v1726 = vpack.c.bf16 %v1699, %v1698
        %v1727 = vpack.c.bf16 %v1701, %v1700
        %v1728 = vpack.c.bf16 %v1703, %v1702
        %v1729 = vpack.c.bf16 %v1705, %v1704
        %v1730 = vpack.c.bf16 %v1707, %v1706
        %v1731 = vpack.c.bf16 %v1709, %v1708
        %v1732 = vpack.c.bf16 %v1711, %v1710
        %v1733 = vpack.c.bf16 %v1713, %v1712
        %v1734 = vpack.c.bf16 %v1715, %v1714
        %v1735 = vpack.c.bf16 %v1717, %v1716
        %v1736 = vpack.c.bf16 %v1719, %v1718
        %v1737 = vpack.c.bf16 %v1721, %v1720
        %v1738 = vld [vmem:[#allocation9] sm:$0xf]
        %v1739 = vld [vmem:[#allocation9 + $0x4] sm:$0xf]
        %v1740 = vld [vmem:[#allocation9 + $0x8] sm:$0xf]
        %v1741 = vld [vmem:[#allocation9 + $0xc] sm:$0xf]
        %v1742 = vld [vmem:[#allocation9 + $0x10] sm:$0xf]
        %v1743 = vld [vmem:[#allocation9 + $0x14] sm:$0xf]
        %v1744 = vld [vmem:[#allocation9 + $0x18] sm:$0xf]
        %v1745 = vld [vmem:[#allocation9 + $0x1c] sm:$0xf]
        %v1746 = vld [vmem:[#allocation9 + $0x20] sm:$0xf]
        %v1747 = vld [vmem:[#allocation9 + $0x24] sm:$0xf]
        %v1748 = vld [vmem:[#allocation9 + $0x28] sm:$0xf]
        %v1749 = vld [vmem:[#allocation9 + $0x2c] sm:$0xf]
        %v1750 = vld [vmem:[#allocation9 + $0x30] sm:$0xf]
        %v1751 = vld [vmem:[#allocation9 + $0x34] sm:$0xf]
        %v1752 = vld [vmem:[#allocation9 + $0x38] sm:$0xf]
        %v1753 = vld [vmem:[#allocation9 + $0x3c] sm:$0xf]
        %v1754 = vld [vmem:[#allocation11] sm:$0x1]
        %v1756 = vlaneseq
        %v1757 = vshrl.u32 %v1756, 7
        %v1758 = vsub.s32 0, %v1757
        %v1759 = vrot.slane %v1754, %v1758
        %v1777 = vunpack.c.l.b16 %v1738
        %v1778 = vunpack.c.l.b16 %v1739
        %v1779 = vunpack.c.l.b16 %v1740
        %v1780 = vunpack.c.l.b16 %v1741
        %v1781 = vunpack.c.l.b16 %v1742
        %v1782 = vunpack.c.l.b16 %v1743
        %v1783 = vunpack.c.l.b16 %v1744
        %v1784 = vunpack.c.l.b16 %v1745
        %v1785 = vunpack.c.l.b16 %v1746
        %v1786 = vunpack.c.l.b16 %v1747
        %v1787 = vunpack.c.l.b16 %v1748
        %v1788 = vunpack.c.l.b16 %v1749
        %v1789 = vunpack.c.l.b16 %v1750
        %v1790 = vunpack.c.l.b16 %v1751
        %v1791 = vunpack.c.l.b16 %v1752
        %v1792 = vunpack.c.l.b16 %v1753
        %v1793 = vpack.c.b16 %v1778, %v1777
        %v1794 = vpack.c.b16 %v1780, %v1779
        %v1795 = vpack.c.b16 %v1782, %v1781
        %v1796 = vpack.c.b16 %v1784, %v1783
        %v1797 = vpack.c.b16 %v1786, %v1785
        %v1798 = vpack.c.b16 %v1788, %v1787
        %v1799 = vpack.c.b16 %v1790, %v1789
        %v1800 = vpack.c.b16 %v1792, %v1791
        %1809 = vmatprep.subr.bf16.mxu0 0
        %1810 = vmatpush1.bf16.msra.mxu0 %v1800
        %1811 = vmatprep.subr.bf16.mxu0 0
        %1812 = vmatpush1.bf16.msra.mxu0 %v1799
        %1813 = vmatprep.subr.bf16.mxu0 0
        %1814 = vmatpush1.bf16.msra.mxu0 %v1798
        %1815 = vmatprep.subr.bf16.mxu0 0
        %1816 = vmatpush1.bf16.msra.mxu0 %v1797
        %1817 = vmatprep.subr.bf16.mxu0 0
        %1818 = vmatpush1.bf16.msra.mxu0 %v1796
        %1819 = vmatprep.subr.bf16.mxu0 0
        %1820 = vmatpush1.bf16.msra.mxu0 %v1795
        %1821 = vmatprep.subr.bf16.mxu0 0
        %1822 = vmatpush1.bf16.msra.mxu0 %v1794
        %1823 = vmatprep.subr.bf16.mxu0 0
        %1824 = vmatpush1.bf16.msra.mxu0 %v1793
        %1825 = vmatprep.subr.bf16.mxu0 0
        %1826 = vmatpush2.bf16.msra.mxu0 0
        %1827 = vmatprep.subr.bf16.mxu0 0
        %1828 = vmatpush2.bf16.msra.mxu0 0
        %1829 = vmatprep.subr.bf16.mxu0 0
        %1830 = vmatpush2.bf16.msra.mxu0 0
        %1831 = vmatprep.subr.bf16.mxu0 0
        %1832 = vmatpush2.bf16.msra.mxu0 0
        %1833 = vmatprep.subr.bf16.mxu0 0
        %1834 = vmatpush2.bf16.msra.mxu0 0
        %1835 = vmatprep.subr.bf16.mxu0 0
        %1836 = vmatpush2.bf16.msra.mxu0 0
        %1837 = vmatprep.subr.bf16.mxu0 0
        %1838 = vmatpush2.bf16.msra.mxu0 0
        %1839 = vmatprep.subr.bf16.mxu0 0
        %1840 = vmatpush2.bf16.msra.mxu0 0
        %1841 = vmatprep.mubr.bf16.mxu0 0
        %1842 = vmatmul.mubr.bf16.gmra.mxu0 %v1722
        %v1843 = vpop.f32.mrf.mxu0
        %v1844 = vadd.f32 %v1759, %v1843
        %v1845 = vpop.f32.mrf.mxu0
        %v1846 = vpop.f32.mrf.mxu0
        %v1847 = vadd.f32 %v1759, %v1846
        %v1848 = vpop.f32.mrf.mxu0
        %1849 = vmatprep.mubr.bf16.mxu0 0
        %1850 = vmatmul.mubr.bf16.gmra.mxu0 %v1723
        %v1851 = vpop.f32.mrf.mxu0
        %v1852 = vadd.f32 %v1759, %v1851
        %v1853 = vpop.f32.mrf.mxu0
        %v1854 = vpop.f32.mrf.mxu0
        %v1855 = vadd.f32 %v1759, %v1854
        %v1856 = vpop.f32.mrf.mxu0
        %1857 = vmatprep.mubr.bf16.mxu0 0
        %1858 = vmatmul.mubr.bf16.gmra.mxu0 %v1724
        %v1859 = vpop.f32.mrf.mxu0
        %v1860 = vadd.f32 %v1759, %v1859
        %v1861 = vpop.f32.mrf.mxu0
        %v1862 = vpop.f32.mrf.mxu0
        %v1863 = vadd.f32 %v1759, %v1862
        %v1864 = vpop.f32.mrf.mxu0
        %1865 = vmatprep.mubr.bf16.mxu0 0
        %1866 = vmatmul.mubr.bf16.gmra.mxu0 %v1725
        %v1867 = vpop.f32.mrf.mxu0
        %v1868 = vadd.f32 %v1759, %v1867
        %v1869 = vpop.f32.mrf.mxu0
        %v1870 = vpop.f32.mrf.mxu0
        %v1871 = vadd.f32 %v1759, %v1870
        %v1872 = vpop.f32.mrf.mxu0
        %1873 = vmatprep.mubr.bf16.mxu0 0
        %1874 = vmatmul.mubr.bf16.gmra.mxu0 %v1726
        %v1875 = vpop.f32.mrf.mxu0
        %v1876 = vadd.f32 %v1759, %v1875
        %v1877 = vpop.f32.mrf.mxu0
        %v1878 = vpop.f32.mrf.mxu0
        %v1879 = vadd.f32 %v1759, %v1878
        %v1880 = vpop.f32.mrf.mxu0
        %1881 = vmatprep.mubr.bf16.mxu0 0
        %1882 = vmatmul.mubr.bf16.gmra.mxu0 %v1727
        %v1883 = vpop.f32.mrf.mxu0
        %v1884 = vadd.f32 %v1759, %v1883
        %v1885 = vpop.f32.mrf.mxu0
        %v1886 = vpop.f32.mrf.mxu0
        %v1887 = vadd.f32 %v1759, %v1886
        %v1888 = vpop.f32.mrf.mxu0
        %1889 = vmatprep.mubr.bf16.mxu0 0
        %1890 = vmatmul.mubr.bf16.gmra.mxu0 %v1728
        %v1891 = vpop.f32.mrf.mxu0
        %v1892 = vadd.f32 %v1759, %v1891
        %v1893 = vpop.f32.mrf.mxu0
        %v1894 = vpop.f32.mrf.mxu0
        %v1895 = vadd.f32 %v1759, %v1894
        %v1896 = vpop.f32.mrf.mxu0
        %1897 = vmatprep.mubr.bf16.mxu0 0
        %1898 = vmatmul.mubr.bf16.gmra.mxu0 %v1729
        %v1899 = vpop.f32.mrf.mxu0
        %v1900 = vadd.f32 %v1759, %v1899
        %v1901 = vpop.f32.mrf.mxu0
        %v1902 = vpop.f32.mrf.mxu0
        %v1903 = vadd.f32 %v1759, %v1902
        %v1904 = vpop.f32.mrf.mxu0
        %1905 = vmatprep.mubr.bf16.mxu0 0
        %1906 = vmatmul.mubr.bf16.gmra.mxu0 %v1730
        %v1907 = vpop.f32.mrf.mxu0
        %v1908 = vadd.f32 %v1759, %v1907
        %v1909 = vpop.f32.mrf.mxu0
        %v1910 = vpop.f32.mrf.mxu0
        %v1911 = vadd.f32 %v1759, %v1910
        %v1912 = vpop.f32.mrf.mxu0
        %1913 = vmatprep.mubr.bf16.mxu0 0
        %1914 = vmatmul.mubr.bf16.gmra.mxu0 %v1731
        %v1915 = vpop.f32.mrf.mxu0
        %v1916 = vadd.f32 %v1759, %v1915
        %v1917 = vpop.f32.mrf.mxu0
        %v1918 = vpop.f32.mrf.mxu0
        %v1919 = vadd.f32 %v1759, %v1918
        %v1920 = vpop.f32.mrf.mxu0
        %1921 = vmatprep.mubr.bf16.mxu0 0
        %1922 = vmatmul.mubr.bf16.gmra.mxu0 %v1732
        %v1923 = vpop.f32.mrf.mxu0
        %v1924 = vadd.f32 %v1759, %v1923
        %v1925 = vpop.f32.mrf.mxu0
        %v1926 = vpop.f32.mrf.mxu0
        %v1927 = vadd.f32 %v1759, %v1926
        %v1928 = vpop.f32.mrf.mxu0
        %1929 = vmatprep.mubr.bf16.mxu0 0
        %1930 = vmatmul.mubr.bf16.gmra.mxu0 %v1733
        %v1931 = vpop.f32.mrf.mxu0
        %v1932 = vadd.f32 %v1759, %v1931
        %v1933 = vpop.f32.mrf.mxu0
        %v1934 = vpop.f32.mrf.mxu0
        %v1935 = vadd.f32 %v1759, %v1934
        %v1936 = vpop.f32.mrf.mxu0
        %1937 = vmatprep.mubr.bf16.mxu0 0
        %1938 = vmatmul.mubr.bf16.gmra.mxu0 %v1734
        %v1939 = vpop.f32.mrf.mxu0
        %v1940 = vadd.f32 %v1759, %v1939
        %v1941 = vpop.f32.mrf.mxu0
        %v1942 = vpop.f32.mrf.mxu0
        %v1943 = vadd.f32 %v1759, %v1942
        %v1944 = vpop.f32.mrf.mxu0
        %1945 = vmatprep.mubr.bf16.mxu0 0
        %1946 = vmatmul.mubr.bf16.gmra.mxu0 %v1735
        %v1947 = vpop.f32.mrf.mxu0
        %v1948 = vadd.f32 %v1759, %v1947
        %v1949 = vpop.f32.mrf.mxu0
        %v1950 = vpop.f32.mrf.mxu0
        %v1951 = vadd.f32 %v1759, %v1950
        %v1952 = vpop.f32.mrf.mxu0
        %1953 = vmatprep.mubr.bf16.mxu0 0
        %1954 = vmatmul.mubr.bf16.gmra.mxu0 %v1736
        %v1955 = vpop.f32.mrf.mxu0
        %v1956 = vadd.f32 %v1759, %v1955
        %v1957 = vpop.f32.mrf.mxu0
        %v1958 = vpop.f32.mrf.mxu0
        %v1959 = vadd.f32 %v1759, %v1958
        %v1960 = vpop.f32.mrf.mxu0
        %1961 = vmatprep.mubr.bf16.mxu0 0
        %1962 = vmatmul.mubr.bf16.gmra.mxu0 %v1737
        %v1963 = vpop.f32.mrf.mxu0
        %v1964 = vadd.f32 %v1759, %v1963
        %v1965 = vpop.f32.mrf.mxu0
        %v1966 = vpop.f32.mrf.mxu0
        %v1967 = vadd.f32 %v1759, %v1966
        %v1968 = vpop.f32.mrf.mxu0
        %1969 = vdwg.mxu0
        %v1970 = vxor.u32 %v1844, 2147483648
        %v1971 = vxor.u32 %v1847, 2147483648
        %v1972 = vxor.u32 %v1852, 2147483648
        %v1973 = vxor.u32 %v1855, 2147483648
        %v1974 = vxor.u32 %v1860, 2147483648
        %v1975 = vxor.u32 %v1863, 2147483648
        %v1976 = vxor.u32 %v1868, 2147483648
        %v1977 = vxor.u32 %v1871, 2147483648
        %v1978 = vxor.u32 %v1876, 2147483648
        %v1979 = vxor.u32 %v1879, 2147483648
        %v1980 = vxor.u32 %v1884, 2147483648
        %v1981 = vxor.u32 %v1887, 2147483648
        %v1982 = vxor.u32 %v1892, 2147483648
        %v1983 = vxor.u32 %v1895, 2147483648
        %v1984 = vxor.u32 %v1900, 2147483648
        %v1985 = vxor.u32 %v1903, 2147483648
        %v1986 = vxor.u32 %v1908, 2147483648
        %v1987 = vxor.u32 %v1911, 2147483648
        %v1988 = vxor.u32 %v1916, 2147483648
        %v1989 = vxor.u32 %v1919, 2147483648
        %v1990 = vxor.u32 %v1924, 2147483648
        %v1991 = vxor.u32 %v1927, 2147483648
        %v1992 = vxor.u32 %v1932, 2147483648
        %v1993 = vxor.u32 %v1935, 2147483648
        %v1994 = vxor.u32 %v1940, 2147483648
        %v1995 = vxor.u32 %v1943, 2147483648
        %v1996 = vxor.u32 %v1948, 2147483648
        %v1997 = vxor.u32 %v1951, 2147483648
        %v1998 = vxor.u32 %v1956, 2147483648
        %v1999 = vxor.u32 %v1959, 2147483648
        %v2000 = vxor.u32 %v1964, 2147483648
        %v2001 = vxor.u32 %v1967, 2147483648
        %v2002 = vmul.f32 %v1970, 1.442695
        %v2003 = vpow.pop %v2002
        %v2004 = vmul.f32 %v1971, 1.442695
        %v2005 = vpow.pop %v2004
        %v2006 = vmul.f32 %v1972, 1.442695
        %v2007 = vpow.pop %v2006
        %v2008 = vmul.f32 %v1973, 1.442695
        %v2009 = vpow.pop %v2008
        %v2010 = vmul.f32 %v1974, 1.442695
        %v2011 = vpow.pop %v2010
        %v2012 = vmul.f32 %v1975, 1.442695
        %v2013 = vpow.pop %v2012
        %v2014 = vmul.f32 %v1976, 1.442695
        %v2015 = vpow.pop %v2014
        %v2016 = vmul.f32 %v1977, 1.442695
        %v2017 = vpow.pop %v2016
        %v2018 = vmul.f32 %v1978, 1.442695
        %v2019 = vpow.pop %v2018
        %v2020 = vmul.f32 %v1979, 1.442695
        %v2021 = vpow.pop %v2020
        %v2022 = vmul.f32 %v1980, 1.442695
        %v2023 = vpow.pop %v2022
        %v2024 = vmul.f32 %v1981, 1.442695
        %v2025 = vpow.pop %v2024
        %v2026 = vmul.f32 %v1982, 1.442695
        %v2027 = vpow.pop %v2026
        %v2028 = vmul.f32 %v1983, 1.442695
        %v2029 = vpow.pop %v2028
        %v2030 = vmul.f32 %v1984, 1.442695
        %v2031 = vpow.pop %v2030
        %v2032 = vmul.f32 %v1985, 1.442695
        %v2033 = vpow.pop %v2032
        %v2034 = vmul.f32 %v1986, 1.442695
        %v2035 = vpow.pop %v2034
        %v2036 = vmul.f32 %v1987, 1.442695
        %v2037 = vpow.pop %v2036
        %v2038 = vmul.f32 %v1988, 1.442695
        %v2039 = vpow.pop %v2038
        %v2040 = vmul.f32 %v1989, 1.442695
        %v2041 = vpow.pop %v2040
        %v2042 = vmul.f32 %v1990, 1.442695
        %v2043 = vpow.pop %v2042
        %v2044 = vmul.f32 %v1991, 1.442695
        %v2045 = vpow.pop %v2044
        %v2046 = vmul.f32 %v1992, 1.442695
        %v2047 = vpow.pop %v2046
        %v2048 = vmul.f32 %v1993, 1.442695
        %v2049 = vpow.pop %v2048
        %v2050 = vmul.f32 %v1994, 1.442695
        %v2051 = vpow.pop %v2050
        %v2052 = vmul.f32 %v1995, 1.442695
        %v2053 = vpow.pop %v2052
        %v2054 = vmul.f32 %v1996, 1.442695
        %v2055 = vpow.pop %v2054
        %v2056 = vmul.f32 %v1997, 1.442695
        %v2057 = vpow.pop %v2056
        %v2058 = vmul.f32 %v1998, 1.442695
        %v2059 = vpow.pop %v2058
        %v2060 = vmul.f32 %v1999, 1.442695
        %v2061 = vpow.pop %v2060
        %v2062 = vmul.f32 %v2000, 1.442695
        %v2063 = vpow.pop %v2062
        %v2064 = vmul.f32 %v2001, 1.442695
        %v2065 = vpow.pop %v2064
        %v2066 = vadd.f32 %v2003, 1.0
        %v2067 = vadd.f32 %v2005, 1.0
        %v2068 = vadd.f32 %v2007, 1.0
        %v2069 = vadd.f32 %v2009, 1.0
        %v2070 = vadd.f32 %v2011, 1.0
        %v2071 = vadd.f32 %v2013, 1.0
        %v2072 = vadd.f32 %v2015, 1.0
        %v2073 = vadd.f32 %v2017, 1.0
        %v2074 = vadd.f32 %v2019, 1.0
        %v2075 = vadd.f32 %v2021, 1.0
        %v2076 = vadd.f32 %v2023, 1.0
        %v2077 = vadd.f32 %v2025, 1.0
        %v2078 = vadd.f32 %v2027, 1.0
        %v2079 = vadd.f32 %v2029, 1.0
        %v2080 = vadd.f32 %v2031, 1.0
        %v2081 = vadd.f32 %v2033, 1.0
        %v2082 = vadd.f32 %v2035, 1.0
        %v2083 = vadd.f32 %v2037, 1.0
        %v2084 = vadd.f32 %v2039, 1.0
        %v2085 = vadd.f32 %v2041, 1.0
        %v2086 = vadd.f32 %v2043, 1.0
        %v2087 = vadd.f32 %v2045, 1.0
        %v2088 = vadd.f32 %v2047, 1.0
        %v2089 = vadd.f32 %v2049, 1.0
        %v2090 = vadd.f32 %v2051, 1.0
        %v2091 = vadd.f32 %v2053, 1.0
        %v2092 = vadd.f32 %v2055, 1.0
        %v2093 = vadd.f32 %v2057, 1.0
        %v2094 = vadd.f32 %v2059, 1.0
        %v2095 = vadd.f32 %v2061, 1.0
        %v2096 = vadd.f32 %v2063, 1.0
        %v2097 = vadd.f32 %v2065, 1.0
        %v2098 = vrcp.pop %v2066
        %v2099 = vmul.f32 1.0, %v2098
        %v2100 = vrcp.pop %v2067
        %v2101 = vmul.f32 1.0, %v2100
        %v2102 = vrcp.pop %v2068
        %v2103 = vmul.f32 1.0, %v2102
        %v2104 = vrcp.pop %v2069
        %v2105 = vmul.f32 1.0, %v2104
        %v2106 = vrcp.pop %v2070
        %v2107 = vmul.f32 1.0, %v2106
        %v2108 = vrcp.pop %v2071
        %v2109 = vmul.f32 1.0, %v2108
        %v2110 = vrcp.pop %v2072
        %v2111 = vmul.f32 1.0, %v2110
        %v2112 = vrcp.pop %v2073
        %v2113 = vmul.f32 1.0, %v2112
        %v2114 = vrcp.pop %v2074
        %v2115 = vmul.f32 1.0, %v2114
        %v2116 = vrcp.pop %v2075
        %v2117 = vmul.f32 1.0, %v2116
        %v2118 = vrcp.pop %v2076
        %v2119 = vmul.f32 1.0, %v2118
        %v2120 = vrcp.pop %v2077
        %v2121 = vmul.f32 1.0, %v2120
        %v2122 = vrcp.pop %v2078
        %v2123 = vmul.f32 1.0, %v2122
        %v2124 = vrcp.pop %v2079
        %v2125 = vmul.f32 1.0, %v2124
        %v2126 = vrcp.pop %v2080
        %v2127 = vmul.f32 1.0, %v2126
        %v2128 = vrcp.pop %v2081
        %v2129 = vmul.f32 1.0, %v2128
        %v2130 = vrcp.pop %v2082
        %v2131 = vmul.f32 1.0, %v2130
        %v2132 = vrcp.pop %v2083
        %v2133 = vmul.f32 1.0, %v2132
        %v2134 = vrcp.pop %v2084
        %v2135 = vmul.f32 1.0, %v2134
        %v2136 = vrcp.pop %v2085
        %v2137 = vmul.f32 1.0, %v2136
        %v2138 = vrcp.pop %v2086
        %v2139 = vmul.f32 1.0, %v2138
        %v2140 = vrcp.pop %v2087
        %v2141 = vmul.f32 1.0, %v2140
        %v2142 = vrcp.pop %v2088
        %v2143 = vmul.f32 1.0, %v2142
        %v2144 = vrcp.pop %v2089
        %v2145 = vmul.f32 1.0, %v2144
        %v2146 = vrcp.pop %v2090
        %v2147 = vmul.f32 1.0, %v2146
        %v2148 = vrcp.pop %v2091
        %v2149 = vmul.f32 1.0, %v2148
        %v2150 = vrcp.pop %v2092
        %v2151 = vmul.f32 1.0, %v2150
        %v2152 = vrcp.pop %v2093
        %v2153 = vmul.f32 1.0, %v2152
        %v2154 = vrcp.pop %v2094
        %v2155 = vmul.f32 1.0, %v2154
        %v2156 = vrcp.pop %v2095
        %v2157 = vmul.f32 1.0, %v2156
        %v2158 = vrcp.pop %v2096
        %v2159 = vmul.f32 1.0, %v2158
        %v2160 = vrcp.pop %v2097
        %v2161 = vmul.f32 1.0, %v2160
        %v2162 = vmul.f32 %v1844, %v2099
        %v2163 = vmul.f32 %v1847, %v2101
        %v2164 = vmul.f32 %v1852, %v2103
        %v2165 = vmul.f32 %v1855, %v2105
        %v2166 = vmul.f32 %v1860, %v2107
        %v2167 = vmul.f32 %v1863, %v2109
        %v2168 = vmul.f32 %v1868, %v2111
        %v2169 = vmul.f32 %v1871, %v2113
        %v2170 = vmul.f32 %v1876, %v2115
        %v2171 = vmul.f32 %v1879, %v2117
        %v2172 = vmul.f32 %v1884, %v2119
        %v2173 = vmul.f32 %v1887, %v2121
        %v2174 = vmul.f32 %v1892, %v2123
        %v2175 = vmul.f32 %v1895, %v2125
        %v2176 = vmul.f32 %v1900, %v2127
        %v2177 = vmul.f32 %v1903, %v2129
        %v2178 = vmul.f32 %v1908, %v2131
        %v2179 = vmul.f32 %v1911, %v2133
        %v2180 = vmul.f32 %v1916, %v2135
        %v2181 = vmul.f32 %v1919, %v2137
        %v2182 = vmul.f32 %v1924, %v2139
        %v2183 = vmul.f32 %v1927, %v2141
        %v2184 = vmul.f32 %v1932, %v2143
        %v2185 = vmul.f32 %v1935, %v2145
        %v2186 = vmul.f32 %v1940, %v2147
        %v2187 = vmul.f32 %v1943, %v2149
        %v2188 = vmul.f32 %v1948, %v2151
        %v2189 = vmul.f32 %v1951, %v2153
        %v2190 = vmul.f32 %v1956, %v2155
        %v2191 = vmul.f32 %v1959, %v2157
        %v2192 = vmul.f32 %v1964, %v2159
        %v2193 = vmul.f32 %v1967, %v2161
        %2194 = vst [vmem:[%s523 + $0x8] sm:$0xff] %v2162
        %2195 = vst [vmem:[%s523 + $0x10] sm:$0xff] %v2163
        %2196 = vst [vmem:[%s523 + $0x28] sm:$0xff] %v2164
        %2197 = vst [vmem:[%s523 + $0x30] sm:$0xff] %v2165
        %2198 = vst [vmem:[%s523 + $0x48] sm:$0xff] %v2166
        %2199 = vst [vmem:[%s523 + $0x50] sm:$0xff] %v2167
        %2200 = vst [vmem:[%s523 + $0x68] sm:$0xff] %v2168
        %2201 = vst [vmem:[%s523 + $0x70] sm:$0xff] %v2169
        %2202 = vst [vmem:[%s523 + $0x88] sm:$0xff] %v2170
        %2203 = vst [vmem:[%s523 + $0x90] sm:$0xff] %v2171
        %2204 = vst [vmem:[%s523 + $0xa8] sm:$0xff] %v2172
        %2205 = vst [vmem:[%s523 + $0xb0] sm:$0xff] %v2173
        %2206 = vst [vmem:[%s523 + $0xc8] sm:$0xff] %v2174
        %2207 = vst [vmem:[%s523 + $0xd0] sm:$0xff] %v2175
        %2208 = vst [vmem:[%s523 + $0xe8] sm:$0xff] %v2176
        %2209 = vst [vmem:[%s523 + $0xf0] sm:$0xff] %v2177
        %2210 = vst [vmem:[%s523 + $0x108] sm:$0xff] %v2178
        %2211 = vst [vmem:[%s523 + $0x110] sm:$0xff] %v2179
        %2212 = vst [vmem:[%s523 + $0x128] sm:$0xff] %v2180
        %2213 = vst [vmem:[%s523 + $0x130] sm:$0xff] %v2181
        %2214 = vst [vmem:[%s523 + $0x148] sm:$0xff] %v2182
        %2215 = vst [vmem:[%s523 + $0x150] sm:$0xff] %v2183
        %2216 = vst [vmem:[%s523 + $0x168] sm:$0xff] %v2184
        %2217 = vst [vmem:[%s523 + $0x170] sm:$0xff] %v2185
        %2218 = vst [vmem:[%s523 + $0x188] sm:$0xff] %v2186
        %2219 = vst [vmem:[%s523 + $0x190] sm:$0xff] %v2187
        %2220 = vst [vmem:[%s523 + $0x1a8] sm:$0xff] %v2188
        %2221 = vst [vmem:[%s523 + $0x1b0] sm:$0xff] %v2189
        %2222 = vst [vmem:[%s523 + $0x1c8] sm:$0xff] %v2190
        %2223 = vst [vmem:[%s523 + $0x1d0] sm:$0xff] %v2191
        %2224 = vst [vmem:[%s523 + $0x1e8] sm:$0xff] %v2192
        %2225 = vst [vmem:[%s523 + $0x1f0] sm:$0xff] %v2193
        %v2226 = vld [vmem:[#allocation12] sm:$0xff]
        %v2227 = vld [vmem:[#allocation12 + $0x8] sm:$0x1]
        %v2228 = vld [vmem:[#allocation14] sm:$0x1]
        %v2229 = vlaneseq
        %v2230 = vshrl.u32 %v2229, 7
        %v2231 = vsub.s32 4, %v2230
        %v2232 = vrot.slane %v2226, %v2231
        %v2233 = vmul.f32 %v2162, %v2232
        %v2234 = vmul.f32 %v2163, %v2232
        %v2235 = vmul.f32 %v2164, %v2232
        %v2236 = vmul.f32 %v2165, %v2232
        %v2237 = vmul.f32 %v2166, %v2232
        %v2238 = vmul.f32 %v2167, %v2232
        %v2239 = vmul.f32 %v2168, %v2232
        %v2240 = vmul.f32 %v2169, %v2232
        %v2241 = vmul.f32 %v2170, %v2232
        %v2242 = vmul.f32 %v2171, %v2232
        %v2243 = vmul.f32 %v2172, %v2232
        %v2244 = vmul.f32 %v2173, %v2232
        %v2245 = vmul.f32 %v2174, %v2232
        %v2246 = vmul.f32 %v2175, %v2232
        %v2247 = vmul.f32 %v2176, %v2232
        %v2248 = vmul.f32 %v2177, %v2232
        %v2249 = vmul.f32 %v2178, %v2232
        %v2250 = vmul.f32 %v2179, %v2232
        %v2251 = vmul.f32 %v2180, %v2232
        %v2252 = vmul.f32 %v2181, %v2232
        %v2253 = vmul.f32 %v2182, %v2232
        %v2254 = vmul.f32 %v2183, %v2232
        %v2255 = vmul.f32 %v2184, %v2232
        %v2256 = vmul.f32 %v2185, %v2232
        %v2257 = vmul.f32 %v2186, %v2232
        %v2258 = vmul.f32 %v2187, %v2232
        %v2259 = vmul.f32 %v2188, %v2232
        %v2260 = vmul.f32 %v2189, %v2232
        %v2261 = vmul.f32 %v2190, %v2232
        %v2262 = vmul.f32 %v2191, %v2232
        %v2263 = vmul.f32 %v2192, %v2232
        %v2264 = vmul.f32 %v2193, %v2232
        %v2265 = vld [vmem:[#allocation2 + $0x7] sm:$0xff]
        %v2266 = vld [vmem:[#allocation2 + $0xf] sm:$0xff]
        %v2267 = vld [vmem:[#allocation2 + $0x27] sm:$0xff]
        %v2268 = vld [vmem:[#allocation2 + $0x2f] sm:$0xff]
        %v2269 = vld [vmem:[#allocation2 + $0x47] sm:$0xff]
        %v2270 = vld [vmem:[#allocation2 + $0x4f] sm:$0xff]
        %v2271 = vld [vmem:[#allocation2 + $0x67] sm:$0xff]
        %v2272 = vld [vmem:[#allocation2 + $0x6f] sm:$0xff]
        %v2273 = vld [vmem:[#allocation2 + $0x87] sm:$0xff]
        %v2274 = vld [vmem:[#allocation2 + $0x8f] sm:$0xff]
        %v2275 = vld [vmem:[#allocation2 + $0xa7] sm:$0xff]
        %v2276 = vld [vmem:[#allocation2 + $0xaf] sm:$0xff]
        %v2277 = vld [vmem:[#allocation2 + $0xc7] sm:$0xff]
        %v2278 = vld [vmem:[#allocation2 + $0xcf] sm:$0xff]
        %v2279 = vld [vmem:[#allocation2 + $0xe7] sm:$0xff]
        %v2280 = vld [vmem:[#allocation2 + $0xef] sm:$0xff]
        %v2281 = vld [vmem:[#allocation2 + $0x107] sm:$0xff]
        %v2282 = vld [vmem:[#allocation2 + $0x10f] sm:$0xff]
        %v2283 = vld [vmem:[#allocation2 + $0x127] sm:$0xff]
        %v2284 = vld [vmem:[#allocation2 + $0x12f] sm:$0xff]
        %v2285 = vld [vmem:[#allocation2 + $0x147] sm:$0xff]
        %v2286 = vld [vmem:[#allocation2 + $0x14f] sm:$0xff]
        %v2287 = vld [vmem:[#allocation2 + $0x167] sm:$0xff]
        %v2288 = vld [vmem:[#allocation2 + $0x16f] sm:$0xff]
        %v2289 = vld [vmem:[#allocation2 + $0x187] sm:$0xff]
        %v2290 = vld [vmem:[#allocation2 + $0x18f] sm:$0xff]
        %v2291 = vld [vmem:[#allocation2 + $0x1a7] sm:$0xff]
        %v2292 = vld [vmem:[#allocation2 + $0x1af] sm:$0xff]
        %v2293 = vld [vmem:[#allocation2 + $0x1c7] sm:$0xff]
        %v2294 = vld [vmem:[#allocation2 + $0x1cf] sm:$0xff]
        %v2295 = vld [vmem:[#allocation2 + $0x1e7] sm:$0xff]
        %v2296 = vld [vmem:[#allocation2 + $0x1ef] sm:$0xff]
        %v2297 = vlaneseq
        %v2298 = vshrl.u32 %v2297, 7
        %v2299 = vsub.s32 0, %v2298
        %v2300 = vrot.slane %v2226, %v2299
        %v2301 = vmul.f32 %v2265, %v2300
        %v2302 = vmul.f32 %v2266, %v2300
        %v2303 = vmul.f32 %v2267, %v2300
        %v2304 = vmul.f32 %v2268, %v2300
        %v2305 = vmul.f32 %v2269, %v2300
        %v2306 = vmul.f32 %v2270, %v2300
        %v2307 = vmul.f32 %v2271, %v2300
        %v2308 = vmul.f32 %v2272, %v2300
        %v2309 = vmul.f32 %v2273, %v2300
        %v2310 = vmul.f32 %v2274, %v2300
        %v2311 = vmul.f32 %v2275, %v2300
        %v2312 = vmul.f32 %v2276, %v2300
        %v2313 = vmul.f32 %v2277, %v2300
        %v2314 = vmul.f32 %v2278, %v2300
        %v2315 = vmul.f32 %v2279, %v2300
        %v2316 = vmul.f32 %v2280, %v2300
        %v2317 = vmul.f32 %v2281, %v2300
        %v2318 = vmul.f32 %v2282, %v2300
        %v2319 = vmul.f32 %v2283, %v2300
        %v2320 = vmul.f32 %v2284, %v2300
        %v2321 = vmul.f32 %v2285, %v2300
        %v2322 = vmul.f32 %v2286, %v2300
        %v2323 = vmul.f32 %v2287, %v2300
        %v2324 = vmul.f32 %v2288, %v2300
        %v2325 = vmul.f32 %v2289, %v2300
        %v2326 = vmul.f32 %v2290, %v2300
        %v2327 = vmul.f32 %v2291, %v2300
        %v2328 = vmul.f32 %v2292, %v2300
        %v2329 = vmul.f32 %v2293, %v2300
        %v2330 = vmul.f32 %v2294, %v2300
        %v2331 = vmul.f32 %v2295, %v2300
        %v2332 = vmul.f32 %v2296, %v2300
        %v2333 = vadd.f32 %v2233, %v2301
        %v2334 = vadd.f32 %v2234, %v2302
        %v2335 = vadd.f32 %v2235, %v2303
        %v2336 = vadd.f32 %v2236, %v2304
        %v2337 = vadd.f32 %v2237, %v2305
        %v2338 = vadd.f32 %v2238, %v2306
        %v2339 = vadd.f32 %v2239, %v2307
        %v2340 = vadd.f32 %v2240, %v2308
        %v2341 = vadd.f32 %v2241, %v2309
        %v2342 = vadd.f32 %v2242, %v2310
        %v2343 = vadd.f32 %v2243, %v2311
        %v2344 = vadd.f32 %v2244, %v2312
        %v2345 = vadd.f32 %v2245, %v2313
        %v2346 = vadd.f32 %v2246, %v2314
        %v2347 = vadd.f32 %v2247, %v2315
        %v2348 = vadd.f32 %v2248, %v2316
        %v2349 = vadd.f32 %v2249, %v2317
        %v2350 = vadd.f32 %v2250, %v2318
        %v2351 = vadd.f32 %v2251, %v2319
        %v2352 = vadd.f32 %v2252, %v2320
        %v2353 = vadd.f32 %v2253, %v2321
        %v2354 = vadd.f32 %v2254, %v2322
        %v2355 = vadd.f32 %v2255, %v2323
        %v2356 = vadd.f32 %v2256, %v2324
        %v2357 = vadd.f32 %v2257, %v2325
        %v2358 = vadd.f32 %v2258, %v2326
        %v2359 = vadd.f32 %v2259, %v2327
        %v2360 = vadd.f32 %v2260, %v2328
        %v2361 = vadd.f32 %v2261, %v2329
        %v2362 = vadd.f32 %v2262, %v2330
        %v2363 = vadd.f32 %v2263, %v2331
        %v2364 = vadd.f32 %v2264, %v2332
        %v2365 = vld [vmem:[#allocation2 + $0x8] sm:$0xff]
        %v2366 = vld [vmem:[#allocation2 + $0x10] sm:$0xff]
        %v2367 = vld [vmem:[#allocation2 + $0x28] sm:$0xff]
        %v2368 = vld [vmem:[#allocation2 + $0x30] sm:$0xff]
        %v2369 = vld [vmem:[#allocation2 + $0x48] sm:$0xff]
        %v2370 = vld [vmem:[#allocation2 + $0x50] sm:$0xff]
        %v2371 = vld [vmem:[#allocation2 + $0x68] sm:$0xff]
        %v2372 = vld [vmem:[#allocation2 + $0x70] sm:$0xff]
        %v2373 = vld [vmem:[#allocation2 + $0x88] sm:$0xff]
        %v2374 = vld [vmem:[#allocation2 + $0x90] sm:$0xff]
        %v2375 = vld [vmem:[#allocation2 + $0xa8] sm:$0xff]
        %v2376 = vld [vmem:[#allocation2 + $0xb0] sm:$0xff]
        %v2377 = vld [vmem:[#allocation2 + $0xc8] sm:$0xff]
        %v2378 = vld [vmem:[#allocation2 + $0xd0] sm:$0xff]
        %v2379 = vld [vmem:[#allocation2 + $0xe8] sm:$0xff]
        %v2380 = vld [vmem:[#allocation2 + $0xf0] sm:$0xff]
        %v2381 = vld [vmem:[#allocation2 + $0x108] sm:$0xff]
        %v2382 = vld [vmem:[#allocation2 + $0x110] sm:$0xff]
        %v2383 = vld [vmem:[#allocation2 + $0x128] sm:$0xff]
        %v2384 = vld [vmem:[#allocation2 + $0x130] sm:$0xff]
        %v2385 = vld [vmem:[#allocation2 + $0x148] sm:$0xff]
        %v2386 = vld [vmem:[#allocation2 + $0x150] sm:$0xff]
        %v2387 = vld [vmem:[#allocation2 + $0x168] sm:$0xff]
        %v2388 = vld [vmem:[#allocation2 + $0x170] sm:$0xff]
        %v2389 = vld [vmem:[#allocation2 + $0x188] sm:$0xff]
        %v2390 = vld [vmem:[#allocation2 + $0x190] sm:$0xff]
        %v2391 = vld [vmem:[#allocation2 + $0x1a8] sm:$0xff]
        %v2392 = vld [vmem:[#allocation2 + $0x1b0] sm:$0xff]
        %v2393 = vld [vmem:[#allocation2 + $0x1c8] sm:$0xff]
        %v2394 = vld [vmem:[#allocation2 + $0x1d0] sm:$0xff]
        %v2395 = vld [vmem:[#allocation2 + $0x1e8] sm:$0xff]
        %v2396 = vld [vmem:[#allocation2 + $0x1f0] sm:$0xff]
        %v2397 = vlaneseq
        %v2398 = vshrl.u32 %v2397, 7
        %v2399 = vsub.s32 1, %v2398
        %v2400 = vrot.slane %v2226, %v2399
        %v2401 = vmul.f32 %v2365, %v2400
        %v2402 = vmul.f32 %v2366, %v2400
        %v2403 = vmul.f32 %v2367, %v2400
        %v2404 = vmul.f32 %v2368, %v2400
        %v2405 = vmul.f32 %v2369, %v2400
        %v2406 = vmul.f32 %v2370, %v2400
        %v2407 = vmul.f32 %v2371, %v2400
        %v2408 = vmul.f32 %v2372, %v2400
        %v2409 = vmul.f32 %v2373, %v2400
        %v2410 = vmul.f32 %v2374, %v2400
        %v2411 = vmul.f32 %v2375, %v2400
        %v2412 = vmul.f32 %v2376, %v2400
        %v2413 = vmul.f32 %v2377, %v2400
        %v2414 = vmul.f32 %v2378, %v2400
        %v2415 = vmul.f32 %v2379, %v2400
        %v2416 = vmul.f32 %v2380, %v2400
        %v2417 = vmul.f32 %v2381, %v2400
        %v2418 = vmul.f32 %v2382, %v2400
        %v2419 = vmul.f32 %v2383, %v2400
        %v2420 = vmul.f32 %v2384, %v2400
        %v2421 = vmul.f32 %v2385, %v2400
        %v2422 = vmul.f32 %v2386, %v2400
        %v2423 = vmul.f32 %v2387, %v2400
        %v2424 = vmul.f32 %v2388, %v2400
        %v2425 = vmul.f32 %v2389, %v2400
        %v2426 = vmul.f32 %v2390, %v2400
        %v2427 = vmul.f32 %v2391, %v2400
        %v2428 = vmul.f32 %v2392, %v2400
        %v2429 = vmul.f32 %v2393, %v2400
        %v2430 = vmul.f32 %v2394, %v2400
        %v2431 = vmul.f32 %v2395, %v2400
        %v2432 = vmul.f32 %v2396, %v2400
        %v2433 = vadd.f32 %v2333, %v2401
        %v2434 = vadd.f32 %v2334, %v2402
        %v2435 = vadd.f32 %v2335, %v2403
        %v2436 = vadd.f32 %v2336, %v2404
        %v2437 = vadd.f32 %v2337, %v2405
        %v2438 = vadd.f32 %v2338, %v2406
        %v2439 = vadd.f32 %v2339, %v2407
        %v2440 = vadd.f32 %v2340, %v2408
        %v2441 = vadd.f32 %v2341, %v2409
        %v2442 = vadd.f32 %v2342, %v2410
        %v2443 = vadd.f32 %v2343, %v2411
        %v2444 = vadd.f32 %v2344, %v2412
        %v2445 = vadd.f32 %v2345, %v2413
        %v2446 = vadd.f32 %v2346, %v2414
        %v2447 = vadd.f32 %v2347, %v2415
        %v2448 = vadd.f32 %v2348, %v2416
        %v2449 = vadd.f32 %v2349, %v2417
        %v2450 = vadd.f32 %v2350, %v2418
        %v2451 = vadd.f32 %v2351, %v2419
        %v2452 = vadd.f32 %v2352, %v2420
        %v2453 = vadd.f32 %v2353, %v2421
        %v2454 = vadd.f32 %v2354, %v2422
        %v2455 = vadd.f32 %v2355, %v2423
        %v2456 = vadd.f32 %v2356, %v2424
        %v2457 = vadd.f32 %v2357, %v2425
        %v2458 = vadd.f32 %v2358, %v2426
        %v2459 = vadd.f32 %v2359, %v2427
        %v2460 = vadd.f32 %v2360, %v2428
        %v2461 = vadd.f32 %v2361, %v2429
        %v2462 = vadd.f32 %v2362, %v2430
        %v2463 = vadd.f32 %v2363, %v2431
        %v2464 = vadd.f32 %v2364, %v2432
        %v2465 = vld [vmem:[#allocation2 + $0x9] sm:$0xff]
        %v2466 = vld [vmem:[#allocation2 + $0x11] sm:$0xff]
        %v2467 = vld [vmem:[#allocation2 + $0x29] sm:$0xff]
        %v2468 = vld [vmem:[#allocation2 + $0x31] sm:$0xff]
        %v2469 = vld [vmem:[#allocation2 + $0x49] sm:$0xff]
        %v2470 = vld [vmem:[#allocation2 + $0x51] sm:$0xff]
        %v2471 = vld [vmem:[#allocation2 + $0x69] sm:$0xff]
        %v2472 = vld [vmem:[#allocation2 + $0x71] sm:$0xff]
        %v2473 = vld [vmem:[#allocation2 + $0x89] sm:$0xff]
        %v2474 = vld [vmem:[#allocation2 + $0x91] sm:$0xff]
        %v2475 = vld [vmem:[#allocation2 + $0xa9] sm:$0xff]
        %v2476 = vld [vmem:[#allocation2 + $0xb1] sm:$0xff]
        %v2477 = vld [vmem:[#allocation2 + $0xc9] sm:$0xff]
        %v2478 = vld [vmem:[#allocation2 + $0xd1] sm:$0xff]
        %v2479 = vld [vmem:[#allocation2 + $0xe9] sm:$0xff]
        %v2480 = vld [vmem:[#allocation2 + $0xf1] sm:$0xff]
        %v2481 = vld [vmem:[#allocation2 + $0x109] sm:$0xff]
        %v2482 = vld [vmem:[#allocation2 + $0x111] sm:$0xff]
        %v2483 = vld [vmem:[#allocation2 + $0x129] sm:$0xff]
        %v2484 = vld [vmem:[#allocation2 + $0x131] sm:$0xff]
        %v2485 = vld [vmem:[#allocation2 + $0x149] sm:$0xff]
        %v2486 = vld [vmem:[#allocation2 + $0x151] sm:$0xff]
        %v2487 = vld [vmem:[#allocation2 + $0x169] sm:$0xff]
        %v2488 = vld [vmem:[#allocation2 + $0x171] sm:$0xff]
        %v2489 = vld [vmem:[#allocation2 + $0x189] sm:$0xff]
        %v2490 = vld [vmem:[#allocation2 + $0x191] sm:$0xff]
        %v2491 = vld [vmem:[#allocation2 + $0x1a9] sm:$0xff]
        %v2492 = vld [vmem:[#allocation2 + $0x1b1] sm:$0xff]
        %v2493 = vld [vmem:[#allocation2 + $0x1c9] sm:$0xff]
        %v2494 = vld [vmem:[#allocation2 + $0x1d1] sm:$0xff]
        %v2495 = vld [vmem:[#allocation2 + $0x1e9] sm:$0xff]
        %v2496 = vld [vmem:[#allocation2 + $0x1f1] sm:$0xff]
        %v2497 = vlaneseq
        %v2498 = vshrl.u32 %v2497, 7
        %v2499 = vsub.s32 2, %v2498
        %v2500 = vrot.slane %v2226, %v2499
        %v2501 = vmul.f32 %v2465, %v2500
        %v2502 = vmul.f32 %v2466, %v2500
        %v2503 = vmul.f32 %v2467, %v2500
        %v2504 = vmul.f32 %v2468, %v2500
        %v2505 = vmul.f32 %v2469, %v2500
        %v2506 = vmul.f32 %v2470, %v2500
        %v2507 = vmul.f32 %v2471, %v2500
        %v2508 = vmul.f32 %v2472, %v2500
        %v2509 = vmul.f32 %v2473, %v2500
        %v2510 = vmul.f32 %v2474, %v2500
        %v2511 = vmul.f32 %v2475, %v2500
        %v2512 = vmul.f32 %v2476, %v2500
        %v2513 = vmul.f32 %v2477, %v2500
        %v2514 = vmul.f32 %v2478, %v2500
        %v2515 = vmul.f32 %v2479, %v2500
        %v2516 = vmul.f32 %v2480, %v2500
        %v2517 = vmul.f32 %v2481, %v2500
        %v2518 = vmul.f32 %v2482, %v2500
        %v2519 = vmul.f32 %v2483, %v2500
        %v2520 = vmul.f32 %v2484, %v2500
        %v2521 = vmul.f32 %v2485, %v2500
        %v2522 = vmul.f32 %v2486, %v2500
        %v2523 = vmul.f32 %v2487, %v2500
        %v2524 = vmul.f32 %v2488, %v2500
        %v2525 = vmul.f32 %v2489, %v2500
        %v2526 = vmul.f32 %v2490, %v2500
        %v2527 = vmul.f32 %v2491, %v2500
        %v2528 = vmul.f32 %v2492, %v2500
        %v2529 = vmul.f32 %v2493, %v2500
        %v2530 = vmul.f32 %v2494, %v2500
        %v2531 = vmul.f32 %v2495, %v2500
        %v2532 = vmul.f32 %v2496, %v2500
        %v2533 = vadd.f32 %v2433, %v2501
        %v2534 = vadd.f32 %v2434, %v2502
        %v2535 = vadd.f32 %v2435, %v2503
        %v2536 = vadd.f32 %v2436, %v2504
        %v2537 = vadd.f32 %v2437, %v2505
        %v2538 = vadd.f32 %v2438, %v2506
        %v2539 = vadd.f32 %v2439, %v2507
        %v2540 = vadd.f32 %v2440, %v2508
        %v2541 = vadd.f32 %v2441, %v2509
        %v2542 = vadd.f32 %v2442, %v2510
        %v2543 = vadd.f32 %v2443, %v2511
        %v2544 = vadd.f32 %v2444, %v2512
        %v2545 = vadd.f32 %v2445, %v2513
        %v2546 = vadd.f32 %v2446, %v2514
        %v2547 = vadd.f32 %v2447, %v2515
        %v2548 = vadd.f32 %v2448, %v2516
        %v2549 = vadd.f32 %v2449, %v2517
        %v2550 = vadd.f32 %v2450, %v2518
        %v2551 = vadd.f32 %v2451, %v2519
        %v2552 = vadd.f32 %v2452, %v2520
        %v2553 = vadd.f32 %v2453, %v2521
        %v2554 = vadd.f32 %v2454, %v2522
        %v2555 = vadd.f32 %v2455, %v2523
        %v2556 = vadd.f32 %v2456, %v2524
        %v2557 = vadd.f32 %v2457, %v2525
        %v2558 = vadd.f32 %v2458, %v2526
        %v2559 = vadd.f32 %v2459, %v2527
        %v2560 = vadd.f32 %v2460, %v2528
        %v2561 = vadd.f32 %v2461, %v2529
        %v2562 = vadd.f32 %v2462, %v2530
        %v2563 = vadd.f32 %v2463, %v2531
        %v2564 = vadd.f32 %v2464, %v2532
        %v2565 = vld [vmem:[%s523 + $0x7] sm:$0xff]
        %v2566 = vld [vmem:[%s523 + $0xf] sm:$0xff]
        %v2567 = vld [vmem:[%s523 + $0x27] sm:$0xff]
        %v2568 = vld [vmem:[%s523 + $0x2f] sm:$0xff]
        %v2569 = vld [vmem:[%s523 + $0x47] sm:$0xff]
        %v2570 = vld [vmem:[%s523 + $0x4f] sm:$0xff]
        %v2571 = vld [vmem:[%s523 + $0x67] sm:$0xff]
        %v2572 = vld [vmem:[%s523 + $0x6f] sm:$0xff]
        %v2573 = vld [vmem:[%s523 + $0x87] sm:$0xff]
        %v2574 = vld [vmem:[%s523 + $0x8f] sm:$0xff]
        %v2575 = vld [vmem:[%s523 + $0xa7] sm:$0xff]
        %v2576 = vld [vmem:[%s523 + $0xaf] sm:$0xff]
        %v2577 = vld [vmem:[%s523 + $0xc7] sm:$0xff]
        %v2578 = vld [vmem:[%s523 + $0xcf] sm:$0xff]
        %v2579 = vld [vmem:[%s523 + $0xe7] sm:$0xff]
        %v2580 = vld [vmem:[%s523 + $0xef] sm:$0xff]
        %v2581 = vld [vmem:[%s523 + $0x107] sm:$0xff]
        %v2582 = vld [vmem:[%s523 + $0x10f] sm:$0xff]
        %v2583 = vld [vmem:[%s523 + $0x127] sm:$0xff]
        %v2584 = vld [vmem:[%s523 + $0x12f] sm:$0xff]
        %v2585 = vld [vmem:[%s523 + $0x147] sm:$0xff]
        %v2586 = vld [vmem:[%s523 + $0x14f] sm:$0xff]
        %v2587 = vld [vmem:[%s523 + $0x167] sm:$0xff]
        %v2588 = vld [vmem:[%s523 + $0x16f] sm:$0xff]
        %v2589 = vld [vmem:[%s523 + $0x187] sm:$0xff]
        %v2590 = vld [vmem:[%s523 + $0x18f] sm:$0xff]
        %v2591 = vld [vmem:[%s523 + $0x1a7] sm:$0xff]
        %v2592 = vld [vmem:[%s523 + $0x1af] sm:$0xff]
        %v2593 = vld [vmem:[%s523 + $0x1c7] sm:$0xff]
        %v2594 = vld [vmem:[%s523 + $0x1cf] sm:$0xff]
        %v2595 = vld [vmem:[%s523 + $0x1e7] sm:$0xff]
        %v2596 = vld [vmem:[%s523 + $0x1ef] sm:$0xff]
        %v2597 = vlaneseq
        %v2598 = vshrl.u32 %v2597, 7
        %v2599 = vsub.s32 3, %v2598
        %v2600 = vrot.slane %v2226, %v2599
        %v2601 = vmul.f32 %v2565, %v2600
        %v2602 = vmul.f32 %v2566, %v2600
        %v2603 = vmul.f32 %v2567, %v2600
        %v2604 = vmul.f32 %v2568, %v2600
        %v2605 = vmul.f32 %v2569, %v2600
        %v2606 = vmul.f32 %v2570, %v2600
        %v2607 = vmul.f32 %v2571, %v2600
        %v2608 = vmul.f32 %v2572, %v2600
        %v2609 = vmul.f32 %v2573, %v2600
        %v2610 = vmul.f32 %v2574, %v2600
        %v2611 = vmul.f32 %v2575, %v2600
        %v2612 = vmul.f32 %v2576, %v2600
        %v2613 = vmul.f32 %v2577, %v2600
        %v2614 = vmul.f32 %v2578, %v2600
        %v2615 = vmul.f32 %v2579, %v2600
        %v2616 = vmul.f32 %v2580, %v2600
        %v2617 = vmul.f32 %v2581, %v2600
        %v2618 = vmul.f32 %v2582, %v2600
        %v2619 = vmul.f32 %v2583, %v2600
        %v2620 = vmul.f32 %v2584, %v2600
        %v2621 = vmul.f32 %v2585, %v2600
        %v2622 = vmul.f32 %v2586, %v2600
        %v2623 = vmul.f32 %v2587, %v2600
        %v2624 = vmul.f32 %v2588, %v2600
        %v2625 = vmul.f32 %v2589, %v2600
        %v2626 = vmul.f32 %v2590, %v2600
        %v2627 = vmul.f32 %v2591, %v2600
        %v2628 = vmul.f32 %v2592, %v2600
        %v2629 = vmul.f32 %v2593, %v2600
        %v2630 = vmul.f32 %v2594, %v2600
        %v2631 = vmul.f32 %v2595, %v2600
        %v2632 = vmul.f32 %v2596, %v2600
        %v2633 = vadd.f32 %v2533, %v2601
        %v2634 = vadd.f32 %v2534, %v2602
        %v2635 = vadd.f32 %v2535, %v2603
        %v2636 = vadd.f32 %v2536, %v2604
        %v2637 = vadd.f32 %v2537, %v2605
        %v2638 = vadd.f32 %v2538, %v2606
        %v2639 = vadd.f32 %v2539, %v2607
        %v2640 = vadd.f32 %v2540, %v2608
        %v2641 = vadd.f32 %v2541, %v2609
        %v2642 = vadd.f32 %v2542, %v2610
        %v2643 = vadd.f32 %v2543, %v2611
        %v2644 = vadd.f32 %v2544, %v2612
        %v2645 = vadd.f32 %v2545, %v2613
        %v2646 = vadd.f32 %v2546, %v2614
        %v2647 = vadd.f32 %v2547, %v2615
        %v2648 = vadd.f32 %v2548, %v2616
        %v2649 = vadd.f32 %v2549, %v2617
        %v2650 = vadd.f32 %v2550, %v2618
        %v2651 = vadd.f32 %v2551, %v2619
        %v2652 = vadd.f32 %v2552, %v2620
        %v2653 = vadd.f32 %v2553, %v2621
        %v2654 = vadd.f32 %v2554, %v2622
        %v2655 = vadd.f32 %v2555, %v2623
        %v2656 = vadd.f32 %v2556, %v2624
        %v2657 = vadd.f32 %v2557, %v2625
        %v2658 = vadd.f32 %v2558, %v2626
        %v2659 = vadd.f32 %v2559, %v2627
        %v2660 = vadd.f32 %v2560, %v2628
        %v2661 = vadd.f32 %v2561, %v2629
        %v2662 = vadd.f32 %v2562, %v2630
        %v2663 = vadd.f32 %v2563, %v2631
        %v2664 = vadd.f32 %v2564, %v2632
        %v2665 = vld [vmem:[%s523 + $0x9] sm:$0xff]
        %v2666 = vld [vmem:[%s523 + $0x11] sm:$0xff]
        %v2667 = vld [vmem:[%s523 + $0x29] sm:$0xff]
        %v2668 = vld [vmem:[%s523 + $0x31] sm:$0xff]
        %v2669 = vld [vmem:[%s523 + $0x49] sm:$0xff]
        %v2670 = vld [vmem:[%s523 + $0x51] sm:$0xff]
        %v2671 = vld [vmem:[%s523 + $0x69] sm:$0xff]
        %v2672 = vld [vmem:[%s523 + $0x71] sm:$0xff]
        %v2673 = vld [vmem:[%s523 + $0x89] sm:$0xff]
        %v2674 = vld [vmem:[%s523 + $0x91] sm:$0xff]
        %v2675 = vld [vmem:[%s523 + $0xa9] sm:$0xff]
        %v2676 = vld [vmem:[%s523 + $0xb1] sm:$0xff]
        %v2677 = vld [vmem:[%s523 + $0xc9] sm:$0xff]
        %v2678 = vld [vmem:[%s523 + $0xd1] sm:$0xff]
        %v2679 = vld [vmem:[%s523 + $0xe9] sm:$0xff]
        %v2680 = vld [vmem:[%s523 + $0xf1] sm:$0xff]
        %v2681 = vld [vmem:[%s523 + $0x109] sm:$0xff]
        %v2682 = vld [vmem:[%s523 + $0x111] sm:$0xff]
        %v2683 = vld [vmem:[%s523 + $0x129] sm:$0xff]
        %v2684 = vld [vmem:[%s523 + $0x131] sm:$0xff]
        %v2685 = vld [vmem:[%s523 + $0x149] sm:$0xff]
        %v2686 = vld [vmem:[%s523 + $0x151] sm:$0xff]
        %v2687 = vld [vmem:[%s523 + $0x169] sm:$0xff]
        %v2688 = vld [vmem:[%s523 + $0x171] sm:$0xff]
        %v2689 = vld [vmem:[%s523 + $0x189] sm:$0xff]
        %v2690 = vld [vmem:[%s523 + $0x191] sm:$0xff]
        %v2691 = vld [vmem:[%s523 + $0x1a9] sm:$0xff]
        %v2692 = vld [vmem:[%s523 + $0x1b1] sm:$0xff]
        %v2693 = vld [vmem:[%s523 + $0x1c9] sm:$0xff]
        %v2694 = vld [vmem:[%s523 + $0x1d1] sm:$0xff]
        %v2695 = vld [vmem:[%s523 + $0x1e9] sm:$0xff]
        %v2696 = vld [vmem:[%s523 + $0x1f1] sm:$0xff]
        %v2697 = vlaneseq
        %v2698 = vshrl.u32 %v2697, 7
        %v2699 = vsub.s32 5, %v2698
        %v2700 = vrot.slane %v2226, %v2699
        %v2701 = vmul.f32 %v2665, %v2700
        %v2702 = vmul.f32 %v2666, %v2700
        %v2703 = vmul.f32 %v2667, %v2700
        %v2704 = vmul.f32 %v2668, %v2700
        %v2705 = vmul.f32 %v2669, %v2700
        %v2706 = vmul.f32 %v2670, %v2700
        %v2707 = vmul.f32 %v2671, %v2700
        %v2708 = vmul.f32 %v2672, %v2700
        %v2709 = vmul.f32 %v2673, %v2700
        %v2710 = vmul.f32 %v2674, %v2700
        %v2711 = vmul.f32 %v2675, %v2700
        %v2712 = vmul.f32 %v2676, %v2700
        %v2713 = vmul.f32 %v2677, %v2700
        %v2714 = vmul.f32 %v2678, %v2700
        %v2715 = vmul.f32 %v2679, %v2700
        %v2716 = vmul.f32 %v2680, %v2700
        %v2717 = vmul.f32 %v2681, %v2700
        %v2718 = vmul.f32 %v2682, %v2700
        %v2719 = vmul.f32 %v2683, %v2700
        %v2720 = vmul.f32 %v2684, %v2700
        %v2721 = vmul.f32 %v2685, %v2700
        %v2722 = vmul.f32 %v2686, %v2700
        %v2723 = vmul.f32 %v2687, %v2700
        %v2724 = vmul.f32 %v2688, %v2700
        %v2725 = vmul.f32 %v2689, %v2700
        %v2726 = vmul.f32 %v2690, %v2700
        %v2727 = vmul.f32 %v2691, %v2700
        %v2728 = vmul.f32 %v2692, %v2700
        %v2729 = vmul.f32 %v2693, %v2700
        %v2730 = vmul.f32 %v2694, %v2700
        %v2731 = vmul.f32 %v2695, %v2700
        %v2732 = vmul.f32 %v2696, %v2700
        %v2733 = vadd.f32 %v2633, %v2701
        %v2734 = vadd.f32 %v2634, %v2702
        %v2735 = vadd.f32 %v2635, %v2703
        %v2736 = vadd.f32 %v2636, %v2704
        %v2737 = vadd.f32 %v2637, %v2705
        %v2738 = vadd.f32 %v2638, %v2706
        %v2739 = vadd.f32 %v2639, %v2707
        %v2740 = vadd.f32 %v2640, %v2708
        %v2741 = vadd.f32 %v2641, %v2709
        %v2742 = vadd.f32 %v2642, %v2710
        %v2743 = vadd.f32 %v2643, %v2711
        %v2744 = vadd.f32 %v2644, %v2712
        %v2745 = vadd.f32 %v2645, %v2713
        %v2746 = vadd.f32 %v2646, %v2714
        %v2747 = vadd.f32 %v2647, %v2715
        %v2748 = vadd.f32 %v2648, %v2716
        %v2749 = vadd.f32 %v2649, %v2717
        %v2750 = vadd.f32 %v2650, %v2718
        %v2751 = vadd.f32 %v2651, %v2719
        %v2752 = vadd.f32 %v2652, %v2720
        %v2753 = vadd.f32 %v2653, %v2721
        %v2754 = vadd.f32 %v2654, %v2722
        %v2755 = vadd.f32 %v2655, %v2723
        %v2756 = vadd.f32 %v2656, %v2724
        %v2757 = vadd.f32 %v2657, %v2725
        %v2758 = vadd.f32 %v2658, %v2726
        %v2759 = vadd.f32 %v2659, %v2727
        %v2760 = vadd.f32 %v2660, %v2728
        %v2761 = vadd.f32 %v2661, %v2729
        %v2762 = vadd.f32 %v2662, %v2730
        %v2763 = vadd.f32 %v2663, %v2731
        %v2764 = vadd.f32 %v2664, %v2732
        %v2765 = vld [vmem:[%s1159 + $0x7] sm:$0xff]
        %v2766 = vld [vmem:[%s1159 + $0xf] sm:$0xff]
        %v2767 = vld [vmem:[%s1159 + $0x27] sm:$0xff]
        %v2768 = vld [vmem:[%s1159 + $0x2f] sm:$0xff]
        %v2769 = vld [vmem:[%s1159 + $0x47] sm:$0xff]
        %v2770 = vld [vmem:[%s1159 + $0x4f] sm:$0xff]
        %v2771 = vld [vmem:[%s1159 + $0x67] sm:$0xff]
        %v2772 = vld [vmem:[%s1159 + $0x6f] sm:$0xff]
        %v2773 = vld [vmem:[%s1159 + $0x87] sm:$0xff]
        %v2774 = vld [vmem:[%s1159 + $0x8f] sm:$0xff]
        %v2775 = vld [vmem:[%s1159 + $0xa7] sm:$0xff]
        %v2776 = vld [vmem:[%s1159 + $0xaf] sm:$0xff]
        %v2777 = vld [vmem:[%s1159 + $0xc7] sm:$0xff]
        %v2778 = vld [vmem:[%s1159 + $0xcf] sm:$0xff]
        %v2779 = vld [vmem:[%s1159 + $0xe7] sm:$0xff]
        %v2780 = vld [vmem:[%s1159 + $0xef] sm:$0xff]
        %v2781 = vld [vmem:[%s1159 + $0x107] sm:$0xff]
        %v2782 = vld [vmem:[%s1159 + $0x10f] sm:$0xff]
        %v2783 = vld [vmem:[%s1159 + $0x127] sm:$0xff]
        %v2784 = vld [vmem:[%s1159 + $0x12f] sm:$0xff]
        %v2785 = vld [vmem:[%s1159 + $0x147] sm:$0xff]
        %v2786 = vld [vmem:[%s1159 + $0x14f] sm:$0xff]
        %v2787 = vld [vmem:[%s1159 + $0x167] sm:$0xff]
        %v2788 = vld [vmem:[%s1159 + $0x16f] sm:$0xff]
        %v2789 = vld [vmem:[%s1159 + $0x187] sm:$0xff]
        %v2790 = vld [vmem:[%s1159 + $0x18f] sm:$0xff]
        %v2791 = vld [vmem:[%s1159 + $0x1a7] sm:$0xff]
        %v2792 = vld [vmem:[%s1159 + $0x1af] sm:$0xff]
        %v2793 = vld [vmem:[%s1159 + $0x1c7] sm:$0xff]
        %v2794 = vld [vmem:[%s1159 + $0x1cf] sm:$0xff]
        %v2795 = vld [vmem:[%s1159 + $0x1e7] sm:$0xff]
        %v2796 = vld [vmem:[%s1159 + $0x1ef] sm:$0xff]
        %v2797 = vlaneseq
        %v2798 = vshrl.u32 %v2797, 7
        %v2799 = vsub.s32 6, %v2798
        %v2800 = vrot.slane %v2226, %v2799
        %v2801 = vmul.f32 %v2765, %v2800
        %v2802 = vmul.f32 %v2766, %v2800
        %v2803 = vmul.f32 %v2767, %v2800
        %v2804 = vmul.f32 %v2768, %v2800
        %v2805 = vmul.f32 %v2769, %v2800
        %v2806 = vmul.f32 %v2770, %v2800
        %v2807 = vmul.f32 %v2771, %v2800
        %v2808 = vmul.f32 %v2772, %v2800
        %v2809 = vmul.f32 %v2773, %v2800
        %v2810 = vmul.f32 %v2774, %v2800
        %v2811 = vmul.f32 %v2775, %v2800
        %v2812 = vmul.f32 %v2776, %v2800
        %v2813 = vmul.f32 %v2777, %v2800
        %v2814 = vmul.f32 %v2778, %v2800
        %v2815 = vmul.f32 %v2779, %v2800
        %v2816 = vmul.f32 %v2780, %v2800
        %v2817 = vmul.f32 %v2781, %v2800
        %v2818 = vmul.f32 %v2782, %v2800
        %v2819 = vmul.f32 %v2783, %v2800
        %v2820 = vmul.f32 %v2784, %v2800
        %v2821 = vmul.f32 %v2785, %v2800
        %v2822 = vmul.f32 %v2786, %v2800
        %v2823 = vmul.f32 %v2787, %v2800
        %v2824 = vmul.f32 %v2788, %v2800
        %v2825 = vmul.f32 %v2789, %v2800
        %v2826 = vmul.f32 %v2790, %v2800
        %v2827 = vmul.f32 %v2791, %v2800
        %v2828 = vmul.f32 %v2792, %v2800
        %v2829 = vmul.f32 %v2793, %v2800
        %v2830 = vmul.f32 %v2794, %v2800
        %v2831 = vmul.f32 %v2795, %v2800
        %v2832 = vmul.f32 %v2796, %v2800
        %v2833 = vadd.f32 %v2733, %v2801
        %v2834 = vadd.f32 %v2734, %v2802
        %v2835 = vadd.f32 %v2735, %v2803
        %v2836 = vadd.f32 %v2736, %v2804
        %v2837 = vadd.f32 %v2737, %v2805
        %v2838 = vadd.f32 %v2738, %v2806
        %v2839 = vadd.f32 %v2739, %v2807
        %v2840 = vadd.f32 %v2740, %v2808
        %v2841 = vadd.f32 %v2741, %v2809
        %v2842 = vadd.f32 %v2742, %v2810
        %v2843 = vadd.f32 %v2743, %v2811
        %v2844 = vadd.f32 %v2744, %v2812
        %v2845 = vadd.f32 %v2745, %v2813
        %v2846 = vadd.f32 %v2746, %v2814
        %v2847 = vadd.f32 %v2747, %v2815
        %v2848 = vadd.f32 %v2748, %v2816
        %v2849 = vadd.f32 %v2749, %v2817
        %v2850 = vadd.f32 %v2750, %v2818
        %v2851 = vadd.f32 %v2751, %v2819
        %v2852 = vadd.f32 %v2752, %v2820
        %v2853 = vadd.f32 %v2753, %v2821
        %v2854 = vadd.f32 %v2754, %v2822
        %v2855 = vadd.f32 %v2755, %v2823
        %v2856 = vadd.f32 %v2756, %v2824
        %v2857 = vadd.f32 %v2757, %v2825
        %v2858 = vadd.f32 %v2758, %v2826
        %v2859 = vadd.f32 %v2759, %v2827
        %v2860 = vadd.f32 %v2760, %v2828
        %v2861 = vadd.f32 %v2761, %v2829
        %v2862 = vadd.f32 %v2762, %v2830
        %v2863 = vadd.f32 %v2763, %v2831
        %v2864 = vadd.f32 %v2764, %v2832
        %v2865 = vld [vmem:[%s1159 + $0x8] sm:$0xff]
        %v2866 = vld [vmem:[%s1159 + $0x10] sm:$0xff]
        %v2867 = vld [vmem:[%s1159 + $0x28] sm:$0xff]
        %v2868 = vld [vmem:[%s1159 + $0x30] sm:$0xff]
        %v2869 = vld [vmem:[%s1159 + $0x48] sm:$0xff]
        %v2870 = vld [vmem:[%s1159 + $0x50] sm:$0xff]
        %v2871 = vld [vmem:[%s1159 + $0x68] sm:$0xff]
        %v2872 = vld [vmem:[%s1159 + $0x70] sm:$0xff]
        %v2873 = vld [vmem:[%s1159 + $0x88] sm:$0xff]
        %v2874 = vld [vmem:[%s1159 + $0x90] sm:$0xff]
        %v2875 = vld [vmem:[%s1159 + $0xa8] sm:$0xff]
        %v2876 = vld [vmem:[%s1159 + $0xb0] sm:$0xff]
        %v2877 = vld [vmem:[%s1159 + $0xc8] sm:$0xff]
        %v2878 = vld [vmem:[%s1159 + $0xd0] sm:$0xff]
        %v2879 = vld [vmem:[%s1159 + $0xe8] sm:$0xff]
        %v2880 = vld [vmem:[%s1159 + $0xf0] sm:$0xff]
        %v2881 = vld [vmem:[%s1159 + $0x108] sm:$0xff]
        %v2882 = vld [vmem:[%s1159 + $0x110] sm:$0xff]
        %v2883 = vld [vmem:[%s1159 + $0x128] sm:$0xff]
        %v2884 = vld [vmem:[%s1159 + $0x130] sm:$0xff]
        %v2885 = vld [vmem:[%s1159 + $0x148] sm:$0xff]
        %v2886 = vld [vmem:[%s1159 + $0x150] sm:$0xff]
        %v2887 = vld [vmem:[%s1159 + $0x168] sm:$0xff]
        %v2888 = vld [vmem:[%s1159 + $0x170] sm:$0xff]
        %v2889 = vld [vmem:[%s1159 + $0x188] sm:$0xff]
        %v2890 = vld [vmem:[%s1159 + $0x190] sm:$0xff]
        %v2891 = vld [vmem:[%s1159 + $0x1a8] sm:$0xff]
        %v2892 = vld [vmem:[%s1159 + $0x1b0] sm:$0xff]
        %v2893 = vld [vmem:[%s1159 + $0x1c8] sm:$0xff]
        %v2894 = vld [vmem:[%s1159 + $0x1d0] sm:$0xff]
        %v2895 = vld [vmem:[%s1159 + $0x1e8] sm:$0xff]
        %v2896 = vld [vmem:[%s1159 + $0x1f0] sm:$0xff]
        %v2897 = vlaneseq
        %v2898 = vshrl.u32 %v2897, 7
        %v2899 = vsub.s32 7, %v2898
        %v2900 = vrot.slane %v2226, %v2899
        %v2901 = vmul.f32 %v2865, %v2900
        %v2902 = vmul.f32 %v2866, %v2900
        %v2903 = vmul.f32 %v2867, %v2900
        %v2904 = vmul.f32 %v2868, %v2900
        %v2905 = vmul.f32 %v2869, %v2900
        %v2906 = vmul.f32 %v2870, %v2900
        %v2907 = vmul.f32 %v2871, %v2900
        %v2908 = vmul.f32 %v2872, %v2900
        %v2909 = vmul.f32 %v2873, %v2900
        %v2910 = vmul.f32 %v2874, %v2900
        %v2911 = vmul.f32 %v2875, %v2900
        %v2912 = vmul.f32 %v2876, %v2900
        %v2913 = vmul.f32 %v2877, %v2900
        %v2914 = vmul.f32 %v2878, %v2900
        %v2915 = vmul.f32 %v2879, %v2900
        %v2916 = vmul.f32 %v2880, %v2900
        %v2917 = vmul.f32 %v2881, %v2900
        %v2918 = vmul.f32 %v2882, %v2900
        %v2919 = vmul.f32 %v2883, %v2900
        %v2920 = vmul.f32 %v2884, %v2900
        %v2921 = vmul.f32 %v2885, %v2900
        %v2922 = vmul.f32 %v2886, %v2900
        %v2923 = vmul.f32 %v2887, %v2900
        %v2924 = vmul.f32 %v2888, %v2900
        %v2925 = vmul.f32 %v2889, %v2900
        %v2926 = vmul.f32 %v2890, %v2900
        %v2927 = vmul.f32 %v2891, %v2900
        %v2928 = vmul.f32 %v2892, %v2900
        %v2929 = vmul.f32 %v2893, %v2900
        %v2930 = vmul.f32 %v2894, %v2900
        %v2931 = vmul.f32 %v2895, %v2900
        %v2932 = vmul.f32 %v2896, %v2900
        %v2933 = vadd.f32 %v2833, %v2901
        %v2934 = vadd.f32 %v2834, %v2902
        %v2935 = vadd.f32 %v2835, %v2903
        %v2936 = vadd.f32 %v2836, %v2904
        %v2937 = vadd.f32 %v2837, %v2905
        %v2938 = vadd.f32 %v2838, %v2906
        %v2939 = vadd.f32 %v2839, %v2907
        %v2940 = vadd.f32 %v2840, %v2908
        %v2941 = vadd.f32 %v2841, %v2909
        %v2942 = vadd.f32 %v2842, %v2910
        %v2943 = vadd.f32 %v2843, %v2911
        %v2944 = vadd.f32 %v2844, %v2912
        %v2945 = vadd.f32 %v2845, %v2913
        %v2946 = vadd.f32 %v2846, %v2914
        %v2947 = vadd.f32 %v2847, %v2915
        %v2948 = vadd.f32 %v2848, %v2916
        %v2949 = vadd.f32 %v2849, %v2917
        %v2950 = vadd.f32 %v2850, %v2918
        %v2951 = vadd.f32 %v2851, %v2919
        %v2952 = vadd.f32 %v2852, %v2920
        %v2953 = vadd.f32 %v2853, %v2921
        %v2954 = vadd.f32 %v2854, %v2922
        %v2955 = vadd.f32 %v2855, %v2923
        %v2956 = vadd.f32 %v2856, %v2924
        %v2957 = vadd.f32 %v2857, %v2925
        %v2958 = vadd.f32 %v2858, %v2926
        %v2959 = vadd.f32 %v2859, %v2927
        %v2960 = vadd.f32 %v2860, %v2928
        %v2961 = vadd.f32 %v2861, %v2929
        %v2962 = vadd.f32 %v2862, %v2930
        %v2963 = vadd.f32 %v2863, %v2931
        %v2964 = vadd.f32 %v2864, %v2932
        %v2965 = vld [vmem:[%s1159 + $0x9] sm:$0xff]
        %v2966 = vld [vmem:[%s1159 + $0x11] sm:$0xff]
        %v2967 = vld [vmem:[%s1159 + $0x29] sm:$0xff]
        %v2968 = vld [vmem:[%s1159 + $0x31] sm:$0xff]
        %v2969 = vld [vmem:[%s1159 + $0x49] sm:$0xff]
        %v2970 = vld [vmem:[%s1159 + $0x51] sm:$0xff]
        %v2971 = vld [vmem:[%s1159 + $0x69] sm:$0xff]
        %v2972 = vld [vmem:[%s1159 + $0x71] sm:$0xff]
        %v2973 = vld [vmem:[%s1159 + $0x89] sm:$0xff]
        %v2974 = vld [vmem:[%s1159 + $0x91] sm:$0xff]
        %v2975 = vld [vmem:[%s1159 + $0xa9] sm:$0xff]
        %v2976 = vld [vmem:[%s1159 + $0xb1] sm:$0xff]
        %v2977 = vld [vmem:[%s1159 + $0xc9] sm:$0xff]
        %v2978 = vld [vmem:[%s1159 + $0xd1] sm:$0xff]
        %v2979 = vld [vmem:[%s1159 + $0xe9] sm:$0xff]
        %v2980 = vld [vmem:[%s1159 + $0xf1] sm:$0xff]
        %v2981 = vld [vmem:[%s1159 + $0x109] sm:$0xff]
        %v2982 = vld [vmem:[%s1159 + $0x111] sm:$0xff]
        %v2983 = vld [vmem:[%s1159 + $0x129] sm:$0xff]
        %v2984 = vld [vmem:[%s1159 + $0x131] sm:$0xff]
        %v2985 = vld [vmem:[%s1159 + $0x149] sm:$0xff]
        %v2986 = vld [vmem:[%s1159 + $0x151] sm:$0xff]
        %v2987 = vld [vmem:[%s1159 + $0x169] sm:$0xff]
        %v2988 = vld [vmem:[%s1159 + $0x171] sm:$0xff]
        %v2989 = vld [vmem:[%s1159 + $0x189] sm:$0xff]
        %v2990 = vld [vmem:[%s1159 + $0x191] sm:$0xff]
        %v2991 = vld [vmem:[%s1159 + $0x1a9] sm:$0xff]
        %v2992 = vld [vmem:[%s1159 + $0x1b1] sm:$0xff]
        %v2993 = vld [vmem:[%s1159 + $0x1c9] sm:$0xff]
        %v2994 = vld [vmem:[%s1159 + $0x1d1] sm:$0xff]
        %v2995 = vld [vmem:[%s1159 + $0x1e9] sm:$0xff]
        %v2996 = vld [vmem:[%s1159 + $0x1f1] sm:$0xff]
        %v2997 = vlaneseq
        %v2998 = vshrl.u32 %v2997, 7
        %v2999 = vsub.s32 0, %v2998
        %v3000 = vrot.slane %v2227, %v2999
        %v3001 = vmul.f32 %v2965, %v3000
        %v3002 = vmul.f32 %v2966, %v3000
        %v3003 = vmul.f32 %v2967, %v3000
        %v3004 = vmul.f32 %v2968, %v3000
        %v3005 = vmul.f32 %v2969, %v3000
        %v3006 = vmul.f32 %v2970, %v3000
        %v3007 = vmul.f32 %v2971, %v3000
        %v3008 = vmul.f32 %v2972, %v3000
        %v3009 = vmul.f32 %v2973, %v3000
        %v3010 = vmul.f32 %v2974, %v3000
        %v3011 = vmul.f32 %v2975, %v3000
        %v3012 = vmul.f32 %v2976, %v3000
        %v3013 = vmul.f32 %v2977, %v3000
        %v3014 = vmul.f32 %v2978, %v3000
        %v3015 = vmul.f32 %v2979, %v3000
        %v3016 = vmul.f32 %v2980, %v3000
        %v3017 = vmul.f32 %v2981, %v3000
        %v3018 = vmul.f32 %v2982, %v3000
        %v3019 = vmul.f32 %v2983, %v3000
        %v3020 = vmul.f32 %v2984, %v3000
        %v3021 = vmul.f32 %v2985, %v3000
        %v3022 = vmul.f32 %v2986, %v3000
        %v3023 = vmul.f32 %v2987, %v3000
        %v3024 = vmul.f32 %v2988, %v3000
        %v3025 = vmul.f32 %v2989, %v3000
        %v3026 = vmul.f32 %v2990, %v3000
        %v3027 = vmul.f32 %v2991, %v3000
        %v3028 = vmul.f32 %v2992, %v3000
        %v3029 = vmul.f32 %v2993, %v3000
        %v3030 = vmul.f32 %v2994, %v3000
        %v3031 = vmul.f32 %v2995, %v3000
        %v3032 = vmul.f32 %v2996, %v3000
        %v3033 = vadd.f32 %v2933, %v3001
        %v3034 = vadd.f32 %v2934, %v3002
        %v3035 = vadd.f32 %v2935, %v3003
        %v3036 = vadd.f32 %v2936, %v3004
        %v3037 = vadd.f32 %v2937, %v3005
        %v3038 = vadd.f32 %v2938, %v3006
        %v3039 = vadd.f32 %v2939, %v3007
        %v3040 = vadd.f32 %v2940, %v3008
        %v3041 = vadd.f32 %v2941, %v3009
        %v3042 = vadd.f32 %v2942, %v3010
        %v3043 = vadd.f32 %v2943, %v3011
        %v3044 = vadd.f32 %v2944, %v3012
        %v3045 = vadd.f32 %v2945, %v3013
        %v3046 = vadd.f32 %v2946, %v3014
        %v3047 = vadd.f32 %v2947, %v3015
        %v3048 = vadd.f32 %v2948, %v3016
        %v3049 = vadd.f32 %v2949, %v3017
        %v3050 = vadd.f32 %v2950, %v3018
        %v3051 = vadd.f32 %v2951, %v3019
        %v3052 = vadd.f32 %v2952, %v3020
        %v3053 = vadd.f32 %v2953, %v3021
        %v3054 = vadd.f32 %v2954, %v3022
        %v3055 = vadd.f32 %v2955, %v3023
        %v3056 = vadd.f32 %v2956, %v3024
        %v3057 = vadd.f32 %v2957, %v3025
        %v3058 = vadd.f32 %v2958, %v3026
        %v3059 = vadd.f32 %v2959, %v3027
        %v3060 = vadd.f32 %v2960, %v3028
        %v3061 = vadd.f32 %v2961, %v3029
        %v3062 = vadd.f32 %v2962, %v3030
        %v3063 = vadd.f32 %v2963, %v3031
        %v3064 = vadd.f32 %v2964, %v3032
        %v3066 = vlaneseq
        %v3067 = vshrl.u32 %v3066, 7
        %v3068 = vsub.s32 0, %v3067
        %v3069 = vrot.slane %v2228, %v3068
        %v3071 = vadd.f32 %v3033, %v3069
        %v3072 = vadd.f32 %v3034, %v3069
        %v3073 = vadd.f32 %v3035, %v3069
        %v3074 = vadd.f32 %v3036, %v3069
        %v3075 = vadd.f32 %v3037, %v3069
        %v3076 = vadd.f32 %v3038, %v3069
        %v3077 = vadd.f32 %v3039, %v3069
        %v3078 = vadd.f32 %v3040, %v3069
        %v3079 = vadd.f32 %v3041, %v3069
        %v3080 = vadd.f32 %v3042, %v3069
        %v3081 = vadd.f32 %v3043, %v3069
        %v3082 = vadd.f32 %v3044, %v3069
        %v3083 = vadd.f32 %v3045, %v3069
        %v3084 = vadd.f32 %v3046, %v3069
        %v3085 = vadd.f32 %v3047, %v3069
        %v3086 = vadd.f32 %v3048, %v3069
        %v3087 = vadd.f32 %v3049, %v3069
        %v3088 = vadd.f32 %v3050, %v3069
        %v3089 = vadd.f32 %v3051, %v3069
        %v3090 = vadd.f32 %v3052, %v3069
        %v3091 = vadd.f32 %v3053, %v3069
        %v3092 = vadd.f32 %v3054, %v3069
        %v3093 = vadd.f32 %v3055, %v3069
        %v3094 = vadd.f32 %v3056, %v3069
        %v3095 = vadd.f32 %v3057, %v3069
        %v3096 = vadd.f32 %v3058, %v3069
        %v3097 = vadd.f32 %v3059, %v3069
        %v3098 = vadd.f32 %v3060, %v3069
        %v3099 = vadd.f32 %v3061, %v3069
        %v3100 = vadd.f32 %v3062, %v3069
        %v3101 = vadd.f32 %v3063, %v3069
        %v3102 = vadd.f32 %v3064, %v3069
        %v3103 = vxor.u32 %v3071, 2147483648
        %v3104 = vxor.u32 %v3072, 2147483648
        %v3105 = vxor.u32 %v3073, 2147483648
        %v3106 = vxor.u32 %v3074, 2147483648
        %v3107 = vxor.u32 %v3075, 2147483648
        %v3108 = vxor.u32 %v3076, 2147483648
        %v3109 = vxor.u32 %v3077, 2147483648
        %v3110 = vxor.u32 %v3078, 2147483648
        %v3111 = vxor.u32 %v3079, 2147483648
        %v3112 = vxor.u32 %v3080, 2147483648
        %v3113 = vxor.u32 %v3081, 2147483648
        %v3114 = vxor.u32 %v3082, 2147483648
        %v3115 = vxor.u32 %v3083, 2147483648
        %v3116 = vxor.u32 %v3084, 2147483648
        %v3117 = vxor.u32 %v3085, 2147483648
        %v3118 = vxor.u32 %v3086, 2147483648
        %v3119 = vxor.u32 %v3087, 2147483648
        %v3120 = vxor.u32 %v3088, 2147483648
        %v3121 = vxor.u32 %v3089, 2147483648
        %v3122 = vxor.u32 %v3090, 2147483648
        %v3123 = vxor.u32 %v3091, 2147483648
        %v3124 = vxor.u32 %v3092, 2147483648
        %v3125 = vxor.u32 %v3093, 2147483648
        %v3126 = vxor.u32 %v3094, 2147483648
        %v3127 = vxor.u32 %v3095, 2147483648
        %v3128 = vxor.u32 %v3096, 2147483648
        %v3129 = vxor.u32 %v3097, 2147483648
        %v3130 = vxor.u32 %v3098, 2147483648
        %v3131 = vxor.u32 %v3099, 2147483648
        %v3132 = vxor.u32 %v3100, 2147483648
        %v3133 = vxor.u32 %v3101, 2147483648
        %v3134 = vxor.u32 %v3102, 2147483648
        %v3135 = vmul.f32 %v3103, 1.442695
        %v3136 = vpow.pop %v3135
        %v3137 = vmul.f32 %v3104, 1.442695
        %v3138 = vpow.pop %v3137
        %v3139 = vmul.f32 %v3105, 1.442695
        %v3140 = vpow.pop %v3139
        %v3141 = vmul.f32 %v3106, 1.442695
        %v3142 = vpow.pop %v3141
        %v3143 = vmul.f32 %v3107, 1.442695
        %v3144 = vpow.pop %v3143
        %v3145 = vmul.f32 %v3108, 1.442695
        %v3146 = vpow.pop %v3145
        %v3147 = vmul.f32 %v3109, 1.442695
        %v3148 = vpow.pop %v3147
        %v3149 = vmul.f32 %v3110, 1.442695
        %v3150 = vpow.pop %v3149
        %v3151 = vmul.f32 %v3111, 1.442695
        %v3152 = vpow.pop %v3151
        %v3153 = vmul.f32 %v3112, 1.442695
        %v3154 = vpow.pop %v3153
        %v3155 = vmul.f32 %v3113, 1.442695
        %v3156 = vpow.pop %v3155
        %v3157 = vmul.f32 %v3114, 1.442695
        %v3158 = vpow.pop %v3157
        %v3159 = vmul.f32 %v3115, 1.442695
        %v3160 = vpow.pop %v3159
        %v3161 = vmul.f32 %v3116, 1.442695
        %v3162 = vpow.pop %v3161
        %v3163 = vmul.f32 %v3117, 1.442695
        %v3164 = vpow.pop %v3163
        %v3165 = vmul.f32 %v3118, 1.442695
        %v3166 = vpow.pop %v3165
        %v3167 = vmul.f32 %v3119, 1.442695
        %v3168 = vpow.pop %v3167
        %v3169 = vmul.f32 %v3120, 1.442695
        %v3170 = vpow.pop %v3169
        %v3171 = vmul.f32 %v3121, 1.442695
        %v3172 = vpow.pop %v3171
        %v3173 = vmul.f32 %v3122, 1.442695
        %v3174 = vpow.pop %v3173
        %v3175 = vmul.f32 %v3123, 1.442695
        %v3176 = vpow.pop %v3175
        %v3177 = vmul.f32 %v3124, 1.442695
        %v3178 = vpow.pop %v3177
        %v3179 = vmul.f32 %v3125, 1.442695
        %v3180 = vpow.pop %v3179
        %v3181 = vmul.f32 %v3126, 1.442695
        %v3182 = vpow.pop %v3181
        %v3183 = vmul.f32 %v3127, 1.442695
        %v3184 = vpow.pop %v3183
        %v3185 = vmul.f32 %v3128, 1.442695
        %v3186 = vpow.pop %v3185
        %v3187 = vmul.f32 %v3129, 1.442695
        %v3188 = vpow.pop %v3187
        %v3189 = vmul.f32 %v3130, 1.442695
        %v3190 = vpow.pop %v3189
        %v3191 = vmul.f32 %v3131, 1.442695
        %v3192 = vpow.pop %v3191
        %v3193 = vmul.f32 %v3132, 1.442695
        %v3194 = vpow.pop %v3193
        %v3195 = vmul.f32 %v3133, 1.442695
        %v3196 = vpow.pop %v3195
        %v3197 = vmul.f32 %v3134, 1.442695
        %v3198 = vpow.pop %v3197
        %v3199 = vadd.f32 %v3136, 1.0
        %v3200 = vadd.f32 %v3138, 1.0
        %v3201 = vadd.f32 %v3140, 1.0
        %v3202 = vadd.f32 %v3142, 1.0
        %v3203 = vadd.f32 %v3144, 1.0
        %v3204 = vadd.f32 %v3146, 1.0
        %v3205 = vadd.f32 %v3148, 1.0
        %v3206 = vadd.f32 %v3150, 1.0
        %v3207 = vadd.f32 %v3152, 1.0
        %v3208 = vadd.f32 %v3154, 1.0
        %v3209 = vadd.f32 %v3156, 1.0
        %v3210 = vadd.f32 %v3158, 1.0
        %v3211 = vadd.f32 %v3160, 1.0
        %v3212 = vadd.f32 %v3162, 1.0
        %v3213 = vadd.f32 %v3164, 1.0
        %v3214 = vadd.f32 %v3166, 1.0
        %v3215 = vadd.f32 %v3168, 1.0
        %v3216 = vadd.f32 %v3170, 1.0
        %v3217 = vadd.f32 %v3172, 1.0
        %v3218 = vadd.f32 %v3174, 1.0
        %v3219 = vadd.f32 %v3176, 1.0
        %v3220 = vadd.f32 %v3178, 1.0
        %v3221 = vadd.f32 %v3180, 1.0
        %v3222 = vadd.f32 %v3182, 1.0
        %v3223 = vadd.f32 %v3184, 1.0
        %v3224 = vadd.f32 %v3186, 1.0
        %v3225 = vadd.f32 %v3188, 1.0
        %v3226 = vadd.f32 %v3190, 1.0
        %v3227 = vadd.f32 %v3192, 1.0
        %v3228 = vadd.f32 %v3194, 1.0
        %v3229 = vadd.f32 %v3196, 1.0
        %v3230 = vadd.f32 %v3198, 1.0
        %v3231 = vrcp.pop %v3199
        %v3232 = vmul.f32 1.0, %v3231
        %v3233 = vrcp.pop %v3200
        %v3234 = vmul.f32 1.0, %v3233
        %v3235 = vrcp.pop %v3201
        %v3236 = vmul.f32 1.0, %v3235
        %v3237 = vrcp.pop %v3202
        %v3238 = vmul.f32 1.0, %v3237
        %v3239 = vrcp.pop %v3203
        %v3240 = vmul.f32 1.0, %v3239
        %v3241 = vrcp.pop %v3204
        %v3242 = vmul.f32 1.0, %v3241
        %v3243 = vrcp.pop %v3205
        %v3244 = vmul.f32 1.0, %v3243
        %v3245 = vrcp.pop %v3206
        %v3246 = vmul.f32 1.0, %v3245
        %v3247 = vrcp.pop %v3207
        %v3248 = vmul.f32 1.0, %v3247
        %v3249 = vrcp.pop %v3208
        %v3250 = vmul.f32 1.0, %v3249
        %v3251 = vrcp.pop %v3209
        %v3252 = vmul.f32 1.0, %v3251
        %v3253 = vrcp.pop %v3210
        %v3254 = vmul.f32 1.0, %v3253
        %v3255 = vrcp.pop %v3211
        %v3256 = vmul.f32 1.0, %v3255
        %v3257 = vrcp.pop %v3212
        %v3258 = vmul.f32 1.0, %v3257
        %v3259 = vrcp.pop %v3213
        %v3260 = vmul.f32 1.0, %v3259
        %v3261 = vrcp.pop %v3214
        %v3262 = vmul.f32 1.0, %v3261
        %v3263 = vrcp.pop %v3215
        %v3264 = vmul.f32 1.0, %v3263
        %v3265 = vrcp.pop %v3216
        %v3266 = vmul.f32 1.0, %v3265
        %v3267 = vrcp.pop %v3217
        %v3268 = vmul.f32 1.0, %v3267
        %v3269 = vrcp.pop %v3218
        %v3270 = vmul.f32 1.0, %v3269
        %v3271 = vrcp.pop %v3219
        %v3272 = vmul.f32 1.0, %v3271
        %v3273 = vrcp.pop %v3220
        %v3274 = vmul.f32 1.0, %v3273
        %v3275 = vrcp.pop %v3221
        %v3276 = vmul.f32 1.0, %v3275
        %v3277 = vrcp.pop %v3222
        %v3278 = vmul.f32 1.0, %v3277
        %v3279 = vrcp.pop %v3223
        %v3280 = vmul.f32 1.0, %v3279
        %v3281 = vrcp.pop %v3224
        %v3282 = vmul.f32 1.0, %v3281
        %v3283 = vrcp.pop %v3225
        %v3284 = vmul.f32 1.0, %v3283
        %v3285 = vrcp.pop %v3226
        %v3286 = vmul.f32 1.0, %v3285
        %v3287 = vrcp.pop %v3227
        %v3288 = vmul.f32 1.0, %v3287
        %v3289 = vrcp.pop %v3228
        %v3290 = vmul.f32 1.0, %v3289
        %v3291 = vrcp.pop %v3229
        %v3292 = vmul.f32 1.0, %v3291
        %v3293 = vrcp.pop %v3230
        %v3294 = vmul.f32 1.0, %v3293
        %v3295 = vmul.f32 %v3071, %v3232
        %v3296 = vmul.f32 %v3072, %v3234
        %v3297 = vmul.f32 %v3073, %v3236
        %v3298 = vmul.f32 %v3074, %v3238
        %v3299 = vmul.f32 %v3075, %v3240
        %v3300 = vmul.f32 %v3076, %v3242
        %v3301 = vmul.f32 %v3077, %v3244
        %v3302 = vmul.f32 %v3078, %v3246
        %v3303 = vmul.f32 %v3079, %v3248
        %v3304 = vmul.f32 %v3080, %v3250
        %v3305 = vmul.f32 %v3081, %v3252
        %v3306 = vmul.f32 %v3082, %v3254
        %v3307 = vmul.f32 %v3083, %v3256
        %v3308 = vmul.f32 %v3084, %v3258
        %v3309 = vmul.f32 %v3085, %v3260
        %v3310 = vmul.f32 %v3086, %v3262
        %v3311 = vmul.f32 %v3087, %v3264
        %v3312 = vmul.f32 %v3088, %v3266
        %v3313 = vmul.f32 %v3089, %v3268
        %v3314 = vmul.f32 %v3090, %v3270
        %v3315 = vmul.f32 %v3091, %v3272
        %v3316 = vmul.f32 %v3092, %v3274
        %v3317 = vmul.f32 %v3093, %v3276
        %v3318 = vmul.f32 %v3094, %v3278
        %v3319 = vmul.f32 %v3095, %v3280
        %v3320 = vmul.f32 %v3096, %v3282
        %v3321 = vmul.f32 %v3097, %v3284
        %v3322 = vmul.f32 %v3098, %v3286
        %v3323 = vmul.f32 %v3099, %v3288
        %v3324 = vmul.f32 %v3100, %v3290
        %v3325 = vmul.f32 %v3101, %v3292
        %v3326 = vmul.f32 %v3102, %v3294
        %v3327 = vpack.c.bf16 %v3296, %v3295
        %v3328 = vpack.c.bf16 %v3298, %v3297
        %v3329 = vpack.c.bf16 %v3300, %v3299
        %v3330 = vpack.c.bf16 %v3302, %v3301
        %v3331 = vpack.c.bf16 %v3304, %v3303
        %v3332 = vpack.c.bf16 %v3306, %v3305
        %v3333 = vpack.c.bf16 %v3308, %v3307
        %v3334 = vpack.c.bf16 %v3310, %v3309
        %v3335 = vpack.c.bf16 %v3312, %v3311
        %v3336 = vpack.c.bf16 %v3314, %v3313
        %v3337 = vpack.c.bf16 %v3316, %v3315
        %v3338 = vpack.c.bf16 %v3318, %v3317
        %v3339 = vpack.c.bf16 %v3320, %v3319
        %v3340 = vpack.c.bf16 %v3322, %v3321
        %v3341 = vpack.c.bf16 %v3324, %v3323
        %v3342 = vpack.c.bf16 %v3326, %v3325
        %v3343 = vld [vmem:[#allocation15] sm:$0xf]
        %v3344 = vld [vmem:[#allocation15 + $0x4] sm:$0xf]
        %v3345 = vld [vmem:[#allocation15 + $0x8] sm:$0xf]
        %v3346 = vld [vmem:[#allocation15 + $0xc] sm:$0xf]
        %v3347 = vld [vmem:[#allocation15 + $0x10] sm:$0xf]
        %v3348 = vld [vmem:[#allocation15 + $0x14] sm:$0xf]
        %v3349 = vld [vmem:[#allocation15 + $0x18] sm:$0xf]
        %v3350 = vld [vmem:[#allocation15 + $0x1c] sm:$0xf]
        %v3351 = vld [vmem:[#allocation15 + $0x20] sm:$0xf]
        %v3352 = vld [vmem:[#allocation15 + $0x24] sm:$0xf]
        %v3353 = vld [vmem:[#allocation15 + $0x28] sm:$0xf]
        %v3354 = vld [vmem:[#allocation15 + $0x2c] sm:$0xf]
        %v3355 = vld [vmem:[#allocation15 + $0x30] sm:$0xf]
        %v3356 = vld [vmem:[#allocation15 + $0x34] sm:$0xf]
        %v3357 = vld [vmem:[#allocation15 + $0x38] sm:$0xf]
        %v3358 = vld [vmem:[#allocation15 + $0x3c] sm:$0xf]
        %v3359 = vld [vmem:[#allocation17] sm:$0x1]
        %v3361 = vlaneseq
        %v3362 = vshrl.u32 %v3361, 7
        %v3363 = vsub.s32 0, %v3362
        %v3364 = vrot.slane %v3359, %v3363
        %v3382 = vunpack.c.l.b16 %v3343
        %v3383 = vunpack.c.l.b16 %v3344
        %v3384 = vunpack.c.l.b16 %v3345
        %v3385 = vunpack.c.l.b16 %v3346
        %v3386 = vunpack.c.l.b16 %v3347
        %v3387 = vunpack.c.l.b16 %v3348
        %v3388 = vunpack.c.l.b16 %v3349
        %v3389 = vunpack.c.l.b16 %v3350
        %v3390 = vunpack.c.l.b16 %v3351
        %v3391 = vunpack.c.l.b16 %v3352
        %v3392 = vunpack.c.l.b16 %v3353
        %v3393 = vunpack.c.l.b16 %v3354
        %v3394 = vunpack.c.l.b16 %v3355
        %v3395 = vunpack.c.l.b16 %v3356
        %v3396 = vunpack.c.l.b16 %v3357
        %v3397 = vunpack.c.l.b16 %v3358
        %v3398 = vpack.c.b16 %v3383, %v3382
        %v3399 = vpack.c.b16 %v3385, %v3384
        %v3400 = vpack.c.b16 %v3387, %v3386
        %v3401 = vpack.c.b16 %v3389, %v3388
        %v3402 = vpack.c.b16 %v3391, %v3390
        %v3403 = vpack.c.b16 %v3393, %v3392
        %v3404 = vpack.c.b16 %v3395, %v3394
        %v3405 = vpack.c.b16 %v3397, %v3396
        %3414 = vmatprep.subr.bf16.mxu0 0
        %3415 = vmatpush1.bf16.msra.mxu0 %v3405
        %3416 = vmatprep.subr.bf16.mxu0 0
        %3417 = vmatpush1.bf16.msra.mxu0 %v3404
        %3418 = vmatprep.subr.bf16.mxu0 0
        %3419 = vmatpush1.bf16.msra.mxu0 %v3403
        %3420 = vmatprep.subr.bf16.mxu0 0
        %3421 = vmatpush1.bf16.msra.mxu0 %v3402
        %3422 = vmatprep.subr.bf16.mxu0 0
        %3423 = vmatpush1.bf16.msra.mxu0 %v3401
        %3424 = vmatprep.subr.bf16.mxu0 0
        %3425 = vmatpush1.bf16.msra.mxu0 %v3400
        %3426 = vmatprep.subr.bf16.mxu0 0
        %3427 = vmatpush1.bf16.msra.mxu0 %v3399
        %3428 = vmatprep.subr.bf16.mxu0 0
        %3429 = vmatpush1.bf16.msra.mxu0 %v3398
        %3430 = vmatprep.subr.bf16.mxu0 0
        %3431 = vmatpush2.bf16.msra.mxu0 0
        %3432 = vmatprep.subr.bf16.mxu0 0
        %3433 = vmatpush2.bf16.msra.mxu0 0
        %3434 = vmatprep.subr.bf16.mxu0 0
        %3435 = vmatpush2.bf16.msra.mxu0 0
        %3436 = vmatprep.subr.bf16.mxu0 0
        %3437 = vmatpush2.bf16.msra.mxu0 0
        %3438 = vmatprep.subr.bf16.mxu0 0
        %3439 = vmatpush2.bf16.msra.mxu0 0
        %3440 = vmatprep.subr.bf16.mxu0 0
        %3441 = vmatpush2.bf16.msra.mxu0 0
        %3442 = vmatprep.subr.bf16.mxu0 0
        %3443 = vmatpush2.bf16.msra.mxu0 0
        %3444 = vmatprep.subr.bf16.mxu0 0
        %3445 = vmatpush2.bf16.msra.mxu0 0
        %3446 = vmatprep.mubr.bf16.mxu0 0
        %3447 = vmatmul.mubr.bf16.gmra.mxu0 %v3327
        %v3448 = vpop.f32.mrf.mxu0
        %v3449 = vadd.f32 %v3364, %v3448
        %v3450 = vpop.f32.mrf.mxu0
        %v3451 = vpop.f32.mrf.mxu0
        %v3452 = vadd.f32 %v3364, %v3451
        %v3453 = vpop.f32.mrf.mxu0
        %3454 = vmatprep.mubr.bf16.mxu0 0
        %3455 = vmatmul.mubr.bf16.gmra.mxu0 %v3328
        %v3456 = vpop.f32.mrf.mxu0
        %v3457 = vadd.f32 %v3364, %v3456
        %v3458 = vpop.f32.mrf.mxu0
        %v3459 = vpop.f32.mrf.mxu0
        %v3460 = vadd.f32 %v3364, %v3459
        %v3461 = vpop.f32.mrf.mxu0
        %3462 = vmatprep.mubr.bf16.mxu0 0
        %3463 = vmatmul.mubr.bf16.gmra.mxu0 %v3329
        %v3464 = vpop.f32.mrf.mxu0
        %v3465 = vadd.f32 %v3364, %v3464
        %v3466 = vpop.f32.mrf.mxu0
        %v3467 = vpop.f32.mrf.mxu0
        %v3468 = vadd.f32 %v3364, %v3467
        %v3469 = vpop.f32.mrf.mxu0
        %3470 = vmatprep.mubr.bf16.mxu0 0
        %3471 = vmatmul.mubr.bf16.gmra.mxu0 %v3330
        %v3472 = vpop.f32.mrf.mxu0
        %v3473 = vadd.f32 %v3364, %v3472
        %v3474 = vpop.f32.mrf.mxu0
        %v3475 = vpop.f32.mrf.mxu0
        %v3476 = vadd.f32 %v3364, %v3475
        %v3477 = vpop.f32.mrf.mxu0
        %3478 = vmatprep.mubr.bf16.mxu0 0
        %3479 = vmatmul.mubr.bf16.gmra.mxu0 %v3331
        %v3480 = vpop.f32.mrf.mxu0
        %v3481 = vadd.f32 %v3364, %v3480
        %v3482 = vpop.f32.mrf.mxu0
        %v3483 = vpop.f32.mrf.mxu0
        %v3484 = vadd.f32 %v3364, %v3483
        %v3485 = vpop.f32.mrf.mxu0
        %3486 = vmatprep.mubr.bf16.mxu0 0
        %3487 = vmatmul.mubr.bf16.gmra.mxu0 %v3332
        %v3488 = vpop.f32.mrf.mxu0
        %v3489 = vadd.f32 %v3364, %v3488
        %v3490 = vpop.f32.mrf.mxu0
        %v3491 = vpop.f32.mrf.mxu0
        %v3492 = vadd.f32 %v3364, %v3491
        %v3493 = vpop.f32.mrf.mxu0
        %3494 = vmatprep.mubr.bf16.mxu0 0
        %3495 = vmatmul.mubr.bf16.gmra.mxu0 %v3333
        %v3496 = vpop.f32.mrf.mxu0
        %v3497 = vadd.f32 %v3364, %v3496
        %v3498 = vpop.f32.mrf.mxu0
        %v3499 = vpop.f32.mrf.mxu0
        %v3500 = vadd.f32 %v3364, %v3499
        %v3501 = vpop.f32.mrf.mxu0
        %3502 = vmatprep.mubr.bf16.mxu0 0
        %3503 = vmatmul.mubr.bf16.gmra.mxu0 %v3334
        %v3504 = vpop.f32.mrf.mxu0
        %v3505 = vadd.f32 %v3364, %v3504
        %v3506 = vpop.f32.mrf.mxu0
        %v3507 = vpop.f32.mrf.mxu0
        %v3508 = vadd.f32 %v3364, %v3507
        %v3509 = vpop.f32.mrf.mxu0
        %3510 = vmatprep.mubr.bf16.mxu0 0
        %3511 = vmatmul.mubr.bf16.gmra.mxu0 %v3335
        %v3512 = vpop.f32.mrf.mxu0
        %v3513 = vadd.f32 %v3364, %v3512
        %v3514 = vpop.f32.mrf.mxu0
        %v3515 = vpop.f32.mrf.mxu0
        %v3516 = vadd.f32 %v3364, %v3515
        %v3517 = vpop.f32.mrf.mxu0
        %3518 = vmatprep.mubr.bf16.mxu0 0
        %3519 = vmatmul.mubr.bf16.gmra.mxu0 %v3336
        %v3520 = vpop.f32.mrf.mxu0
        %v3521 = vadd.f32 %v3364, %v3520
        %v3522 = vpop.f32.mrf.mxu0
        %v3523 = vpop.f32.mrf.mxu0
        %v3524 = vadd.f32 %v3364, %v3523
        %v3525 = vpop.f32.mrf.mxu0
        %3526 = vmatprep.mubr.bf16.mxu0 0
        %3527 = vmatmul.mubr.bf16.gmra.mxu0 %v3337
        %v3528 = vpop.f32.mrf.mxu0
        %v3529 = vadd.f32 %v3364, %v3528
        %v3530 = vpop.f32.mrf.mxu0
        %v3531 = vpop.f32.mrf.mxu0
        %v3532 = vadd.f32 %v3364, %v3531
        %v3533 = vpop.f32.mrf.mxu0
        %3534 = vmatprep.mubr.bf16.mxu0 0
        %3535 = vmatmul.mubr.bf16.gmra.mxu0 %v3338
        %v3536 = vpop.f32.mrf.mxu0
        %v3537 = vadd.f32 %v3364, %v3536
        %v3538 = vpop.f32.mrf.mxu0
        %v3539 = vpop.f32.mrf.mxu0
        %v3540 = vadd.f32 %v3364, %v3539
        %v3541 = vpop.f32.mrf.mxu0
        %3542 = vmatprep.mubr.bf16.mxu0 0
        %3543 = vmatmul.mubr.bf16.gmra.mxu0 %v3339
        %v3544 = vpop.f32.mrf.mxu0
        %v3545 = vadd.f32 %v3364, %v3544
        %v3546 = vpop.f32.mrf.mxu0
        %v3547 = vpop.f32.mrf.mxu0
        %v3548 = vadd.f32 %v3364, %v3547
        %v3549 = vpop.f32.mrf.mxu0
        %3550 = vmatprep.mubr.bf16.mxu0 0
        %3551 = vmatmul.mubr.bf16.gmra.mxu0 %v3340
        %v3552 = vpop.f32.mrf.mxu0
        %v3553 = vadd.f32 %v3364, %v3552
        %v3554 = vpop.f32.mrf.mxu0
        %v3555 = vpop.f32.mrf.mxu0
        %v3556 = vadd.f32 %v3364, %v3555
        %v3557 = vpop.f32.mrf.mxu0
        %3558 = vmatprep.mubr.bf16.mxu0 0
        %3559 = vmatmul.mubr.bf16.gmra.mxu0 %v3341
        %v3560 = vpop.f32.mrf.mxu0
        %v3561 = vadd.f32 %v3364, %v3560
        %v3562 = vpop.f32.mrf.mxu0
        %v3563 = vpop.f32.mrf.mxu0
        %v3564 = vadd.f32 %v3364, %v3563
        %v3565 = vpop.f32.mrf.mxu0
        %3566 = vmatprep.mubr.bf16.mxu0 0
        %3567 = vmatmul.mubr.bf16.gmra.mxu0 %v3342
        %v3568 = vpop.f32.mrf.mxu0
        %v3569 = vadd.f32 %v3364, %v3568
        %v3570 = vpop.f32.mrf.mxu0
        %v3571 = vpop.f32.mrf.mxu0
        %v3572 = vadd.f32 %v3364, %v3571
        %v3573 = vpop.f32.mrf.mxu0
        %3574 = vdwg.mxu0
        %v3575 = vxor.u32 %v3449, 2147483648
        %v3576 = vxor.u32 %v3452, 2147483648
        %v3577 = vxor.u32 %v3457, 2147483648
        %v3578 = vxor.u32 %v3460, 2147483648
        %v3579 = vxor.u32 %v3465, 2147483648
        %v3580 = vxor.u32 %v3468, 2147483648
        %v3581 = vxor.u32 %v3473, 2147483648
        %v3582 = vxor.u32 %v3476, 2147483648
        %v3583 = vxor.u32 %v3481, 2147483648
        %v3584 = vxor.u32 %v3484, 2147483648
        %v3585 = vxor.u32 %v3489, 2147483648
        %v3586 = vxor.u32 %v3492, 2147483648
        %v3587 = vxor.u32 %v3497, 2147483648
        %v3588 = vxor.u32 %v3500, 2147483648
        %v3589 = vxor.u32 %v3505, 2147483648
        %v3590 = vxor.u32 %v3508, 2147483648
        %v3591 = vxor.u32 %v3513, 2147483648
        %v3592 = vxor.u32 %v3516, 2147483648
        %v3593 = vxor.u32 %v3521, 2147483648
        %v3594 = vxor.u32 %v3524, 2147483648
        %v3595 = vxor.u32 %v3529, 2147483648
        %v3596 = vxor.u32 %v3532, 2147483648
        %v3597 = vxor.u32 %v3537, 2147483648
        %v3598 = vxor.u32 %v3540, 2147483648
        %v3599 = vxor.u32 %v3545, 2147483648
        %v3600 = vxor.u32 %v3548, 2147483648
        %v3601 = vxor.u32 %v3553, 2147483648
        %v3602 = vxor.u32 %v3556, 2147483648
        %v3603 = vxor.u32 %v3561, 2147483648
        %v3604 = vxor.u32 %v3564, 2147483648
        %v3605 = vxor.u32 %v3569, 2147483648
        %v3606 = vxor.u32 %v3572, 2147483648
        %v3607 = vmul.f32 %v3575, 1.442695
        %v3608 = vpow.pop %v3607
        %v3609 = vmul.f32 %v3576, 1.442695
        %v3610 = vpow.pop %v3609
        %v3611 = vmul.f32 %v3577, 1.442695
        %v3612 = vpow.pop %v3611
        %v3613 = vmul.f32 %v3578, 1.442695
        %v3614 = vpow.pop %v3613
        %v3615 = vmul.f32 %v3579, 1.442695
        %v3616 = vpow.pop %v3615
        %v3617 = vmul.f32 %v3580, 1.442695
        %v3618 = vpow.pop %v3617
        %v3619 = vmul.f32 %v3581, 1.442695
        %v3620 = vpow.pop %v3619
        %v3621 = vmul.f32 %v3582, 1.442695
        %v3622 = vpow.pop %v3621
        %v3623 = vmul.f32 %v3583, 1.442695
        %v3624 = vpow.pop %v3623
        %v3625 = vmul.f32 %v3584, 1.442695
        %v3626 = vpow.pop %v3625
        %v3627 = vmul.f32 %v3585, 1.442695
        %v3628 = vpow.pop %v3627
        %v3629 = vmul.f32 %v3586, 1.442695
        %v3630 = vpow.pop %v3629
        %v3631 = vmul.f32 %v3587, 1.442695
        %v3632 = vpow.pop %v3631
        %v3633 = vmul.f32 %v3588, 1.442695
        %v3634 = vpow.pop %v3633
        %v3635 = vmul.f32 %v3589, 1.442695
        %v3636 = vpow.pop %v3635
        %v3637 = vmul.f32 %v3590, 1.442695
        %v3638 = vpow.pop %v3637
        %v3639 = vmul.f32 %v3591, 1.442695
        %v3640 = vpow.pop %v3639
        %v3641 = vmul.f32 %v3592, 1.442695
        %v3642 = vpow.pop %v3641
        %v3643 = vmul.f32 %v3593, 1.442695
        %v3644 = vpow.pop %v3643
        %v3645 = vmul.f32 %v3594, 1.442695
        %v3646 = vpow.pop %v3645
        %v3647 = vmul.f32 %v3595, 1.442695
        %v3648 = vpow.pop %v3647
        %v3649 = vmul.f32 %v3596, 1.442695
        %v3650 = vpow.pop %v3649
        %v3651 = vmul.f32 %v3597, 1.442695
        %v3652 = vpow.pop %v3651
        %v3653 = vmul.f32 %v3598, 1.442695
        %v3654 = vpow.pop %v3653
        %v3655 = vmul.f32 %v3599, 1.442695
        %v3656 = vpow.pop %v3655
        %v3657 = vmul.f32 %v3600, 1.442695
        %v3658 = vpow.pop %v3657
        %v3659 = vmul.f32 %v3601, 1.442695
        %v3660 = vpow.pop %v3659
        %v3661 = vmul.f32 %v3602, 1.442695
        %v3662 = vpow.pop %v3661
        %v3663 = vmul.f32 %v3603, 1.442695
        %v3664 = vpow.pop %v3663
        %v3665 = vmul.f32 %v3604, 1.442695
        %v3666 = vpow.pop %v3665
        %v3667 = vmul.f32 %v3605, 1.442695
        %v3668 = vpow.pop %v3667
        %v3669 = vmul.f32 %v3606, 1.442695
        %v3670 = vpow.pop %v3669
        %v3671 = vadd.f32 %v3608, 1.0
        %v3672 = vadd.f32 %v3610, 1.0
        %v3673 = vadd.f32 %v3612, 1.0
        %v3674 = vadd.f32 %v3614, 1.0
        %v3675 = vadd.f32 %v3616, 1.0
        %v3676 = vadd.f32 %v3618, 1.0
        %v3677 = vadd.f32 %v3620, 1.0
        %v3678 = vadd.f32 %v3622, 1.0
        %v3679 = vadd.f32 %v3624, 1.0
        %v3680 = vadd.f32 %v3626, 1.0
        %v3681 = vadd.f32 %v3628, 1.0
        %v3682 = vadd.f32 %v3630, 1.0
        %v3683 = vadd.f32 %v3632, 1.0
        %v3684 = vadd.f32 %v3634, 1.0
        %v3685 = vadd.f32 %v3636, 1.0
        %v3686 = vadd.f32 %v3638, 1.0
        %v3687 = vadd.f32 %v3640, 1.0
        %v3688 = vadd.f32 %v3642, 1.0
        %v3689 = vadd.f32 %v3644, 1.0
        %v3690 = vadd.f32 %v3646, 1.0
        %v3691 = vadd.f32 %v3648, 1.0
        %v3692 = vadd.f32 %v3650, 1.0
        %v3693 = vadd.f32 %v3652, 1.0
        %v3694 = vadd.f32 %v3654, 1.0
        %v3695 = vadd.f32 %v3656, 1.0
        %v3696 = vadd.f32 %v3658, 1.0
        %v3697 = vadd.f32 %v3660, 1.0
        %v3698 = vadd.f32 %v3662, 1.0
        %v3699 = vadd.f32 %v3664, 1.0
        %v3700 = vadd.f32 %v3666, 1.0
        %v3701 = vadd.f32 %v3668, 1.0
        %v3702 = vadd.f32 %v3670, 1.0
        %v3703 = vrcp.pop %v3671
        %v3704 = vmul.f32 1.0, %v3703
        %v3705 = vrcp.pop %v3672
        %v3706 = vmul.f32 1.0, %v3705
        %v3707 = vrcp.pop %v3673
        %v3708 = vmul.f32 1.0, %v3707
        %v3709 = vrcp.pop %v3674
        %v3710 = vmul.f32 1.0, %v3709
        %v3711 = vrcp.pop %v3675
        %v3712 = vmul.f32 1.0, %v3711
        %v3713 = vrcp.pop %v3676
        %v3714 = vmul.f32 1.0, %v3713
        %v3715 = vrcp.pop %v3677
        %v3716 = vmul.f32 1.0, %v3715
        %v3717 = vrcp.pop %v3678
        %v3718 = vmul.f32 1.0, %v3717
        %v3719 = vrcp.pop %v3679
        %v3720 = vmul.f32 1.0, %v3719
        %v3721 = vrcp.pop %v3680
        %v3722 = vmul.f32 1.0, %v3721
        %v3723 = vrcp.pop %v3681
        %v3724 = vmul.f32 1.0, %v3723
        %v3725 = vrcp.pop %v3682
        %v3726 = vmul.f32 1.0, %v3725
        %v3727 = vrcp.pop %v3683
        %v3728 = vmul.f32 1.0, %v3727
        %v3729 = vrcp.pop %v3684
        %v3730 = vmul.f32 1.0, %v3729
        %v3731 = vrcp.pop %v3685
        %v3732 = vmul.f32 1.0, %v3731
        %v3733 = vrcp.pop %v3686
        %v3734 = vmul.f32 1.0, %v3733
        %v3735 = vrcp.pop %v3687
        %v3736 = vmul.f32 1.0, %v3735
        %v3737 = vrcp.pop %v3688
        %v3738 = vmul.f32 1.0, %v3737
        %v3739 = vrcp.pop %v3689
        %v3740 = vmul.f32 1.0, %v3739
        %v3741 = vrcp.pop %v3690
        %v3742 = vmul.f32 1.0, %v3741
        %v3743 = vrcp.pop %v3691
        %v3744 = vmul.f32 1.0, %v3743
        %v3745 = vrcp.pop %v3692
        %v3746 = vmul.f32 1.0, %v3745
        %v3747 = vrcp.pop %v3693
        %v3748 = vmul.f32 1.0, %v3747
        %v3749 = vrcp.pop %v3694
        %v3750 = vmul.f32 1.0, %v3749
        %v3751 = vrcp.pop %v3695
        %v3752 = vmul.f32 1.0, %v3751
        %v3753 = vrcp.pop %v3696
        %v3754 = vmul.f32 1.0, %v3753
        %v3755 = vrcp.pop %v3697
        %v3756 = vmul.f32 1.0, %v3755
        %v3757 = vrcp.pop %v3698
        %v3758 = vmul.f32 1.0, %v3757
        %v3759 = vrcp.pop %v3699
        %v3760 = vmul.f32 1.0, %v3759
        %v3761 = vrcp.pop %v3700
        %v3762 = vmul.f32 1.0, %v3761
        %v3763 = vrcp.pop %v3701
        %v3764 = vmul.f32 1.0, %v3763
        %v3765 = vrcp.pop %v3702
        %v3766 = vmul.f32 1.0, %v3765
        %v3767 = vmul.f32 %v3449, %v3704
        %v3768 = vmul.f32 %v3452, %v3706
        %v3769 = vmul.f32 %v3457, %v3708
        %v3770 = vmul.f32 %v3460, %v3710
        %v3771 = vmul.f32 %v3465, %v3712
        %v3772 = vmul.f32 %v3468, %v3714
        %v3773 = vmul.f32 %v3473, %v3716
        %v3774 = vmul.f32 %v3476, %v3718
        %v3775 = vmul.f32 %v3481, %v3720
        %v3776 = vmul.f32 %v3484, %v3722
        %v3777 = vmul.f32 %v3489, %v3724
        %v3778 = vmul.f32 %v3492, %v3726
        %v3779 = vmul.f32 %v3497, %v3728
        %v3780 = vmul.f32 %v3500, %v3730
        %v3781 = vmul.f32 %v3505, %v3732
        %v3782 = vmul.f32 %v3508, %v3734
        %v3783 = vmul.f32 %v3513, %v3736
        %v3784 = vmul.f32 %v3516, %v3738
        %v3785 = vmul.f32 %v3521, %v3740
        %v3786 = vmul.f32 %v3524, %v3742
        %v3787 = vmul.f32 %v3529, %v3744
        %v3788 = vmul.f32 %v3532, %v3746
        %v3789 = vmul.f32 %v3537, %v3748
        %v3790 = vmul.f32 %v3540, %v3750
        %v3791 = vmul.f32 %v3545, %v3752
        %v3792 = vmul.f32 %v3548, %v3754
        %v3793 = vmul.f32 %v3553, %v3756
        %v3794 = vmul.f32 %v3556, %v3758
        %v3795 = vmul.f32 %v3561, %v3760
        %v3796 = vmul.f32 %v3564, %v3762
        %v3797 = vmul.f32 %v3569, %v3764
        %v3798 = vmul.f32 %v3572, %v3766
        %3799 = vst [vmem:[%s523 + $0x8] sm:$0xff] %v3767
        %3800 = vst [vmem:[%s523 + $0x10] sm:$0xff] %v3768
        %3801 = vst [vmem:[%s523 + $0x28] sm:$0xff] %v3769
        %3802 = vst [vmem:[%s523 + $0x30] sm:$0xff] %v3770
        %3803 = vst [vmem:[%s523 + $0x48] sm:$0xff] %v3771
        %3804 = vst [vmem:[%s523 + $0x50] sm:$0xff] %v3772
        %3805 = vst [vmem:[%s523 + $0x68] sm:$0xff] %v3773
        %3806 = vst [vmem:[%s523 + $0x70] sm:$0xff] %v3774
        %3807 = vst [vmem:[%s523 + $0x88] sm:$0xff] %v3775
        %3808 = vst [vmem:[%s523 + $0x90] sm:$0xff] %v3776
        %3809 = vst [vmem:[%s523 + $0xa8] sm:$0xff] %v3777
        %3810 = vst [vmem:[%s523 + $0xb0] sm:$0xff] %v3778
        %3811 = vst [vmem:[%s523 + $0xc8] sm:$0xff] %v3779
        %3812 = vst [vmem:[%s523 + $0xd0] sm:$0xff] %v3780
        %3813 = vst [vmem:[%s523 + $0xe8] sm:$0xff] %v3781
        %3814 = vst [vmem:[%s523 + $0xf0] sm:$0xff] %v3782
        %3815 = vst [vmem:[%s523 + $0x108] sm:$0xff] %v3783
        %3816 = vst [vmem:[%s523 + $0x110] sm:$0xff] %v3784
        %3817 = vst [vmem:[%s523 + $0x128] sm:$0xff] %v3785
        %3818 = vst [vmem:[%s523 + $0x130] sm:$0xff] %v3786
        %3819 = vst [vmem:[%s523 + $0x148] sm:$0xff] %v3787
        %3820 = vst [vmem:[%s523 + $0x150] sm:$0xff] %v3788
        %3821 = vst [vmem:[%s523 + $0x168] sm:$0xff] %v3789
        %3822 = vst [vmem:[%s523 + $0x170] sm:$0xff] %v3790
        %3823 = vst [vmem:[%s523 + $0x188] sm:$0xff] %v3791
        %3824 = vst [vmem:[%s523 + $0x190] sm:$0xff] %v3792
        %3825 = vst [vmem:[%s523 + $0x1a8] sm:$0xff] %v3793
        %3826 = vst [vmem:[%s523 + $0x1b0] sm:$0xff] %v3794
        %3827 = vst [vmem:[%s523 + $0x1c8] sm:$0xff] %v3795
        %3828 = vst [vmem:[%s523 + $0x1d0] sm:$0xff] %v3796
        %3829 = vst [vmem:[%s523 + $0x1e8] sm:$0xff] %v3797
        %3830 = vst [vmem:[%s523 + $0x1f0] sm:$0xff] %v3798
        %v3831 = vld [vmem:[%s9] sm:$0xff]
        %v3832 = vld [vmem:[%s9 + $0x8] sm:$0x1]
        %v3833 = vld [vmem:[%s10] sm:$0x1]
        %v3834 = vlaneseq
        %v3835 = vshrl.u32 %v3834, 7
        %v3836 = vsub.s32 4, %v3835
        %v3837 = vrot.slane %v3831, %v3836
        %v3838 = vmul.f32 %v3767, %v3837
        %v3839 = vmul.f32 %v3768, %v3837
        %v3840 = vmul.f32 %v3769, %v3837
        %v3841 = vmul.f32 %v3770, %v3837
        %v3842 = vmul.f32 %v3771, %v3837
        %v3843 = vmul.f32 %v3772, %v3837
        %v3844 = vmul.f32 %v3773, %v3837
        %v3845 = vmul.f32 %v3774, %v3837
        %v3846 = vmul.f32 %v3775, %v3837
        %v3847 = vmul.f32 %v3776, %v3837
        %v3848 = vmul.f32 %v3777, %v3837
        %v3849 = vmul.f32 %v3778, %v3837
        %v3850 = vmul.f32 %v3779, %v3837
        %v3851 = vmul.f32 %v3780, %v3837
        %v3852 = vmul.f32 %v3781, %v3837
        %v3853 = vmul.f32 %v3782, %v3837
        %v3854 = vmul.f32 %v3783, %v3837
        %v3855 = vmul.f32 %v3784, %v3837
        %v3856 = vmul.f32 %v3785, %v3837
        %v3857 = vmul.f32 %v3786, %v3837
        %v3858 = vmul.f32 %v3787, %v3837
        %v3859 = vmul.f32 %v3788, %v3837
        %v3860 = vmul.f32 %v3789, %v3837
        %v3861 = vmul.f32 %v3790, %v3837
        %v3862 = vmul.f32 %v3791, %v3837
        %v3863 = vmul.f32 %v3792, %v3837
        %v3864 = vmul.f32 %v3793, %v3837
        %v3865 = vmul.f32 %v3794, %v3837
        %v3866 = vmul.f32 %v3795, %v3837
        %v3867 = vmul.f32 %v3796, %v3837
        %v3868 = vmul.f32 %v3797, %v3837
        %v3869 = vmul.f32 %v3798, %v3837
        %v3870 = vld [vmem:[#allocation2 + $0x7] sm:$0xff]
        %v3871 = vld [vmem:[#allocation2 + $0xf] sm:$0xff]
        %v3872 = vld [vmem:[#allocation2 + $0x27] sm:$0xff]
        %v3873 = vld [vmem:[#allocation2 + $0x2f] sm:$0xff]
        %v3874 = vld [vmem:[#allocation2 + $0x47] sm:$0xff]
        %v3875 = vld [vmem:[#allocation2 + $0x4f] sm:$0xff]
        %v3876 = vld [vmem:[#allocation2 + $0x67] sm:$0xff]
        %v3877 = vld [vmem:[#allocation2 + $0x6f] sm:$0xff]
        %v3878 = vld [vmem:[#allocation2 + $0x87] sm:$0xff]
        %v3879 = vld [vmem:[#allocation2 + $0x8f] sm:$0xff]
        %v3880 = vld [vmem:[#allocation2 + $0xa7] sm:$0xff]
        %v3881 = vld [vmem:[#allocation2 + $0xaf] sm:$0xff]
        %v3882 = vld [vmem:[#allocation2 + $0xc7] sm:$0xff]
        %v3883 = vld [vmem:[#allocation2 + $0xcf] sm:$0xff]
        %v3884 = vld [vmem:[#allocation2 + $0xe7] sm:$0xff]
        %v3885 = vld [vmem:[#allocation2 + $0xef] sm:$0xff]
        %v3886 = vld [vmem:[#allocation2 + $0x107] sm:$0xff]
        %v3887 = vld [vmem:[#allocation2 + $0x10f] sm:$0xff]
        %v3888 = vld [vmem:[#allocation2 + $0x127] sm:$0xff]
        %v3889 = vld [vmem:[#allocation2 + $0x12f] sm:$0xff]
        %v3890 = vld [vmem:[#allocation2 + $0x147] sm:$0xff]
        %v3891 = vld [vmem:[#allocation2 + $0x14f] sm:$0xff]
        %v3892 = vld [vmem:[#allocation2 + $0x167] sm:$0xff]
        %v3893 = vld [vmem:[#allocation2 + $0x16f] sm:$0xff]
        %v3894 = vld [vmem:[#allocation2 + $0x187] sm:$0xff]
        %v3895 = vld [vmem:[#allocation2 + $0x18f] sm:$0xff]
        %v3896 = vld [vmem:[#allocation2 + $0x1a7] sm:$0xff]
        %v3897 = vld [vmem:[#allocation2 + $0x1af] sm:$0xff]
        %v3898 = vld [vmem:[#allocation2 + $0x1c7] sm:$0xff]
        %v3899 = vld [vmem:[#allocation2 + $0x1cf] sm:$0xff]
        %v3900 = vld [vmem:[#allocation2 + $0x1e7] sm:$0xff]
        %v3901 = vld [vmem:[#allocation2 + $0x1ef] sm:$0xff]
        %v3902 = vlaneseq
        %v3903 = vshrl.u32 %v3902, 7
        %v3904 = vsub.s32 0, %v3903
        %v3905 = vrot.slane %v3831, %v3904
        %v3906 = vmul.f32 %v3870, %v3905
        %v3907 = vmul.f32 %v3871, %v3905
        %v3908 = vmul.f32 %v3872, %v3905
        %v3909 = vmul.f32 %v3873, %v3905
        %v3910 = vmul.f32 %v3874, %v3905
        %v3911 = vmul.f32 %v3875, %v3905
        %v3912 = vmul.f32 %v3876, %v3905
        %v3913 = vmul.f32 %v3877, %v3905
        %v3914 = vmul.f32 %v3878, %v3905
        %v3915 = vmul.f32 %v3879, %v3905
        %v3916 = vmul.f32 %v3880, %v3905
        %v3917 = vmul.f32 %v3881, %v3905
        %v3918 = vmul.f32 %v3882, %v3905
        %v3919 = vmul.f32 %v3883, %v3905
        %v3920 = vmul.f32 %v3884, %v3905
        %v3921 = vmul.f32 %v3885, %v3905
        %v3922 = vmul.f32 %v3886, %v3905
        %v3923 = vmul.f32 %v3887, %v3905
        %v3924 = vmul.f32 %v3888, %v3905
        %v3925 = vmul.f32 %v3889, %v3905
        %v3926 = vmul.f32 %v3890, %v3905
        %v3927 = vmul.f32 %v3891, %v3905
        %v3928 = vmul.f32 %v3892, %v3905
        %v3929 = vmul.f32 %v3893, %v3905
        %v3930 = vmul.f32 %v3894, %v3905
        %v3931 = vmul.f32 %v3895, %v3905
        %v3932 = vmul.f32 %v3896, %v3905
        %v3933 = vmul.f32 %v3897, %v3905
        %v3934 = vmul.f32 %v3898, %v3905
        %v3935 = vmul.f32 %v3899, %v3905
        %v3936 = vmul.f32 %v3900, %v3905
        %v3937 = vmul.f32 %v3901, %v3905
        %v3938 = vadd.f32 %v3838, %v3906
        %v3939 = vadd.f32 %v3839, %v3907
        %v3940 = vadd.f32 %v3840, %v3908
        %v3941 = vadd.f32 %v3841, %v3909
        %v3942 = vadd.f32 %v3842, %v3910
        %v3943 = vadd.f32 %v3843, %v3911
        %v3944 = vadd.f32 %v3844, %v3912
        %v3945 = vadd.f32 %v3845, %v3913
        %v3946 = vadd.f32 %v3846, %v3914
        %v3947 = vadd.f32 %v3847, %v3915
        %v3948 = vadd.f32 %v3848, %v3916
        %v3949 = vadd.f32 %v3849, %v3917
        %v3950 = vadd.f32 %v3850, %v3918
        %v3951 = vadd.f32 %v3851, %v3919
        %v3952 = vadd.f32 %v3852, %v3920
        %v3953 = vadd.f32 %v3853, %v3921
        %v3954 = vadd.f32 %v3854, %v3922
        %v3955 = vadd.f32 %v3855, %v3923
        %v3956 = vadd.f32 %v3856, %v3924
        %v3957 = vadd.f32 %v3857, %v3925
        %v3958 = vadd.f32 %v3858, %v3926
        %v3959 = vadd.f32 %v3859, %v3927
        %v3960 = vadd.f32 %v3860, %v3928
        %v3961 = vadd.f32 %v3861, %v3929
        %v3962 = vadd.f32 %v3862, %v3930
        %v3963 = vadd.f32 %v3863, %v3931
        %v3964 = vadd.f32 %v3864, %v3932
        %v3965 = vadd.f32 %v3865, %v3933
        %v3966 = vadd.f32 %v3866, %v3934
        %v3967 = vadd.f32 %v3867, %v3935
        %v3968 = vadd.f32 %v3868, %v3936
        %v3969 = vadd.f32 %v3869, %v3937
        %v3970 = vld [vmem:[#allocation2 + $0x8] sm:$0xff]
        %v3971 = vld [vmem:[#allocation2 + $0x10] sm:$0xff]
        %v3972 = vld [vmem:[#allocation2 + $0x28] sm:$0xff]
        %v3973 = vld [vmem:[#allocation2 + $0x30] sm:$0xff]
        %v3974 = vld [vmem:[#allocation2 + $0x48] sm:$0xff]
        %v3975 = vld [vmem:[#allocation2 + $0x50] sm:$0xff]
        %v3976 = vld [vmem:[#allocation2 + $0x68] sm:$0xff]
        %v3977 = vld [vmem:[#allocation2 + $0x70] sm:$0xff]
        %v3978 = vld [vmem:[#allocation2 + $0x88] sm:$0xff]
        %v3979 = vld [vmem:[#allocation2 + $0x90] sm:$0xff]
        %v3980 = vld [vmem:[#allocation2 + $0xa8] sm:$0xff]
        %v3981 = vld [vmem:[#allocation2 + $0xb0] sm:$0xff]
        %v3982 = vld [vmem:[#allocation2 + $0xc8] sm:$0xff]
        %v3983 = vld [vmem:[#allocation2 + $0xd0] sm:$0xff]
        %v3984 = vld [vmem:[#allocation2 + $0xe8] sm:$0xff]
        %v3985 = vld [vmem:[#allocation2 + $0xf0] sm:$0xff]
        %v3986 = vld [vmem:[#allocation2 + $0x108] sm:$0xff]
        %v3987 = vld [vmem:[#allocation2 + $0x110] sm:$0xff]
        %v3988 = vld [vmem:[#allocation2 + $0x128] sm:$0xff]
        %v3989 = vld [vmem:[#allocation2 + $0x130] sm:$0xff]
        %v3990 = vld [vmem:[#allocation2 + $0x148] sm:$0xff]
        %v3991 = vld [vmem:[#allocation2 + $0x150] sm:$0xff]
        %v3992 = vld [vmem:[#allocation2 + $0x168] sm:$0xff]
        %v3993 = vld [vmem:[#allocation2 + $0x170] sm:$0xff]
        %v3994 = vld [vmem:[#allocation2 + $0x188] sm:$0xff]
        %v3995 = vld [vmem:[#allocation2 + $0x190] sm:$0xff]
        %v3996 = vld [vmem:[#allocation2 + $0x1a8] sm:$0xff]
        %v3997 = vld [vmem:[#allocation2 + $0x1b0] sm:$0xff]
        %v3998 = vld [vmem:[#allocation2 + $0x1c8] sm:$0xff]
        %v3999 = vld [vmem:[#allocation2 + $0x1d0] sm:$0xff]
        %v4000 = vld [vmem:[#allocation2 + $0x1e8] sm:$0xff]
        %v4001 = vld [vmem:[#allocation2 + $0x1f0] sm:$0xff]
        %v4002 = vlaneseq
        %v4003 = vshrl.u32 %v4002, 7
        %v4004 = vsub.s32 1, %v4003
        %v4005 = vrot.slane %v3831, %v4004
        %v4006 = vmul.f32 %v3970, %v4005
        %v4007 = vmul.f32 %v3971, %v4005
        %v4008 = vmul.f32 %v3972, %v4005
        %v4009 = vmul.f32 %v3973, %v4005
        %v4010 = vmul.f32 %v3974, %v4005
        %v4011 = vmul.f32 %v3975, %v4005
        %v4012 = vmul.f32 %v3976, %v4005
        %v4013 = vmul.f32 %v3977, %v4005
        %v4014 = vmul.f32 %v3978, %v4005
        %v4015 = vmul.f32 %v3979, %v4005
        %v4016 = vmul.f32 %v3980, %v4005
        %v4017 = vmul.f32 %v3981, %v4005
        %v4018 = vmul.f32 %v3982, %v4005
        %v4019 = vmul.f32 %v3983, %v4005
        %v4020 = vmul.f32 %v3984, %v4005
        %v4021 = vmul.f32 %v3985, %v4005
        %v4022 = vmul.f32 %v3986, %v4005
        %v4023 = vmul.f32 %v3987, %v4005
        %v4024 = vmul.f32 %v3988, %v4005
        %v4025 = vmul.f32 %v3989, %v4005
        %v4026 = vmul.f32 %v3990, %v4005
        %v4027 = vmul.f32 %v3991, %v4005
        %v4028 = vmul.f32 %v3992, %v4005
        %v4029 = vmul.f32 %v3993, %v4005
        %v4030 = vmul.f32 %v3994, %v4005
        %v4031 = vmul.f32 %v3995, %v4005
        %v4032 = vmul.f32 %v3996, %v4005
        %v4033 = vmul.f32 %v3997, %v4005
        %v4034 = vmul.f32 %v3998, %v4005
        %v4035 = vmul.f32 %v3999, %v4005
        %v4036 = vmul.f32 %v4000, %v4005
        %v4037 = vmul.f32 %v4001, %v4005
        %v4038 = vadd.f32 %v3938, %v4006
        %v4039 = vadd.f32 %v3939, %v4007
        %v4040 = vadd.f32 %v3940, %v4008
        %v4041 = vadd.f32 %v3941, %v4009
        %v4042 = vadd.f32 %v3942, %v4010
        %v4043 = vadd.f32 %v3943, %v4011
        %v4044 = vadd.f32 %v3944, %v4012
        %v4045 = vadd.f32 %v3945, %v4013
        %v4046 = vadd.f32 %v3946, %v4014
        %v4047 = vadd.f32 %v3947, %v4015
        %v4048 = vadd.f32 %v3948, %v4016
        %v4049 = vadd.f32 %v3949, %v4017
        %v4050 = vadd.f32 %v3950, %v4018
        %v4051 = vadd.f32 %v3951, %v4019
        %v4052 = vadd.f32 %v3952, %v4020
        %v4053 = vadd.f32 %v3953, %v4021
        %v4054 = vadd.f32 %v3954, %v4022
        %v4055 = vadd.f32 %v3955, %v4023
        %v4056 = vadd.f32 %v3956, %v4024
        %v4057 = vadd.f32 %v3957, %v4025
        %v4058 = vadd.f32 %v3958, %v4026
        %v4059 = vadd.f32 %v3959, %v4027
        %v4060 = vadd.f32 %v3960, %v4028
        %v4061 = vadd.f32 %v3961, %v4029
        %v4062 = vadd.f32 %v3962, %v4030
        %v4063 = vadd.f32 %v3963, %v4031
        %v4064 = vadd.f32 %v3964, %v4032
        %v4065 = vadd.f32 %v3965, %v4033
        %v4066 = vadd.f32 %v3966, %v4034
        %v4067 = vadd.f32 %v3967, %v4035
        %v4068 = vadd.f32 %v3968, %v4036
        %v4069 = vadd.f32 %v3969, %v4037
        %v4070 = vld [vmem:[#allocation2 + $0x9] sm:$0xff]
        %v4071 = vld [vmem:[#allocation2 + $0x11] sm:$0xff]
        %v4072 = vld [vmem:[#allocation2 + $0x29] sm:$0xff]
        %v4073 = vld [vmem:[#allocation2 + $0x31] sm:$0xff]
        %v4074 = vld [vmem:[#allocation2 + $0x49] sm:$0xff]
        %v4075 = vld [vmem:[#allocation2 + $0x51] sm:$0xff]
        %v4076 = vld [vmem:[#allocation2 + $0x69] sm:$0xff]
        %v4077 = vld [vmem:[#allocation2 + $0x71] sm:$0xff]
        %v4078 = vld [vmem:[#allocation2 + $0x89] sm:$0xff]
        %v4079 = vld [vmem:[#allocation2 + $0x91] sm:$0xff]
        %v4080 = vld [vmem:[#allocation2 + $0xa9] sm:$0xff]
        %v4081 = vld [vmem:[#allocation2 + $0xb1] sm:$0xff]
        %v4082 = vld [vmem:[#allocation2 + $0xc9] sm:$0xff]
        %v4083 = vld [vmem:[#allocation2 + $0xd1] sm:$0xff]
        %v4084 = vld [vmem:[#allocation2 + $0xe9] sm:$0xff]
        %v4085 = vld [vmem:[#allocation2 + $0xf1] sm:$0xff]
        %v4086 = vld [vmem:[#allocation2 + $0x109] sm:$0xff]
        %v4087 = vld [vmem:[#allocation2 + $0x111] sm:$0xff]
        %v4088 = vld [vmem:[#allocation2 + $0x129] sm:$0xff]
        %v4089 = vld [vmem:[#allocation2 + $0x131] sm:$0xff]
        %v4090 = vld [vmem:[#allocation2 + $0x149] sm:$0xff]
        %v4091 = vld [vmem:[#allocation2 + $0x151] sm:$0xff]
        %v4092 = vld [vmem:[#allocation2 + $0x169] sm:$0xff]
        %v4093 = vld [vmem:[#allocation2 + $0x171] sm:$0xff]
        %v4094 = vld [vmem:[#allocation2 + $0x189] sm:$0xff]
        %v4095 = vld [vmem:[#allocation2 + $0x191] sm:$0xff]
        %v4096 = vld [vmem:[#allocation2 + $0x1a9] sm:$0xff]
        %v4097 = vld [vmem:[#allocation2 + $0x1b1] sm:$0xff]
        %v4098 = vld [vmem:[#allocation2 + $0x1c9] sm:$0xff]
        %v4099 = vld [vmem:[#allocation2 + $0x1d1] sm:$0xff]
        %v4100 = vld [vmem:[#allocation2 + $0x1e9] sm:$0xff]
        %v4101 = vld [vmem:[#allocation2 + $0x1f1] sm:$0xff]
        %v4102 = vlaneseq
        %v4103 = vshrl.u32 %v4102, 7
        %v4104 = vsub.s32 2, %v4103
        %v4105 = vrot.slane %v3831, %v4104
        %v4106 = vmul.f32 %v4070, %v4105
        %v4107 = vmul.f32 %v4071, %v4105
        %v4108 = vmul.f32 %v4072, %v4105
        %v4109 = vmul.f32 %v4073, %v4105
        %v4110 = vmul.f32 %v4074, %v4105
        %v4111 = vmul.f32 %v4075, %v4105
        %v4112 = vmul.f32 %v4076, %v4105
        %v4113 = vmul.f32 %v4077, %v4105
        %v4114 = vmul.f32 %v4078, %v4105
        %v4115 = vmul.f32 %v4079, %v4105
        %v4116 = vmul.f32 %v4080, %v4105
        %v4117 = vmul.f32 %v4081, %v4105
        %v4118 = vmul.f32 %v4082, %v4105
        %v4119 = vmul.f32 %v4083, %v4105
        %v4120 = vmul.f32 %v4084, %v4105
        %v4121 = vmul.f32 %v4085, %v4105
        %v4122 = vmul.f32 %v4086, %v4105
        %v4123 = vmul.f32 %v4087, %v4105
        %v4124 = vmul.f32 %v4088, %v4105
        %v4125 = vmul.f32 %v4089, %v4105
        %v4126 = vmul.f32 %v4090, %v4105
        %v4127 = vmul.f32 %v4091, %v4105
        %v4128 = vmul.f32 %v4092, %v4105
        %v4129 = vmul.f32 %v4093, %v4105
        %v4130 = vmul.f32 %v4094, %v4105
        %v4131 = vmul.f32 %v4095, %v4105
        %v4132 = vmul.f32 %v4096, %v4105
        %v4133 = vmul.f32 %v4097, %v4105
        %v4134 = vmul.f32 %v4098, %v4105
        %v4135 = vmul.f32 %v4099, %v4105
        %v4136 = vmul.f32 %v4100, %v4105
        %v4137 = vmul.f32 %v4101, %v4105
        %v4138 = vadd.f32 %v4038, %v4106
        %v4139 = vadd.f32 %v4039, %v4107
        %v4140 = vadd.f32 %v4040, %v4108
        %v4141 = vadd.f32 %v4041, %v4109
        %v4142 = vadd.f32 %v4042, %v4110
        %v4143 = vadd.f32 %v4043, %v4111
        %v4144 = vadd.f32 %v4044, %v4112
        %v4145 = vadd.f32 %v4045, %v4113
        %v4146 = vadd.f32 %v4046, %v4114
        %v4147 = vadd.f32 %v4047, %v4115
        %v4148 = vadd.f32 %v4048, %v4116
        %v4149 = vadd.f32 %v4049, %v4117
        %v4150 = vadd.f32 %v4050, %v4118
        %v4151 = vadd.f32 %v4051, %v4119
        %v4152 = vadd.f32 %v4052, %v4120
        %v4153 = vadd.f32 %v4053, %v4121
        %v4154 = vadd.f32 %v4054, %v4122
        %v4155 = vadd.f32 %v4055, %v4123
        %v4156 = vadd.f32 %v4056, %v4124
        %v4157 = vadd.f32 %v4057, %v4125
        %v4158 = vadd.f32 %v4058, %v4126
        %v4159 = vadd.f32 %v4059, %v4127
        %v4160 = vadd.f32 %v4060, %v4128
        %v4161 = vadd.f32 %v4061, %v4129
        %v4162 = vadd.f32 %v4062, %v4130
        %v4163 = vadd.f32 %v4063, %v4131
        %v4164 = vadd.f32 %v4064, %v4132
        %v4165 = vadd.f32 %v4065, %v4133
        %v4166 = vadd.f32 %v4066, %v4134
        %v4167 = vadd.f32 %v4067, %v4135
        %v4168 = vadd.f32 %v4068, %v4136
        %v4169 = vadd.f32 %v4069, %v4137
        %v4170 = vld [vmem:[%s523 + $0x7] sm:$0xff]
        %v4171 = vld [vmem:[%s523 + $0xf] sm:$0xff]
        %v4172 = vld [vmem:[%s523 + $0x27] sm:$0xff]
        %v4173 = vld [vmem:[%s523 + $0x2f] sm:$0xff]
        %v4174 = vld [vmem:[%s523 + $0x47] sm:$0xff]
        %v4175 = vld [vmem:[%s523 + $0x4f] sm:$0xff]
        %v4176 = vld [vmem:[%s523 + $0x67] sm:$0xff]
        %v4177 = vld [vmem:[%s523 + $0x6f] sm:$0xff]
        %v4178 = vld [vmem:[%s523 + $0x87] sm:$0xff]
        %v4179 = vld [vmem:[%s523 + $0x8f] sm:$0xff]
        %v4180 = vld [vmem:[%s523 + $0xa7] sm:$0xff]
        %v4181 = vld [vmem:[%s523 + $0xaf] sm:$0xff]
        %v4182 = vld [vmem:[%s523 + $0xc7] sm:$0xff]
        %v4183 = vld [vmem:[%s523 + $0xcf] sm:$0xff]
        %v4184 = vld [vmem:[%s523 + $0xe7] sm:$0xff]
        %v4185 = vld [vmem:[%s523 + $0xef] sm:$0xff]
        %v4186 = vld [vmem:[%s523 + $0x107] sm:$0xff]
        %v4187 = vld [vmem:[%s523 + $0x10f] sm:$0xff]
        %v4188 = vld [vmem:[%s523 + $0x127] sm:$0xff]
        %v4189 = vld [vmem:[%s523 + $0x12f] sm:$0xff]
        %v4190 = vld [vmem:[%s523 + $0x147] sm:$0xff]
        %v4191 = vld [vmem:[%s523 + $0x14f] sm:$0xff]
        %v4192 = vld [vmem:[%s523 + $0x167] sm:$0xff]
        %v4193 = vld [vmem:[%s523 + $0x16f] sm:$0xff]
        %v4194 = vld [vmem:[%s523 + $0x187] sm:$0xff]
        %v4195 = vld [vmem:[%s523 + $0x18f] sm:$0xff]
        %v4196 = vld [vmem:[%s523 + $0x1a7] sm:$0xff]
        %v4197 = vld [vmem:[%s523 + $0x1af] sm:$0xff]
        %v4198 = vld [vmem:[%s523 + $0x1c7] sm:$0xff]
        %v4199 = vld [vmem:[%s523 + $0x1cf] sm:$0xff]
        %v4200 = vld [vmem:[%s523 + $0x1e7] sm:$0xff]
        %v4201 = vld [vmem:[%s523 + $0x1ef] sm:$0xff]
        %v4202 = vlaneseq
        %v4203 = vshrl.u32 %v4202, 7
        %v4204 = vsub.s32 3, %v4203
        %v4205 = vrot.slane %v3831, %v4204
        %v4206 = vmul.f32 %v4170, %v4205
        %v4207 = vmul.f32 %v4171, %v4205
        %v4208 = vmul.f32 %v4172, %v4205
        %v4209 = vmul.f32 %v4173, %v4205
        %v4210 = vmul.f32 %v4174, %v4205
        %v4211 = vmul.f32 %v4175, %v4205
        %v4212 = vmul.f32 %v4176, %v4205
        %v4213 = vmul.f32 %v4177, %v4205
        %v4214 = vmul.f32 %v4178, %v4205
        %v4215 = vmul.f32 %v4179, %v4205
        %v4216 = vmul.f32 %v4180, %v4205
        %v4217 = vmul.f32 %v4181, %v4205
        %v4218 = vmul.f32 %v4182, %v4205
        %v4219 = vmul.f32 %v4183, %v4205
        %v4220 = vmul.f32 %v4184, %v4205
        %v4221 = vmul.f32 %v4185, %v4205
        %v4222 = vmul.f32 %v4186, %v4205
        %v4223 = vmul.f32 %v4187, %v4205
        %v4224 = vmul.f32 %v4188, %v4205
        %v4225 = vmul.f32 %v4189, %v4205
        %v4226 = vmul.f32 %v4190, %v4205
        %v4227 = vmul.f32 %v4191, %v4205
        %v4228 = vmul.f32 %v4192, %v4205
        %v4229 = vmul.f32 %v4193, %v4205
        %v4230 = vmul.f32 %v4194, %v4205
        %v4231 = vmul.f32 %v4195, %v4205
        %v4232 = vmul.f32 %v4196, %v4205
        %v4233 = vmul.f32 %v4197, %v4205
        %v4234 = vmul.f32 %v4198, %v4205
        %v4235 = vmul.f32 %v4199, %v4205
        %v4236 = vmul.f32 %v4200, %v4205
        %v4237 = vmul.f32 %v4201, %v4205
        %v4238 = vadd.f32 %v4138, %v4206
        %v4239 = vadd.f32 %v4139, %v4207
        %v4240 = vadd.f32 %v4140, %v4208
        %v4241 = vadd.f32 %v4141, %v4209
        %v4242 = vadd.f32 %v4142, %v4210
        %v4243 = vadd.f32 %v4143, %v4211
        %v4244 = vadd.f32 %v4144, %v4212
        %v4245 = vadd.f32 %v4145, %v4213
        %v4246 = vadd.f32 %v4146, %v4214
        %v4247 = vadd.f32 %v4147, %v4215
        %v4248 = vadd.f32 %v4148, %v4216
        %v4249 = vadd.f32 %v4149, %v4217
        %v4250 = vadd.f32 %v4150, %v4218
        %v4251 = vadd.f32 %v4151, %v4219
        %v4252 = vadd.f32 %v4152, %v4220
        %v4253 = vadd.f32 %v4153, %v4221
        %v4254 = vadd.f32 %v4154, %v4222
        %v4255 = vadd.f32 %v4155, %v4223
        %v4256 = vadd.f32 %v4156, %v4224
        %v4257 = vadd.f32 %v4157, %v4225
        %v4258 = vadd.f32 %v4158, %v4226
        %v4259 = vadd.f32 %v4159, %v4227
        %v4260 = vadd.f32 %v4160, %v4228
        %v4261 = vadd.f32 %v4161, %v4229
        %v4262 = vadd.f32 %v4162, %v4230
        %v4263 = vadd.f32 %v4163, %v4231
        %v4264 = vadd.f32 %v4164, %v4232
        %v4265 = vadd.f32 %v4165, %v4233
        %v4266 = vadd.f32 %v4166, %v4234
        %v4267 = vadd.f32 %v4167, %v4235
        %v4268 = vadd.f32 %v4168, %v4236
        %v4269 = vadd.f32 %v4169, %v4237
        %v4270 = vld [vmem:[%s523 + $0x9] sm:$0xff]
        %v4271 = vld [vmem:[%s523 + $0x11] sm:$0xff]
        %v4272 = vld [vmem:[%s523 + $0x29] sm:$0xff]
        %v4273 = vld [vmem:[%s523 + $0x31] sm:$0xff]
        %v4274 = vld [vmem:[%s523 + $0x49] sm:$0xff]
        %v4275 = vld [vmem:[%s523 + $0x51] sm:$0xff]
        %v4276 = vld [vmem:[%s523 + $0x69] sm:$0xff]
        %v4277 = vld [vmem:[%s523 + $0x71] sm:$0xff]
        %v4278 = vld [vmem:[%s523 + $0x89] sm:$0xff]
        %v4279 = vld [vmem:[%s523 + $0x91] sm:$0xff]
        %v4280 = vld [vmem:[%s523 + $0xa9] sm:$0xff]
        %v4281 = vld [vmem:[%s523 + $0xb1] sm:$0xff]
        %v4282 = vld [vmem:[%s523 + $0xc9] sm:$0xff]
        %v4283 = vld [vmem:[%s523 + $0xd1] sm:$0xff]
        %v4284 = vld [vmem:[%s523 + $0xe9] sm:$0xff]
        %v4285 = vld [vmem:[%s523 + $0xf1] sm:$0xff]
        %v4286 = vld [vmem:[%s523 + $0x109] sm:$0xff]
        %v4287 = vld [vmem:[%s523 + $0x111] sm:$0xff]
        %v4288 = vld [vmem:[%s523 + $0x129] sm:$0xff]
        %v4289 = vld [vmem:[%s523 + $0x131] sm:$0xff]
        %v4290 = vld [vmem:[%s523 + $0x149] sm:$0xff]
        %v4291 = vld [vmem:[%s523 + $0x151] sm:$0xff]
        %v4292 = vld [vmem:[%s523 + $0x169] sm:$0xff]
        %v4293 = vld [vmem:[%s523 + $0x171] sm:$0xff]
        %v4294 = vld [vmem:[%s523 + $0x189] sm:$0xff]
        %v4295 = vld [vmem:[%s523 + $0x191] sm:$0xff]
        %v4296 = vld [vmem:[%s523 + $0x1a9] sm:$0xff]
        %v4297 = vld [vmem:[%s523 + $0x1b1] sm:$0xff]
        %v4298 = vld [vmem:[%s523 + $0x1c9] sm:$0xff]
        %v4299 = vld [vmem:[%s523 + $0x1d1] sm:$0xff]
        %v4300 = vld [vmem:[%s523 + $0x1e9] sm:$0xff]
        %v4301 = vld [vmem:[%s523 + $0x1f1] sm:$0xff]
        %v4302 = vlaneseq
        %v4303 = vshrl.u32 %v4302, 7
        %v4304 = vsub.s32 5, %v4303
        %v4305 = vrot.slane %v3831, %v4304
        %v4306 = vmul.f32 %v4270, %v4305
        %v4307 = vmul.f32 %v4271, %v4305
        %v4308 = vmul.f32 %v4272, %v4305
        %v4309 = vmul.f32 %v4273, %v4305
        %v4310 = vmul.f32 %v4274, %v4305
        %v4311 = vmul.f32 %v4275, %v4305
        %v4312 = vmul.f32 %v4276, %v4305
        %v4313 = vmul.f32 %v4277, %v4305
        %v4314 = vmul.f32 %v4278, %v4305
        %v4315 = vmul.f32 %v4279, %v4305
        %v4316 = vmul.f32 %v4280, %v4305
        %v4317 = vmul.f32 %v4281, %v4305
        %v4318 = vmul.f32 %v4282, %v4305
        %v4319 = vmul.f32 %v4283, %v4305
        %v4320 = vmul.f32 %v4284, %v4305
        %v4321 = vmul.f32 %v4285, %v4305
        %v4322 = vmul.f32 %v4286, %v4305
        %v4323 = vmul.f32 %v4287, %v4305
        %v4324 = vmul.f32 %v4288, %v4305
        %v4325 = vmul.f32 %v4289, %v4305
        %v4326 = vmul.f32 %v4290, %v4305
        %v4327 = vmul.f32 %v4291, %v4305
        %v4328 = vmul.f32 %v4292, %v4305
        %v4329 = vmul.f32 %v4293, %v4305
        %v4330 = vmul.f32 %v4294, %v4305
        %v4331 = vmul.f32 %v4295, %v4305
        %v4332 = vmul.f32 %v4296, %v4305
        %v4333 = vmul.f32 %v4297, %v4305
        %v4334 = vmul.f32 %v4298, %v4305
        %v4335 = vmul.f32 %v4299, %v4305
        %v4336 = vmul.f32 %v4300, %v4305
        %v4337 = vmul.f32 %v4301, %v4305
        %v4338 = vadd.f32 %v4238, %v4306
        %v4339 = vadd.f32 %v4239, %v4307
        %v4340 = vadd.f32 %v4240, %v4308
        %v4341 = vadd.f32 %v4241, %v4309
        %v4342 = vadd.f32 %v4242, %v4310
        %v4343 = vadd.f32 %v4243, %v4311
        %v4344 = vadd.f32 %v4244, %v4312
        %v4345 = vadd.f32 %v4245, %v4313
        %v4346 = vadd.f32 %v4246, %v4314
        %v4347 = vadd.f32 %v4247, %v4315
        %v4348 = vadd.f32 %v4248, %v4316
        %v4349 = vadd.f32 %v4249, %v4317
        %v4350 = vadd.f32 %v4250, %v4318
        %v4351 = vadd.f32 %v4251, %v4319
        %v4352 = vadd.f32 %v4252, %v4320
        %v4353 = vadd.f32 %v4253, %v4321
        %v4354 = vadd.f32 %v4254, %v4322
        %v4355 = vadd.f32 %v4255, %v4323
        %v4356 = vadd.f32 %v4256, %v4324
        %v4357 = vadd.f32 %v4257, %v4325
        %v4358 = vadd.f32 %v4258, %v4326
        %v4359 = vadd.f32 %v4259, %v4327
        %v4360 = vadd.f32 %v4260, %v4328
        %v4361 = vadd.f32 %v4261, %v4329
        %v4362 = vadd.f32 %v4262, %v4330
        %v4363 = vadd.f32 %v4263, %v4331
        %v4364 = vadd.f32 %v4264, %v4332
        %v4365 = vadd.f32 %v4265, %v4333
        %v4366 = vadd.f32 %v4266, %v4334
        %v4367 = vadd.f32 %v4267, %v4335
        %v4368 = vadd.f32 %v4268, %v4336
        %v4369 = vadd.f32 %v4269, %v4337
        %v4370 = vld [vmem:[%s1159 + $0x7] sm:$0xff]
        %v4371 = vld [vmem:[%s1159 + $0xf] sm:$0xff]
        %v4372 = vld [vmem:[%s1159 + $0x27] sm:$0xff]
        %v4373 = vld [vmem:[%s1159 + $0x2f] sm:$0xff]
        %v4374 = vld [vmem:[%s1159 + $0x47] sm:$0xff]
        %v4375 = vld [vmem:[%s1159 + $0x4f] sm:$0xff]
        %v4376 = vld [vmem:[%s1159 + $0x67] sm:$0xff]
        %v4377 = vld [vmem:[%s1159 + $0x6f] sm:$0xff]
        %v4378 = vld [vmem:[%s1159 + $0x87] sm:$0xff]
        %v4379 = vld [vmem:[%s1159 + $0x8f] sm:$0xff]
        %v4380 = vld [vmem:[%s1159 + $0xa7] sm:$0xff]
        %v4381 = vld [vmem:[%s1159 + $0xaf] sm:$0xff]
        %v4382 = vld [vmem:[%s1159 + $0xc7] sm:$0xff]
        %v4383 = vld [vmem:[%s1159 + $0xcf] sm:$0xff]
        %v4384 = vld [vmem:[%s1159 + $0xe7] sm:$0xff]
        %v4385 = vld [vmem:[%s1159 + $0xef] sm:$0xff]
        %v4386 = vld [vmem:[%s1159 + $0x107] sm:$0xff]
        %v4387 = vld [vmem:[%s1159 + $0x10f] sm:$0xff]
        %v4388 = vld [vmem:[%s1159 + $0x127] sm:$0xff]
        %v4389 = vld [vmem:[%s1159 + $0x12f] sm:$0xff]
        %v4390 = vld [vmem:[%s1159 + $0x147] sm:$0xff]
        %v4391 = vld [vmem:[%s1159 + $0x14f] sm:$0xff]
        %v4392 = vld [vmem:[%s1159 + $0x167] sm:$0xff]
        %v4393 = vld [vmem:[%s1159 + $0x16f] sm:$0xff]
        %v4394 = vld [vmem:[%s1159 + $0x187] sm:$0xff]
        %v4395 = vld [vmem:[%s1159 + $0x18f] sm:$0xff]
        %v4396 = vld [vmem:[%s1159 + $0x1a7] sm:$0xff]
        %v4397 = vld [vmem:[%s1159 + $0x1af] sm:$0xff]
        %v4398 = vld [vmem:[%s1159 + $0x1c7] sm:$0xff]
        %v4399 = vld [vmem:[%s1159 + $0x1cf] sm:$0xff]
        %v4400 = vld [vmem:[%s1159 + $0x1e7] sm:$0xff]
        %v4401 = vld [vmem:[%s1159 + $0x1ef] sm:$0xff]
        %v4402 = vlaneseq
        %v4403 = vshrl.u32 %v4402, 7
        %v4404 = vsub.s32 6, %v4403
        %v4405 = vrot.slane %v3831, %v4404
        %v4406 = vmul.f32 %v4370, %v4405
        %v4407 = vmul.f32 %v4371, %v4405
        %v4408 = vmul.f32 %v4372, %v4405
        %v4409 = vmul.f32 %v4373, %v4405
        %v4410 = vmul.f32 %v4374, %v4405
        %v4411 = vmul.f32 %v4375, %v4405
        %v4412 = vmul.f32 %v4376, %v4405
        %v4413 = vmul.f32 %v4377, %v4405
        %v4414 = vmul.f32 %v4378, %v4405
        %v4415 = vmul.f32 %v4379, %v4405
        %v4416 = vmul.f32 %v4380, %v4405
        %v4417 = vmul.f32 %v4381, %v4405
        %v4418 = vmul.f32 %v4382, %v4405
        %v4419 = vmul.f32 %v4383, %v4405
        %v4420 = vmul.f32 %v4384, %v4405
        %v4421 = vmul.f32 %v4385, %v4405
        %v4422 = vmul.f32 %v4386, %v4405
        %v4423 = vmul.f32 %v4387, %v4405
        %v4424 = vmul.f32 %v4388, %v4405
        %v4425 = vmul.f32 %v4389, %v4405
        %v4426 = vmul.f32 %v4390, %v4405
        %v4427 = vmul.f32 %v4391, %v4405
        %v4428 = vmul.f32 %v4392, %v4405
        %v4429 = vmul.f32 %v4393, %v4405
        %v4430 = vmul.f32 %v4394, %v4405
        %v4431 = vmul.f32 %v4395, %v4405
        %v4432 = vmul.f32 %v4396, %v4405
        %v4433 = vmul.f32 %v4397, %v4405
        %v4434 = vmul.f32 %v4398, %v4405
        %v4435 = vmul.f32 %v4399, %v4405
        %v4436 = vmul.f32 %v4400, %v4405
        %v4437 = vmul.f32 %v4401, %v4405
        %v4438 = vadd.f32 %v4338, %v4406
        %v4439 = vadd.f32 %v4339, %v4407
        %v4440 = vadd.f32 %v4340, %v4408
        %v4441 = vadd.f32 %v4341, %v4409
        %v4442 = vadd.f32 %v4342, %v4410
        %v4443 = vadd.f32 %v4343, %v4411
        %v4444 = vadd.f32 %v4344, %v4412
        %v4445 = vadd.f32 %v4345, %v4413
        %v4446 = vadd.f32 %v4346, %v4414
        %v4447 = vadd.f32 %v4347, %v4415
        %v4448 = vadd.f32 %v4348, %v4416
        %v4449 = vadd.f32 %v4349, %v4417
        %v4450 = vadd.f32 %v4350, %v4418
        %v4451 = vadd.f32 %v4351, %v4419
        %v4452 = vadd.f32 %v4352, %v4420
        %v4453 = vadd.f32 %v4353, %v4421
        %v4454 = vadd.f32 %v4354, %v4422
        %v4455 = vadd.f32 %v4355, %v4423
        %v4456 = vadd.f32 %v4356, %v4424
        %v4457 = vadd.f32 %v4357, %v4425
        %v4458 = vadd.f32 %v4358, %v4426
        %v4459 = vadd.f32 %v4359, %v4427
        %v4460 = vadd.f32 %v4360, %v4428
        %v4461 = vadd.f32 %v4361, %v4429
        %v4462 = vadd.f32 %v4362, %v4430
        %v4463 = vadd.f32 %v4363, %v4431
        %v4464 = vadd.f32 %v4364, %v4432
        %v4465 = vadd.f32 %v4365, %v4433
        %v4466 = vadd.f32 %v4366, %v4434
        %v4467 = vadd.f32 %v4367, %v4435
        %v4468 = vadd.f32 %v4368, %v4436
        %v4469 = vadd.f32 %v4369, %v4437
        %v4470 = vld [vmem:[%s1159 + $0x8] sm:$0xff]
        %v4471 = vld [vmem:[%s1159 + $0x10] sm:$0xff]
        %v4472 = vld [vmem:[%s1159 + $0x28] sm:$0xff]
        %v4473 = vld [vmem:[%s1159 + $0x30] sm:$0xff]
        %v4474 = vld [vmem:[%s1159 + $0x48] sm:$0xff]
        %v4475 = vld [vmem:[%s1159 + $0x50] sm:$0xff]
        %v4476 = vld [vmem:[%s1159 + $0x68] sm:$0xff]
        %v4477 = vld [vmem:[%s1159 + $0x70] sm:$0xff]
        %v4478 = vld [vmem:[%s1159 + $0x88] sm:$0xff]
        %v4479 = vld [vmem:[%s1159 + $0x90] sm:$0xff]
        %v4480 = vld [vmem:[%s1159 + $0xa8] sm:$0xff]
        %v4481 = vld [vmem:[%s1159 + $0xb0] sm:$0xff]
        %v4482 = vld [vmem:[%s1159 + $0xc8] sm:$0xff]
        %v4483 = vld [vmem:[%s1159 + $0xd0] sm:$0xff]
        %v4484 = vld [vmem:[%s1159 + $0xe8] sm:$0xff]
        %v4485 = vld [vmem:[%s1159 + $0xf0] sm:$0xff]
        %v4486 = vld [vmem:[%s1159 + $0x108] sm:$0xff]
        %v4487 = vld [vmem:[%s1159 + $0x110] sm:$0xff]
        %v4488 = vld [vmem:[%s1159 + $0x128] sm:$0xff]
        %v4489 = vld [vmem:[%s1159 + $0x130] sm:$0xff]
        %v4490 = vld [vmem:[%s1159 + $0x148] sm:$0xff]
        %v4491 = vld [vmem:[%s1159 + $0x150] sm:$0xff]
        %v4492 = vld [vmem:[%s1159 + $0x168] sm:$0xff]
        %v4493 = vld [vmem:[%s1159 + $0x170] sm:$0xff]
        %v4494 = vld [vmem:[%s1159 + $0x188] sm:$0xff]
        %v4495 = vld [vmem:[%s1159 + $0x190] sm:$0xff]
        %v4496 = vld [vmem:[%s1159 + $0x1a8] sm:$0xff]
        %v4497 = vld [vmem:[%s1159 + $0x1b0] sm:$0xff]
        %v4498 = vld [vmem:[%s1159 + $0x1c8] sm:$0xff]
        %v4499 = vld [vmem:[%s1159 + $0x1d0] sm:$0xff]
        %v4500 = vld [vmem:[%s1159 + $0x1e8] sm:$0xff]
        %v4501 = vld [vmem:[%s1159 + $0x1f0] sm:$0xff]
        %v4502 = vlaneseq
        %v4503 = vshrl.u32 %v4502, 7
        %v4504 = vsub.s32 7, %v4503
        %v4505 = vrot.slane %v3831, %v4504
        %v4506 = vmul.f32 %v4470, %v4505
        %v4507 = vmul.f32 %v4471, %v4505
        %v4508 = vmul.f32 %v4472, %v4505
        %v4509 = vmul.f32 %v4473, %v4505
        %v4510 = vmul.f32 %v4474, %v4505
        %v4511 = vmul.f32 %v4475, %v4505
        %v4512 = vmul.f32 %v4476, %v4505
        %v4513 = vmul.f32 %v4477, %v4505
        %v4514 = vmul.f32 %v4478, %v4505
        %v4515 = vmul.f32 %v4479, %v4505
        %v4516 = vmul.f32 %v4480, %v4505
        %v4517 = vmul.f32 %v4481, %v4505
        %v4518 = vmul.f32 %v4482, %v4505
        %v4519 = vmul.f32 %v4483, %v4505
        %v4520 = vmul.f32 %v4484, %v4505
        %v4521 = vmul.f32 %v4485, %v4505
        %v4522 = vmul.f32 %v4486, %v4505
        %v4523 = vmul.f32 %v4487, %v4505
        %v4524 = vmul.f32 %v4488, %v4505
        %v4525 = vmul.f32 %v4489, %v4505
        %v4526 = vmul.f32 %v4490, %v4505
        %v4527 = vmul.f32 %v4491, %v4505
        %v4528 = vmul.f32 %v4492, %v4505
        %v4529 = vmul.f32 %v4493, %v4505
        %v4530 = vmul.f32 %v4494, %v4505
        %v4531 = vmul.f32 %v4495, %v4505
        %v4532 = vmul.f32 %v4496, %v4505
        %v4533 = vmul.f32 %v4497, %v4505
        %v4534 = vmul.f32 %v4498, %v4505
        %v4535 = vmul.f32 %v4499, %v4505
        %v4536 = vmul.f32 %v4500, %v4505
        %v4537 = vmul.f32 %v4501, %v4505
        %v4538 = vadd.f32 %v4438, %v4506
        %v4539 = vadd.f32 %v4439, %v4507
        %v4540 = vadd.f32 %v4440, %v4508
        %v4541 = vadd.f32 %v4441, %v4509
        %v4542 = vadd.f32 %v4442, %v4510
        %v4543 = vadd.f32 %v4443, %v4511
        %v4544 = vadd.f32 %v4444, %v4512
        %v4545 = vadd.f32 %v4445, %v4513
        %v4546 = vadd.f32 %v4446, %v4514
        %v4547 = vadd.f32 %v4447, %v4515
        %v4548 = vadd.f32 %v4448, %v4516
        %v4549 = vadd.f32 %v4449, %v4517
        %v4550 = vadd.f32 %v4450, %v4518
        %v4551 = vadd.f32 %v4451, %v4519
        %v4552 = vadd.f32 %v4452, %v4520
        %v4553 = vadd.f32 %v4453, %v4521
        %v4554 = vadd.f32 %v4454, %v4522
        %v4555 = vadd.f32 %v4455, %v4523
        %v4556 = vadd.f32 %v4456, %v4524
        %v4557 = vadd.f32 %v4457, %v4525
        %v4558 = vadd.f32 %v4458, %v4526
        %v4559 = vadd.f32 %v4459, %v4527
        %v4560 = vadd.f32 %v4460, %v4528
        %v4561 = vadd.f32 %v4461, %v4529
        %v4562 = vadd.f32 %v4462, %v4530
        %v4563 = vadd.f32 %v4463, %v4531
        %v4564 = vadd.f32 %v4464, %v4532
        %v4565 = vadd.f32 %v4465, %v4533
        %v4566 = vadd.f32 %v4466, %v4534
        %v4567 = vadd.f32 %v4467, %v4535
        %v4568 = vadd.f32 %v4468, %v4536
        %v4569 = vadd.f32 %v4469, %v4537
        %v4570 = vld [vmem:[%s1159 + $0x9] sm:$0xff]
        %v4571 = vld [vmem:[%s1159 + $0x11] sm:$0xff]
        %v4572 = vld [vmem:[%s1159 + $0x29] sm:$0xff]
        %v4573 = vld [vmem:[%s1159 + $0x31] sm:$0xff]
        %v4574 = vld [vmem:[%s1159 + $0x49] sm:$0xff]
        %v4575 = vld [vmem:[%s1159 + $0x51] sm:$0xff]
        %v4576 = vld [vmem:[%s1159 + $0x69] sm:$0xff]
        %v4577 = vld [vmem:[%s1159 + $0x71] sm:$0xff]
        %v4578 = vld [vmem:[%s1159 + $0x89] sm:$0xff]
        %v4579 = vld [vmem:[%s1159 + $0x91] sm:$0xff]
        %v4580 = vld [vmem:[%s1159 + $0xa9] sm:$0xff]
        %v4581 = vld [vmem:[%s1159 + $0xb1] sm:$0xff]
        %v4582 = vld [vmem:[%s1159 + $0xc9] sm:$0xff]
        %v4583 = vld [vmem:[%s1159 + $0xd1] sm:$0xff]
        %v4584 = vld [vmem:[%s1159 + $0xe9] sm:$0xff]
        %v4585 = vld [vmem:[%s1159 + $0xf1] sm:$0xff]
        %v4586 = vld [vmem:[%s1159 + $0x109] sm:$0xff]
        %v4587 = vld [vmem:[%s1159 + $0x111] sm:$0xff]
        %v4588 = vld [vmem:[%s1159 + $0x129] sm:$0xff]
        %v4589 = vld [vmem:[%s1159 + $0x131] sm:$0xff]
        %v4590 = vld [vmem:[%s1159 + $0x149] sm:$0xff]
        %v4591 = vld [vmem:[%s1159 + $0x151] sm:$0xff]
        %v4592 = vld [vmem:[%s1159 + $0x169] sm:$0xff]
        %v4593 = vld [vmem:[%s1159 + $0x171] sm:$0xff]
        %v4594 = vld [vmem:[%s1159 + $0x189] sm:$0xff]
        %v4595 = vld [vmem:[%s1159 + $0x191] sm:$0xff]
        %v4596 = vld [vmem:[%s1159 + $0x1a9] sm:$0xff]
        %v4597 = vld [vmem:[%s1159 + $0x1b1] sm:$0xff]
        %v4598 = vld [vmem:[%s1159 + $0x1c9] sm:$0xff]
        %v4599 = vld [vmem:[%s1159 + $0x1d1] sm:$0xff]
        %v4600 = vld [vmem:[%s1159 + $0x1e9] sm:$0xff]
        %v4601 = vld [vmem:[%s1159 + $0x1f1] sm:$0xff]
        %v4602 = vlaneseq
        %v4603 = vshrl.u32 %v4602, 7
        %v4604 = vsub.s32 0, %v4603
        %v4605 = vrot.slane %v3832, %v4604
        %v4606 = vmul.f32 %v4570, %v4605
        %v4607 = vmul.f32 %v4571, %v4605
        %v4608 = vmul.f32 %v4572, %v4605
        %v4609 = vmul.f32 %v4573, %v4605
        %v4610 = vmul.f32 %v4574, %v4605
        %v4611 = vmul.f32 %v4575, %v4605
        %v4612 = vmul.f32 %v4576, %v4605
        %v4613 = vmul.f32 %v4577, %v4605
        %v4614 = vmul.f32 %v4578, %v4605
        %v4615 = vmul.f32 %v4579, %v4605
        %v4616 = vmul.f32 %v4580, %v4605
        %v4617 = vmul.f32 %v4581, %v4605
        %v4618 = vmul.f32 %v4582, %v4605
        %v4619 = vmul.f32 %v4583, %v4605
        %v4620 = vmul.f32 %v4584, %v4605
        %v4621 = vmul.f32 %v4585, %v4605
        %v4622 = vmul.f32 %v4586, %v4605
        %v4623 = vmul.f32 %v4587, %v4605
        %v4624 = vmul.f32 %v4588, %v4605
        %v4625 = vmul.f32 %v4589, %v4605
        %v4626 = vmul.f32 %v4590, %v4605
        %v4627 = vmul.f32 %v4591, %v4605
        %v4628 = vmul.f32 %v4592, %v4605
        %v4629 = vmul.f32 %v4593, %v4605
        %v4630 = vmul.f32 %v4594, %v4605
        %v4631 = vmul.f32 %v4595, %v4605
        %v4632 = vmul.f32 %v4596, %v4605
        %v4633 = vmul.f32 %v4597, %v4605
        %v4634 = vmul.f32 %v4598, %v4605
        %v4635 = vmul.f32 %v4599, %v4605
        %v4636 = vmul.f32 %v4600, %v4605
        %v4637 = vmul.f32 %v4601, %v4605
        %v4638 = vadd.f32 %v4538, %v4606
        %v4639 = vadd.f32 %v4539, %v4607
        %v4640 = vadd.f32 %v4540, %v4608
        %v4641 = vadd.f32 %v4541, %v4609
        %v4642 = vadd.f32 %v4542, %v4610
        %v4643 = vadd.f32 %v4543, %v4611
        %v4644 = vadd.f32 %v4544, %v4612
        %v4645 = vadd.f32 %v4545, %v4613
        %v4646 = vadd.f32 %v4546, %v4614
        %v4647 = vadd.f32 %v4547, %v4615
        %v4648 = vadd.f32 %v4548, %v4616
        %v4649 = vadd.f32 %v4549, %v4617
        %v4650 = vadd.f32 %v4550, %v4618
        %v4651 = vadd.f32 %v4551, %v4619
        %v4652 = vadd.f32 %v4552, %v4620
        %v4653 = vadd.f32 %v4553, %v4621
        %v4654 = vadd.f32 %v4554, %v4622
        %v4655 = vadd.f32 %v4555, %v4623
        %v4656 = vadd.f32 %v4556, %v4624
        %v4657 = vadd.f32 %v4557, %v4625
        %v4658 = vadd.f32 %v4558, %v4626
        %v4659 = vadd.f32 %v4559, %v4627
        %v4660 = vadd.f32 %v4560, %v4628
        %v4661 = vadd.f32 %v4561, %v4629
        %v4662 = vadd.f32 %v4562, %v4630
        %v4663 = vadd.f32 %v4563, %v4631
        %v4664 = vadd.f32 %v4564, %v4632
        %v4665 = vadd.f32 %v4565, %v4633
        %v4666 = vadd.f32 %v4566, %v4634
        %v4667 = vadd.f32 %v4567, %v4635
        %v4668 = vadd.f32 %v4568, %v4636
        %v4669 = vadd.f32 %v4569, %v4637
        %v4671 = vlaneseq
        %v4672 = vshrl.u32 %v4671, 7
        %v4673 = vsub.s32 0, %v4672
        %v4674 = vrot.slane %v3833, %v4673
        %v4676 = vadd.f32 %v4638, %v4674
        %v4677 = vadd.f32 %v4639, %v4674
        %v4678 = vadd.f32 %v4640, %v4674
        %v4679 = vadd.f32 %v4641, %v4674
        %v4680 = vadd.f32 %v4642, %v4674
        %v4681 = vadd.f32 %v4643, %v4674
        %v4682 = vadd.f32 %v4644, %v4674
        %v4683 = vadd.f32 %v4645, %v4674
        %v4684 = vadd.f32 %v4646, %v4674
        %v4685 = vadd.f32 %v4647, %v4674
        %v4686 = vadd.f32 %v4648, %v4674
        %v4687 = vadd.f32 %v4649, %v4674
        %v4688 = vadd.f32 %v4650, %v4674
        %v4689 = vadd.f32 %v4651, %v4674
        %v4690 = vadd.f32 %v4652, %v4674
        %v4691 = vadd.f32 %v4653, %v4674
        %v4692 = vadd.f32 %v4654, %v4674
        %v4693 = vadd.f32 %v4655, %v4674
        %v4694 = vadd.f32 %v4656, %v4674
        %v4695 = vadd.f32 %v4657, %v4674
        %v4696 = vadd.f32 %v4658, %v4674
        %v4697 = vadd.f32 %v4659, %v4674
        %v4698 = vadd.f32 %v4660, %v4674
        %v4699 = vadd.f32 %v4661, %v4674
        %v4700 = vadd.f32 %v4662, %v4674
        %v4701 = vadd.f32 %v4663, %v4674
        %v4702 = vadd.f32 %v4664, %v4674
        %v4703 = vadd.f32 %v4665, %v4674
        %v4704 = vadd.f32 %v4666, %v4674
        %v4705 = vadd.f32 %v4667, %v4674
        %v4706 = vadd.f32 %v4668, %v4674
        %v4707 = vadd.f32 %v4669, %v4674
        %v4708 = vxor.u32 %v4676, 2147483648
        %v4709 = vxor.u32 %v4677, 2147483648
        %v4710 = vxor.u32 %v4678, 2147483648
        %v4711 = vxor.u32 %v4679, 2147483648
        %v4712 = vxor.u32 %v4680, 2147483648
        %v4713 = vxor.u32 %v4681, 2147483648
        %v4714 = vxor.u32 %v4682, 2147483648
        %v4715 = vxor.u32 %v4683, 2147483648
        %v4716 = vxor.u32 %v4684, 2147483648
        %v4717 = vxor.u32 %v4685, 2147483648
        %v4718 = vxor.u32 %v4686, 2147483648
        %v4719 = vxor.u32 %v4687, 2147483648
        %v4720 = vxor.u32 %v4688, 2147483648
        %v4721 = vxor.u32 %v4689, 2147483648
        %v4722 = vxor.u32 %v4690, 2147483648
        %v4723 = vxor.u32 %v4691, 2147483648
        %v4724 = vxor.u32 %v4692, 2147483648
        %v4725 = vxor.u32 %v4693, 2147483648
        %v4726 = vxor.u32 %v4694, 2147483648
        %v4727 = vxor.u32 %v4695, 2147483648
        %v4728 = vxor.u32 %v4696, 2147483648
        %v4729 = vxor.u32 %v4697, 2147483648
        %v4730 = vxor.u32 %v4698, 2147483648
        %v4731 = vxor.u32 %v4699, 2147483648
        %v4732 = vxor.u32 %v4700, 2147483648
        %v4733 = vxor.u32 %v4701, 2147483648
        %v4734 = vxor.u32 %v4702, 2147483648
        %v4735 = vxor.u32 %v4703, 2147483648
        %v4736 = vxor.u32 %v4704, 2147483648
        %v4737 = vxor.u32 %v4705, 2147483648
        %v4738 = vxor.u32 %v4706, 2147483648
        %v4739 = vxor.u32 %v4707, 2147483648
        %v4740 = vmul.f32 %v4708, 1.442695
        %v4741 = vpow.pop %v4740
        %v4742 = vmul.f32 %v4709, 1.442695
        %v4743 = vpow.pop %v4742
        %v4744 = vmul.f32 %v4710, 1.442695
        %v4745 = vpow.pop %v4744
        %v4746 = vmul.f32 %v4711, 1.442695
        %v4747 = vpow.pop %v4746
        %v4748 = vmul.f32 %v4712, 1.442695
        %v4749 = vpow.pop %v4748
        %v4750 = vmul.f32 %v4713, 1.442695
        %v4751 = vpow.pop %v4750
        %v4752 = vmul.f32 %v4714, 1.442695
        %v4753 = vpow.pop %v4752
        %v4754 = vmul.f32 %v4715, 1.442695
        %v4755 = vpow.pop %v4754
        %v4756 = vmul.f32 %v4716, 1.442695
        %v4757 = vpow.pop %v4756
        %v4758 = vmul.f32 %v4717, 1.442695
        %v4759 = vpow.pop %v4758
        %v4760 = vmul.f32 %v4718, 1.442695
        %v4761 = vpow.pop %v4760
        %v4762 = vmul.f32 %v4719, 1.442695
        %v4763 = vpow.pop %v4762
        %v4764 = vmul.f32 %v4720, 1.442695
        %v4765 = vpow.pop %v4764
        %v4766 = vmul.f32 %v4721, 1.442695
        %v4767 = vpow.pop %v4766
        %v4768 = vmul.f32 %v4722, 1.442695
        %v4769 = vpow.pop %v4768
        %v4770 = vmul.f32 %v4723, 1.442695
        %v4771 = vpow.pop %v4770
        %v4772 = vmul.f32 %v4724, 1.442695
        %v4773 = vpow.pop %v4772
        %v4774 = vmul.f32 %v4725, 1.442695
        %v4775 = vpow.pop %v4774
        %v4776 = vmul.f32 %v4726, 1.442695
        %v4777 = vpow.pop %v4776
        %v4778 = vmul.f32 %v4727, 1.442695
        %v4779 = vpow.pop %v4778
        %v4780 = vmul.f32 %v4728, 1.442695
        %v4781 = vpow.pop %v4780
        %v4782 = vmul.f32 %v4729, 1.442695
        %v4783 = vpow.pop %v4782
        %v4784 = vmul.f32 %v4730, 1.442695
        %v4785 = vpow.pop %v4784
        %v4786 = vmul.f32 %v4731, 1.442695
        %v4787 = vpow.pop %v4786
        %v4788 = vmul.f32 %v4732, 1.442695
        %v4789 = vpow.pop %v4788
        %v4790 = vmul.f32 %v4733, 1.442695
        %v4791 = vpow.pop %v4790
        %v4792 = vmul.f32 %v4734, 1.442695
        %v4793 = vpow.pop %v4792
        %v4794 = vmul.f32 %v4735, 1.442695
        %v4795 = vpow.pop %v4794
        %v4796 = vmul.f32 %v4736, 1.442695
        %v4797 = vpow.pop %v4796
        %v4798 = vmul.f32 %v4737, 1.442695
        %v4799 = vpow.pop %v4798
        %v4800 = vmul.f32 %v4738, 1.442695
        %v4801 = vpow.pop %v4800
        %v4802 = vmul.f32 %v4739, 1.442695
        %v4803 = vpow.pop %v4802
        %v4804 = vadd.f32 %v4741, 1.0
        %v4805 = vadd.f32 %v4743, 1.0
        %v4806 = vadd.f32 %v4745, 1.0
        %v4807 = vadd.f32 %v4747, 1.0
        %v4808 = vadd.f32 %v4749, 1.0
        %v4809 = vadd.f32 %v4751, 1.0
        %v4810 = vadd.f32 %v4753, 1.0
        %v4811 = vadd.f32 %v4755, 1.0
        %v4812 = vadd.f32 %v4757, 1.0
        %v4813 = vadd.f32 %v4759, 1.0
        %v4814 = vadd.f32 %v4761, 1.0
        %v4815 = vadd.f32 %v4763, 1.0
        %v4816 = vadd.f32 %v4765, 1.0
        %v4817 = vadd.f32 %v4767, 1.0
        %v4818 = vadd.f32 %v4769, 1.0
        %v4819 = vadd.f32 %v4771, 1.0
        %v4820 = vadd.f32 %v4773, 1.0
        %v4821 = vadd.f32 %v4775, 1.0
        %v4822 = vadd.f32 %v4777, 1.0
        %v4823 = vadd.f32 %v4779, 1.0
        %v4824 = vadd.f32 %v4781, 1.0
        %v4825 = vadd.f32 %v4783, 1.0
        %v4826 = vadd.f32 %v4785, 1.0
        %v4827 = vadd.f32 %v4787, 1.0
        %v4828 = vadd.f32 %v4789, 1.0
        %v4829 = vadd.f32 %v4791, 1.0
        %v4830 = vadd.f32 %v4793, 1.0
        %v4831 = vadd.f32 %v4795, 1.0
        %v4832 = vadd.f32 %v4797, 1.0
        %v4833 = vadd.f32 %v4799, 1.0
        %v4834 = vadd.f32 %v4801, 1.0
        %v4835 = vadd.f32 %v4803, 1.0
        %v4836 = vrcp.pop %v4804
        %v4837 = vmul.f32 1.0, %v4836
        %v4838 = vrcp.pop %v4805
        %v4839 = vmul.f32 1.0, %v4838
        %v4840 = vrcp.pop %v4806
        %v4841 = vmul.f32 1.0, %v4840
        %v4842 = vrcp.pop %v4807
        %v4843 = vmul.f32 1.0, %v4842
        %v4844 = vrcp.pop %v4808
        %v4845 = vmul.f32 1.0, %v4844
        %v4846 = vrcp.pop %v4809
        %v4847 = vmul.f32 1.0, %v4846
        %v4848 = vrcp.pop %v4810
        %v4849 = vmul.f32 1.0, %v4848
        %v4850 = vrcp.pop %v4811
        %v4851 = vmul.f32 1.0, %v4850
        %v4852 = vrcp.pop %v4812
        %v4853 = vmul.f32 1.0, %v4852
        %v4854 = vrcp.pop %v4813
        %v4855 = vmul.f32 1.0, %v4854
        %v4856 = vrcp.pop %v4814
        %v4857 = vmul.f32 1.0, %v4856
        %v4858 = vrcp.pop %v4815
        %v4859 = vmul.f32 1.0, %v4858
        %v4860 = vrcp.pop %v4816
        %v4861 = vmul.f32 1.0, %v4860
        %v4862 = vrcp.pop %v4817
        %v4863 = vmul.f32 1.0, %v4862
        %v4864 = vrcp.pop %v4818
        %v4865 = vmul.f32 1.0, %v4864
        %v4866 = vrcp.pop %v4819
        %v4867 = vmul.f32 1.0, %v4866
        %v4868 = vrcp.pop %v4820
        %v4869 = vmul.f32 1.0, %v4868
        %v4870 = vrcp.pop %v4821
        %v4871 = vmul.f32 1.0, %v4870
        %v4872 = vrcp.pop %v4822
        %v4873 = vmul.f32 1.0, %v4872
        %v4874 = vrcp.pop %v4823
        %v4875 = vmul.f32 1.0, %v4874
        %v4876 = vrcp.pop %v4824
        %v4877 = vmul.f32 1.0, %v4876
        %v4878 = vrcp.pop %v4825
        %v4879 = vmul.f32 1.0, %v4878
        %v4880 = vrcp.pop %v4826
        %v4881 = vmul.f32 1.0, %v4880
        %v4882 = vrcp.pop %v4827
        %v4883 = vmul.f32 1.0, %v4882
        %v4884 = vrcp.pop %v4828
        %v4885 = vmul.f32 1.0, %v4884
        %v4886 = vrcp.pop %v4829
        %v4887 = vmul.f32 1.0, %v4886
        %v4888 = vrcp.pop %v4830
        %v4889 = vmul.f32 1.0, %v4888
        %v4890 = vrcp.pop %v4831
        %v4891 = vmul.f32 1.0, %v4890
        %v4892 = vrcp.pop %v4832
        %v4893 = vmul.f32 1.0, %v4892
        %v4894 = vrcp.pop %v4833
        %v4895 = vmul.f32 1.0, %v4894
        %v4896 = vrcp.pop %v4834
        %v4897 = vmul.f32 1.0, %v4896
        %v4898 = vrcp.pop %v4835
        %v4899 = vmul.f32 1.0, %v4898
        %v4900 = vmul.f32 %v4676, %v4837
        %v4901 = vmul.f32 %v4677, %v4839
        %v4902 = vmul.f32 %v4678, %v4841
        %v4903 = vmul.f32 %v4679, %v4843
        %v4904 = vmul.f32 %v4680, %v4845
        %v4905 = vmul.f32 %v4681, %v4847
        %v4906 = vmul.f32 %v4682, %v4849
        %v4907 = vmul.f32 %v4683, %v4851
        %v4908 = vmul.f32 %v4684, %v4853
        %v4909 = vmul.f32 %v4685, %v4855
        %v4910 = vmul.f32 %v4686, %v4857
        %v4911 = vmul.f32 %v4687, %v4859
        %v4912 = vmul.f32 %v4688, %v4861
        %v4913 = vmul.f32 %v4689, %v4863
        %v4914 = vmul.f32 %v4690, %v4865
        %v4915 = vmul.f32 %v4691, %v4867
        %v4916 = vmul.f32 %v4692, %v4869
        %v4917 = vmul.f32 %v4693, %v4871
        %v4918 = vmul.f32 %v4694, %v4873
        %v4919 = vmul.f32 %v4695, %v4875
        %v4920 = vmul.f32 %v4696, %v4877
        %v4921 = vmul.f32 %v4697, %v4879
        %v4922 = vmul.f32 %v4698, %v4881
        %v4923 = vmul.f32 %v4699, %v4883
        %v4924 = vmul.f32 %v4700, %v4885
        %v4925 = vmul.f32 %v4701, %v4887
        %v4926 = vmul.f32 %v4702, %v4889
        %v4927 = vmul.f32 %v4703, %v4891
        %v4928 = vmul.f32 %v4704, %v4893
        %v4929 = vmul.f32 %v4705, %v4895
        %v4930 = vmul.f32 %v4706, %v4897
        %v4931 = vmul.f32 %v4707, %v4899
        %v4932 = vadd.f32 %v556, %v4900
        %v4933 = vadd.f32 %v557, %v4901
        %v4934 = vadd.f32 %v558, %v4902
        %v4935 = vadd.f32 %v559, %v4903
        %v4936 = vadd.f32 %v560, %v4904
        %v4937 = vadd.f32 %v561, %v4905
        %v4938 = vadd.f32 %v562, %v4906
        %v4939 = vadd.f32 %v563, %v4907
        %v4940 = vadd.f32 %v564, %v4908
        %v4941 = vadd.f32 %v565, %v4909
        %v4942 = vadd.f32 %v566, %v4910
        %v4943 = vadd.f32 %v567, %v4911
        %v4944 = vadd.f32 %v568, %v4912
        %v4945 = vadd.f32 %v569, %v4913
        %v4946 = vadd.f32 %v570, %v4914
        %v4947 = vadd.f32 %v571, %v4915
        %v4948 = vadd.f32 %v572, %v4916
        %v4949 = vadd.f32 %v573, %v4917
        %v4950 = vadd.f32 %v574, %v4918
        %v4951 = vadd.f32 %v575, %v4919
        %v4952 = vadd.f32 %v576, %v4920
        %v4953 = vadd.f32 %v577, %v4921
        %v4954 = vadd.f32 %v578, %v4922
        %v4955 = vadd.f32 %v579, %v4923
        %v4956 = vadd.f32 %v580, %v4924
        %v4957 = vadd.f32 %v581, %v4925
        %v4958 = vadd.f32 %v582, %v4926
        %v4959 = vadd.f32 %v583, %v4927
        %v4960 = vadd.f32 %v584, %v4928
        %v4961 = vadd.f32 %v585, %v4929
        %v4962 = vadd.f32 %v586, %v4930
        %v4963 = vadd.f32 %v587, %v4931
        %4964 = vst [vmem:[%s512] sm:$0xff] %v4932
        %4965 = vst [vmem:[%s512 + $0x8] sm:$0xff] %v4933
        %4966 = vst [vmem:[%s512 + $0x10] sm:$0xff] %v4934
        %4967 = vst [vmem:[%s512 + $0x18] sm:$0xff] %v4935
        %4968 = vst [vmem:[%s512 + $0x20] sm:$0xff] %v4936
        %4969 = vst [vmem:[%s512 + $0x28] sm:$0xff] %v4937
        %4970 = vst [vmem:[%s512 + $0x30] sm:$0xff] %v4938
        %4971 = vst [vmem:[%s512 + $0x38] sm:$0xff] %v4939
        %4972 = vst [vmem:[%s512 + $0x40] sm:$0xff] %v4940
        %4973 = vst [vmem:[%s512 + $0x48] sm:$0xff] %v4941
        %4974 = vst [vmem:[%s512 + $0x50] sm:$0xff] %v4942
        %4975 = vst [vmem:[%s512 + $0x58] sm:$0xff] %v4943
        %4976 = vst [vmem:[%s512 + $0x60] sm:$0xff] %v4944
        %4977 = vst [vmem:[%s512 + $0x68] sm:$0xff] %v4945
        %4978 = vst [vmem:[%s512 + $0x70] sm:$0xff] %v4946
        %4979 = vst [vmem:[%s512 + $0x78] sm:$0xff] %v4947
        %4980 = vst [vmem:[%s512 + $0x80] sm:$0xff] %v4948
        %4981 = vst [vmem:[%s512 + $0x88] sm:$0xff] %v4949
        %4982 = vst [vmem:[%s512 + $0x90] sm:$0xff] %v4950
        %4983 = vst [vmem:[%s512 + $0x98] sm:$0xff] %v4951
        %4984 = vst [vmem:[%s512 + $0xa0] sm:$0xff] %v4952
        %4985 = vst [vmem:[%s512 + $0xa8] sm:$0xff] %v4953
        %4986 = vst [vmem:[%s512 + $0xb0] sm:$0xff] %v4954
        %4987 = vst [vmem:[%s512 + $0xb8] sm:$0xff] %v4955
        %4988 = vst [vmem:[%s512 + $0xc0] sm:$0xff] %v4956
        %4989 = vst [vmem:[%s512 + $0xc8] sm:$0xff] %v4957
        %4990 = vst [vmem:[%s512 + $0xd0] sm:$0xff] %v4958
        %4991 = vst [vmem:[%s512 + $0xd8] sm:$0xff] %v4959
        %4992 = vst [vmem:[%s512 + $0xe0] sm:$0xff] %v4960
        %4993 = vst [vmem:[%s512 + $0xe8] sm:$0xff] %v4961
        %4994 = vst [vmem:[%s512 + $0xf0] sm:$0xff] %v4962
        %4995 = vst [vmem:[%s512 + $0xf8] sm:$0xff] %v4963
        %s4996 = sand.u32 %s276, 1
        %s4997 = scalar_lea.sflag [#allocation5], %s4996
        %s4998 = sand.u32 %s276, 1
        %s4999 = smul.addr %s4998, 256
        %s5000 = scalar_lea.vmem [#allocation18], %s4999
        // Predicated region
        $region101: #{tpu_custom_call.1} parent=63 // pred_check
          %p5001 = pneg %p286
        $region102: #{tpu_custom_call.1} parent=63 // pred_check_branch
          %5003 = sbr.rel (%p5001) target = $region104
        $region103: #{tpu_custom_call.1} parent=63 // pred_region
          %s5005 = ssub.s32 4096, 4096
          %5006 = vsyncadd %s4997, %s5005
          %s5007 = smul.addr %s32, 32
          %s5008 = smul.addr %s5007, 128
          %s5009 = scalar_lea.hbm %s11, %s5008
          %s5010 = sshll.u32 %s5000, 4
          %s5011 = int_to_ptr.vmem [resolvable:$true] %s5010
          %5016 = dma.vmem_to_hbm [thread:$0]  %s5011, 4096, %s5009, %s4997, 128, 128, 8
        $region104: #{tpu_custom_call.1} parent=63 // pred_fallthru
          _
      $region64: #{tpu_custom_call.1} parent=5 // pred_fallthru
        _
      %p5017 = scmp.le.s32.totalorder 2, %s27
      // Predicated region
      $region105: #{tpu_custom_call.1} parent=5 // pred_check
        %p5018 = pneg %p5017
      $region106: #{tpu_custom_call.1} parent=5 // pred_check_branch
        %5020 = sbr.rel (%p5018) target = $region108
      $region107: #{tpu_custom_call.1} parent=5 // pred_region
        %s5021 = ssub.s32 %s27, 2
        // Predicated region
        $region109: #{tpu_custom_call.1} parent=107 // pred_check
          %p5022 = pneg %p292
        $region110: #{tpu_custom_call.1} parent=107 // pred_check_branch
          %5024 = sbr.rel (%p5022) target = $region112
        $region111: #{tpu_custom_call.1} parent=107 // pred_region
          %s5025 = sand.u32 %s277, 1
          %s5026 = scalar_lea.sflag [#allocation5], %s5025
          %s5027 = sand.u32 %s277, 1
          %s5028 = smul.addr %s5027, 256
          %s5029 = scalar_lea.vmem [#allocation18], %s5028
          %5030 = dma.done %s5026, 4096
        $region112: #{tpu_custom_call.1} parent=107 // pred_fallthru
          _
      $region108: #{tpu_custom_call.1} parent=5 // pred_fallthru
        _
    $region6: #{tpu_custom_call.1} parent=1 // loop_footer
      %s31 = sadd.s32 1, %s27
    $region7: #{tpu_custom_call.1} parent=1 // loop_footer_branch
      %26 = sbr.rel target = $region3
    $region8: #{tpu_custom_call.1} parent=1 // loop_exit
      _
    %5031 = vsyncpa [#allocation4], 1
    %s5032 = scalar_lea.sflag [#allocation4], 1
    %5033 = vsyncpa %s5032, 1
    %5034 = vsyncpa [#allocation7], 1
    %5035 = vsyncpa [#allocation10], 1
    %5036 = vsyncpa [#allocation13], 1
    %5037 = vsyncpa [#allocation16], 1
    %5038 = vsyncpa [#allocation5], 1
    %s5039 = scalar_lea.sflag [#allocation5], 1
    %5040 = vsyncpa %s5039, 1

</llo_original>
